<compile_context>
chip_gen: v7x
topology: tpu7x:2x2x1
jax: 0.10.0
libtpu: 0.0.40
codegen_flags: <defaults>
</compile_context>

<pallas_src>
import functools
import math

import jax
import jax.numpy as jnp
from jax.experimental import pallas as pl
from jax.experimental.pallas import tpu as pltpu


def _layernorm(x, gamma, beta, eps=1e-5):
    mu = jnp.mean(x, axis=-1, keepdims=True)
    var = jnp.mean((x - mu) ** 2, axis=-1, keepdims=True)
    return (x - mu) * jax.lax.rsqrt(var + eps) * gamma + beta


def transformer_kernel(nh,
                       x_ref, emb_w_ref, emb_b_ref,
                       wq_ref, bq_ref, wk_ref, bk_ref, wv_ref, bv_ref,
                       opw_ref, opb_ref,
                       l1w_ref, l1b_ref, l2w_ref, l2b_ref,
                       n1g_ref, n1b_ref, n2g_ref, n2b_ref,
                       ow_ref, ob_ref,
                       out_ref, h_ref):
    # NOTE: correctness of the h_ref activation carry relies on the batch axis
    # being the OUTER grid axis and on l == 0 re-initializing it per batch
    # block; do not reorder the grid.
    l = pl.program_id(1)                     # layer index (innermost grid axis)
    num_layers = pl.num_programs(1)
    bb, S, Din = x_ref.shape                 # batch block, seq, input_dim
    H = emb_w_ref.shape[1]
    hd = H // nh
    wdt = wq_ref.dtype                       # weight / matmul-input dtype

    # ---- layer 0 of this batch block: embedding Linear(input_dim -> H) ----
    @pl.when(l == 0)
    def _embed():
        x = x_ref[...].reshape(bb * S, Din).astype(wdt)
        h_ref[...] = (jnp.dot(x, emb_w_ref[...],
                              preferred_element_type=jnp.float32)
                      + emb_b_ref[...])

    h = h_ref[...]                           # (bb*S, H), f32, rows = b*S + s
    hw = h.astype(wdt)                       # single activation cast per layer

    # ----------------- self-attention (post-LN) -----------------
    # 1/sqrt(hd) is folded into wq/bq on the host; qkv split is host-side too,
    # so q/k/v come straight out of full-width MXU dots (no lane slicing).
    q = jnp.dot(hw, wq_ref[...], preferred_element_type=jnp.float32) + bq_ref[...]
    k = jnp.dot(hw, wk_ref[...], preferred_element_type=jnp.float32) + bk_ref[...]
    v = jnp.dot(hw, wv_ref[...], preferred_element_type=jnp.float32) + bv_ref[...]

    ctx_rows = []
    for b in range(bb):                      # static unroll over the batch block
        r0, r1 = b * S, (b + 1) * S
        # reshape splits the lane axis into (head, head_dim); einshape moves
        # heads to the leading (batch) axis in one layout-aware relayout.
        qh = pltpu.einshape("shd->hsd", q[r0:r1, :].reshape(S, nh, hd))
        kh = pltpu.einshape("shd->hsd", k[r0:r1, :].reshape(S, nh, hd))
        vh = pltpu.einshape("shd->hsd", v[r0:r1, :].reshape(S, nh, hd))
        s = jnp.einsum('hqd,hkd->hqk', qh, kh,
                       preferred_element_type=jnp.float32)       # (nh, S, S)
        s = s - jnp.max(s, axis=-1, keepdims=True)
        p = jnp.exp(s)
        p = p * pl.reciprocal(jnp.sum(p, axis=-1, keepdims=True), approx=True)
        ch = jnp.einsum('hqk,hkd->hqd', p, vh,
                        preferred_element_type=jnp.float32)      # (nh, S, hd)
        ctx_rows.append(pltpu.einshape("hsd->shd", ch).reshape(S, H))
    ctx = ctx_rows[0] if bb == 1 else jnp.concatenate(ctx_rows, axis=0)

    attn = (jnp.dot(ctx.astype(wdt), opw_ref[...],
                    preferred_element_type=jnp.float32) + opb_ref[...])
    # dropout omitted (inference semantics)
    h = _layernorm(h + attn, n1g_ref[...], n1b_ref[...])

    # ----------------- feed-forward (ReLU) -----------------
    ff = (jnp.dot(h.astype(wdt), l1w_ref[...],
                  preferred_element_type=jnp.float32) + l1b_ref[...])
    ff = jnp.maximum(ff, 0.0)
    ff = (jnp.dot(ff.astype(wdt), l2w_ref[...],
                  preferred_element_type=jnp.float32) + l2b_ref[...])
    h = _layernorm(h + ff, n2g_ref[...], n2b_ref[...])
    h_ref[...] = h

    # ---- last layer: take final sequence position, project to classes ----
    @pl.when(l == num_layers - 1)
    def _project():
        last = h.reshape(bb, S, H)[:, S - 1, :]                  # (bb, H)
        out = (jnp.dot(last.astype(ow_ref.dtype), ow_ref[...],
                       preferred_element_type=jnp.float32) + ob_ref[...])
        out_ref[...] = out.reshape(out_ref.shape).astype(out_ref.dtype)


def _pick_batch_block(B, S):
    """Largest useful batch block: grow bb until bb*S >= 256 (amortizes the
    per-layer weight streaming) while keeping nb = B/bb >= 2 so both v7x
    TensorCores get work on the 'parallel' batch axis."""
    best = 1
    for bb in range(1, B + 1):
        if B % bb:
            continue
        nb = B // bb
        if B > 1 and nb < 2:
            continue
        best = bb
        if bb * S >= 256:
            break
    return best


def _vmem_limit_bytes(S, Din, H, C_pad, nh, bb, w_itemsize):
    """VMEM budget: 2x (double buffering) for per-layer weight blocks, plus
    resident emb/out weights, the x block, the h scratch and activation
    intermediates, clamped against the device's physical VMEM."""
    per_layer_w = 12 * H * H * w_itemsize + 14 * H * 4          # weights + biases/norms
    resident_w = (Din * H + H * C_pad) * w_itemsize + (H + C_pad) * 4
    x_block = 2 * bb * S * Din * 4                              # double-buffered input
    h_scratch = bb * S * H * 4
    acts = (3 * bb * S * H + bb * S * 4 * H                     # q/k/v, ff
            + 2 * nh * bb * S * S                               # scores + probs
            + 2 * bb * S * H) * 4                               # ctx, attn
    need = 2 * per_layer_w + resident_w + x_block + h_scratch + 2 * acts + (4 << 20)
    try:
        cap = int(pltpu.get_tpu_info().vmem_capacity_bytes)
    except Exception:
        cap = 64 << 20                                          # v7x per-TC minimum
    return int(min(cap - (2 << 20), max(2 * need, 32 << 20)))


def transformer_forward(src, params, num_heads, *, batch_block=None,
                        weight_dtype=jnp.float32):
    """src: (batch, input_dim, seq) -> logits (batch, num_classes).

    weight_dtype=jnp.bfloat16 halves weight DMA (recommended on v6e/v7x);
    LayerNorm / softmax / residuals stay f32.
    """
    B, Din, S = src.shape
    H = params['emb_w'].shape[0]
    L = params['inp_w'].shape[0]
    C = params['out_w'].shape[0]
    nh = num_heads
    assert H % nh == 0
    hd = H // nh
    bb = batch_block if batch_block is not None else _pick_batch_block(B, S)
    assert B % bb == 0
    nb = B // bb
    C_pad = max(128, -(-C // 128) * 128)     # lane-dense output store

    # batch-major (B, S, Din) so the batch axis can be blocked on the lead dim
    x = jnp.transpose(src, (0, 2, 1)).astype(jnp.float32)

    # ------- one-time host-side weight prep -------
    # pre-transpose every weight to (in, out); split qkv; fold 1/sqrt(hd)
    # into the q projection; zero-pad the class dimension to C_pad lanes.
    def t(w):
        return jnp.swapaxes(w, -1, -2).astype(weight_dtype)

    scale = 1.0 / math.sqrt(hd)
    inp_w, inp_b = params['inp_w'], params['inp_b']             # (L,3H,H), (L,1,3H)
    wq = (jnp.swapaxes(inp_w[:, 0:H, :], -1, -2) * scale).astype(weight_dtype)
    wk = t(inp_w[:, H:2 * H, :])
    wv = t(inp_w[:, 2 * H:3 * H, :])
    bq = inp_b[:, :, 0:H] * scale
    bk = inp_b[:, :, H:2 * H]
    bv = inp_b[:, :, 2 * H:3 * H]

    ow = jnp.zeros((H, C_pad), weight_dtype).at[:, :C].set(t(params['out_w']))
    ob = jnp.zeros((1, C_pad), jnp.float32).at[:, :C].set(params['out_b'])

    args = (x,
            t(params['emb_w']), params['emb_b'],
            wq, bq, wk, bk, wv, bv,
            t(params['op_w']), params['op_b'],
            t(params['l1_w']), params['l1_b'],
            t(params['l2_w']), params['l2_b'],
            params['n1_g'], params['n1_b'],
            params['n2_g'], params['n2_b'],
            ow, ob)

    def layer_spec(shape):        # per-layer tensors: block the layer axis
        return pl.BlockSpec((None,) + shape, lambda b, l: (l, 0, 0))

    def const_spec(shape):        # shared tensors: resident across the grid
        return pl.BlockSpec(shape, lambda b, l: (0, 0))

    in_specs = [
        pl.BlockSpec((bb, S, Din), lambda b, l: (b, 0, 0)),      # x
        const_spec((Din, H)), const_spec((1, H)),                # embedding
        layer_spec((H, H)), layer_spec((1, H)),                  # q proj (scaled)
        layer_spec((H, H)), layer_spec((1, H)),                  # k proj
        layer_spec((H, H)), layer_spec((1, H)),                  # v proj
        layer_spec((H, H)), layer_spec((1, H)),                  # attn out-proj
        layer_spec((H, 4 * H)), layer_spec((1, 4 * H)),          # ff linear1
        layer_spec((4 * H, H)), layer_spec((1, H)),              # ff linear2
        layer_spec((1, H)), layer_spec((1, H)),                  # norm1 g/b
        layer_spec((1, H)), layer_spec((1, H)),                  # norm2 g/b
        const_spec((H, C_pad)), const_spec((1, C_pad)),          # output layer
    ]
    out_specs = pl.BlockSpec((bb, 1, C_pad), lambda b, l: (b, 0, 0))

    # rough cost model so XLA schedules the custom call sensibly
    SB = B * S
    flops = (2 * SB * Din * H + 2 * B * H * C_pad
             + L * (6 * SB * H * H + 4 * B * nh * S * S * hd
                    + 2 * SB * H * H + 4 * SB * H * 4 * H))
    transcendentals = L * B * nh * S * S
    streamed = sum(int(a.size) * a.dtype.itemsize for a in args[3:19])
    const_b = sum(int(a.size) * a.dtype.itemsize
                  for a in (args[0], args[1], args[2], args[19], args[20]))
    bytes_accessed = int(const_b + nb * streamed + B * C_pad * 4)

    vmem_limit = _vmem_limit_bytes(S, Din, H, C_pad, nh, bb,
                                   jnp.dtype(weight_dtype).itemsize)

    out = pl.pallas_call(
        functools.partial(transformer_kernel, nh),
        out_shape=jax.ShapeDtypeStruct((B, 1, C_pad), jnp.float32),
        grid_spec=pltpu.PrefetchScalarGridSpec(
            num_scalar_prefetch=0,
            grid=(nb, L),                           # batch outer, layers inner
            in_specs=in_specs,
            out_specs=out_specs,
            scratch_shapes=[pltpu.VMEM((bb * S, H), jnp.float32)]),
        compiler_params=pltpu.CompilerParams(
            dimension_semantics=("parallel", "arbitrary"),
            vmem_limit_bytes=vmem_limit),
        cost_estimate=pl.CostEstimate(
            flops=int(flops), transcendentals=int(transcendentals),
            bytes_accessed=bytes_accessed),
    )(*args)
    return out[:, 0, :C]


def init_params(key, input_dim, hidden_dim, num_layers, num_classes):
    H, L = hidden_dim, num_layers
    ks = jax.random.split(key, 8)
    std = 0.02
    return {
        'emb_w': std * jax.random.normal(ks[0], (H, input_dim), jnp.float32),
        'emb_b': jnp.zeros((1, H), jnp.float32),
        'inp_w': std * jax.random.normal(ks[1], (L, 3 * H, H), jnp.float32),
        'inp_b': jnp.zeros((L, 1, 3 * H), jnp.float32),
        'op_w': std * jax.random.normal(ks[2], (L, H, H), jnp.float32),
        'op_b': jnp.zeros((L, 1, H), jnp.float32),
        'l1_w': std * jax.random.normal(ks[3], (L, 4 * H, H), jnp.float32),
        'l1_b': jnp.zeros((L, 1, 4 * H), jnp.float32),
        'l2_w': std * jax.random.normal(ks[4], (L, H, 4 * H), jnp.float32),
        'l2_b': jnp.zeros((L, 1, H), jnp.float32),
        'n1_g': jnp.ones((L, 1, H), jnp.float32),
        'n1_b': jnp.zeros((L, 1, H), jnp.float32),
        'n2_g': jnp.ones((L, 1, H), jnp.float32),
        'n2_b': jnp.zeros((L, 1, H), jnp.float32),
        'out_w': std * jax.random.normal(ks[5], (num_classes, H), jnp.float32),
        'out_b': jnp.zeros((1, num_classes), jnp.float32),
    }


def reference_forward(src, params, nh):
    """Pure-JAX reference matching the PyTorch module (eval mode)."""
    x = jnp.transpose(src, (2, 0, 1))                           # (S, B, Din)
    h = x @ params['emb_w'].T + params['emb_b']                 # (S, B, H)
    S, B, H = h.shape
    hd = H // nh
    L = params['inp_w'].shape[0]

    def ln(y, g, b):
        mu = y.mean(-1, keepdims=True)
        var = ((y - mu) ** 2).mean(-1, keepdims=True)
        return (y - mu) / jnp.sqrt(var + 1e-5) * g + b

    for l in range(L):
        qkv = h @ params['inp_w'][l].T + params['inp_b'][l]     # (S, B, 3H)
        q, k, v = qkv[..., :H], qkv[..., H:2 * H], qkv[..., 2 * H:]
        q = q.reshape(S, B, nh, hd).transpose(1, 2, 0, 3)       # (B, nh, S, hd)
        k = k.reshape(S, B, nh, hd).transpose(1, 2, 0, 3)
        v = v.reshape(S, B, nh, hd).transpose(1, 2, 0, 3)
        s = (q @ jnp.swapaxes(k, -1, -2)) / math.sqrt(hd)
        p = jax.nn.softmax(s, axis=-1)
        ctx = (p @ v).transpose(2, 0, 1, 3).reshape(S, B, H)
        attn = ctx @ params['op_w'][l].T + params['op_b'][l]
        h = ln(h + attn, params['n1_g'][l], params['n1_b'][l])
        ff = jnp.maximum(h @ params['l1_w'][l].T + params['l1_b'][l], 0.0)
        ff = ff @ params['l2_w'][l].T + params['l2_b'][l]
        h = ln(h + ff, params['n2_g'][l], params['n2_b'][l])
    return h[-1] @ params['out_w'].T + params['out_b']          # (B, C)


if __name__ == "__main__":
    # Shapes consistent with the module:
    #   input_dim=16, num_heads=4, hidden_dim=32, num_layers=2, classes=8
    #   src: (batch=2, input_dim=16, seq=8)
    B, input_dim, S = 2, 16, 8
    hidden_dim, num_heads, num_layers, num_classes = 32, 4, 2, 8

    key = jax.random.PRNGKey(0)
    kp, kx = jax.random.split(key)
    params = init_params(kp, input_dim, hidden_dim, num_layers, num_classes)
    src = jax.random.normal(kx, (B, input_dim, S), dtype=jnp.float32)

    # f32 weights in the demo so we match the PyTorch/f32 reference tightly;
    # pass weight_dtype=jnp.bfloat16 on v6e/v7x to halve weight DMA.
    out = transformer_forward(src, params, num_heads, weight_dtype=jnp.float32)
    out = jax.block_until_ready(out)

    assert out.shape == (B, num_classes)
    assert bool(jnp.all(jnp.isfinite(out)))

    ref = reference_forward(src, params, num_heads)
    max_err = float(jnp.max(jnp.abs(out - ref)))
    assert max_err < 1e-2, f"mismatch vs reference: {max_err}"

    print("KERNEL_OK")
</pallas_src>

<mosaic_0001>
module attributes {stable_mosaic.version = 11 : i64} {
  func.func @transformer_kernel(%arg0: i32, %arg1: i32, %arg2: memref<1x8x16xf32, #tpu.memory_space<vmem>>, %arg3: memref<16x32xf32, #tpu.memory_space<vmem>>, %arg4: memref<1x32xf32, #tpu.memory_space<vmem>>, %arg5: memref<1x32x32xf32, #tpu.memory_space<vmem>>, %arg6: memref<1x1x32xf32, #tpu.memory_space<vmem>>, %arg7: memref<1x32x32xf32, #tpu.memory_space<vmem>>, %arg8: memref<1x1x32xf32, #tpu.memory_space<vmem>>, %arg9: memref<1x32x32xf32, #tpu.memory_space<vmem>>, %arg10: memref<1x1x32xf32, #tpu.memory_space<vmem>>, %arg11: memref<1x32x32xf32, #tpu.memory_space<vmem>>, %arg12: memref<1x1x32xf32, #tpu.memory_space<vmem>>, %arg13: memref<1x32x128xf32, #tpu.memory_space<vmem>>, %arg14: memref<1x1x128xf32, #tpu.memory_space<vmem>>, %arg15: memref<1x128x32xf32, #tpu.memory_space<vmem>>, %arg16: memref<1x1x32xf32, #tpu.memory_space<vmem>>, %arg17: memref<1x1x32xf32, #tpu.memory_space<vmem>>, %arg18: memref<1x1x32xf32, #tpu.memory_space<vmem>>, %arg19: memref<1x1x32xf32, #tpu.memory_space<vmem>>, %arg20: memref<1x1x32xf32, #tpu.memory_space<vmem>>, %arg21: memref<32x128xf32, #tpu.memory_space<vmem>>, %arg22: memref<1x128xf32, #tpu.memory_space<vmem>>, %arg23: memref<1x1x128xf32, #tpu.memory_space<vmem>>, %arg24: memref<8x32xf32, #tpu.memory_space<vmem>>) attributes {dimension_semantics = [#tpu.dimension_semantics<parallel>, #tpu.dimension_semantics<arbitrary>], iteration_bounds = array<i64: 2, 2>, scalar_prefetch = 0 : i64, scratch_operands = 1 : i64, tpu.core_type = #tpu.core_type<tc>, window_params = [{transform_indices = @transform_0, window_bounds = array<i64: 1, 8, 16>}, {pipeline_mode = #tpu.pipeline_mode<synchronous>, transform_indices = @transform_1, window_bounds = array<i64: 16, 32>}, {pipeline_mode = #tpu.pipeline_mode<synchronous>, transform_indices = @transform_2, window_bounds = array<i64: 1, 32>}, {transform_indices = @transform_3, window_bounds = array<i64: 1, 32, 32>}, {transform_indices = @transform_4, window_bounds = array<i64: 1, 1, 32>}, {transform_indices = @transform_5, window_bounds = array<i64: 1, 32, 32>}, {transform_indices = @transform_6, window_bounds = array<i64: 1, 1, 32>}, {transform_indices = @transform_7, window_bounds = array<i64: 1, 32, 32>}, {transform_indices = @transform_8, window_bounds = array<i64: 1, 1, 32>}, {transform_indices = @transform_9, window_bounds = array<i64: 1, 32, 32>}, {transform_indices = @transform_10, window_bounds = array<i64: 1, 1, 32>}, {transform_indices = @transform_11, window_bounds = array<i64: 1, 32, 128>}, {transform_indices = @transform_12, window_bounds = array<i64: 1, 1, 128>}, {transform_indices = @transform_13, window_bounds = array<i64: 1, 128, 32>}, {transform_indices = @transform_14, window_bounds = array<i64: 1, 1, 32>}, {transform_indices = @transform_15, window_bounds = array<i64: 1, 1, 32>}, {transform_indices = @transform_16, window_bounds = array<i64: 1, 1, 32>}, {transform_indices = @transform_17, window_bounds = array<i64: 1, 1, 32>}, {transform_indices = @transform_18, window_bounds = array<i64: 1, 1, 32>}, {pipeline_mode = #tpu.pipeline_mode<synchronous>, transform_indices = @transform_19, window_bounds = array<i64: 32, 128>}, {pipeline_mode = #tpu.pipeline_mode<synchronous>, transform_indices = @transform_20, window_bounds = array<i64: 1, 128>}, {transform_indices = @transform_21, window_bounds = array<i64: 1, 1, 128>}]} {
    %c0_i32 = arith.constant 0 : i32
    %0 = arith.cmpi eq, %arg1, %c0_i32 : i32
    %1 = arith.extui %0 : i1 to i32
    %c0_i32_0 = arith.constant 0 : i32
    %2 = arith.cmpi ne, %1, %c0_i32_0 : i32
    scf.if %2 {
      %c0_73 = arith.constant 0 : index
      %c0_74 = arith.constant 0 : index
      %c0_75 = arith.constant 0 : index
      %126 = vector.load %arg2[%c0_73, %c0_74, %c0_75] : memref<1x8x16xf32, #tpu.memory_space<vmem>>, vector<1x8x16xf32>
      %127 = vector.shape_cast %126 : vector<1x8x16xf32> to vector<8x16xf32>
      %c0_76 = arith.constant 0 : index
      %c0_77 = arith.constant 0 : index
      %128 = vector.load %arg3[%c0_76, %c0_77] : memref<16x32xf32, #tpu.memory_space<vmem>>, vector<16x32xf32>
      %cst_78 = arith.constant dense<0.000000e+00> : vector<8x32xf32>
      %129 = tpu.matmul %127, %128, %cst_78 {dimension_numbers = #tpu.dot_dimension_numbers<[1], [0], [0], [1], [0, 0, 1, 1], [], []>} : vector<8x16xf32>, vector<16x32xf32>, vector<8x32xf32> -> vector<8x32xf32>
      %c0_79 = arith.constant 0 : index
      %c0_80 = arith.constant 0 : index
      %130 = vector.load %arg4[%c0_79, %c0_80] : memref<1x32xf32, #tpu.memory_space<vmem>>, vector<1x32xf32>
      %131 = vector.broadcast %130 : vector<1x32xf32> to vector<8x32xf32>
      %132 = arith.addf %129, %131 : vector<8x32xf32>
      %c0_81 = arith.constant 0 : index
      %c0_82 = arith.constant 0 : index
      %133 = vector.load %arg24[%c0_81, %c0_82] : memref<8x32xf32, #tpu.memory_space<vmem>>, vector<8x32xf32>
      tpu.vector_store %arg24[%c0_81, %c0_82], %132 {strides = array<i32>} : memref<8x32xf32, #tpu.memory_space<vmem>>, vector<8x32xf32>,
    } else {
    }
    %c0 = arith.constant 0 : index
    %c0_1 = arith.constant 0 : index
    %3 = vector.load %arg24[%c0, %c0_1] : memref<8x32xf32, #tpu.memory_space<vmem>>, vector<8x32xf32>
    %c0_2 = arith.constant 0 : index
    %c0_3 = arith.constant 0 : index
    %c0_4 = arith.constant 0 : index
    %4 = vector.load %arg5[%c0_2, %c0_3, %c0_4] : memref<1x32x32xf32, #tpu.memory_space<vmem>>, vector<1x32x32xf32>
    %5 = vector.shape_cast %4 : vector<1x32x32xf32> to vector<32x32xf32>
    %cst = arith.constant dense<0.000000e+00> : vector<8x32xf32>
    %6 = tpu.matmul %3, %5, %cst {dimension_numbers = #tpu.dot_dimension_numbers<[1], [0], [0], [1], [0, 0, 1, 1], [], []>} : vector<8x32xf32>, vector<32x32xf32>, vector<8x32xf32> -> vector<8x32xf32>
    %c0_5 = arith.constant 0 : index
    %c0_6 = arith.constant 0 : index
    %c0_7 = arith.constant 0 : index
    %7 = vector.load %arg6[%c0_5, %c0_6, %c0_7] : memref<1x1x32xf32, #tpu.memory_space<vmem>>, vector<1x1x32xf32>
    %8 = vector.shape_cast %7 : vector<1x1x32xf32> to vector<1x32xf32>
    %9 = vector.broadcast %8 : vector<1x32xf32> to vector<8x32xf32>
    %10 = arith.addf %6, %9 : vector<8x32xf32>
    %c0_8 = arith.constant 0 : index
    %c0_9 = arith.constant 0 : index
    %c0_10 = arith.constant 0 : index
    %11 = vector.load %arg7[%c0_8, %c0_9, %c0_10] : memref<1x32x32xf32, #tpu.memory_space<vmem>>, vector<1x32x32xf32>
    %12 = vector.shape_cast %11 : vector<1x32x32xf32> to vector<32x32xf32>
    %cst_11 = arith.constant dense<0.000000e+00> : vector<8x32xf32>
    %13 = tpu.matmul %3, %12, %cst_11 {dimension_numbers = #tpu.dot_dimension_numbers<[1], [0], [0], [1], [0, 0, 1, 1], [], []>} : vector<8x32xf32>, vector<32x32xf32>, vector<8x32xf32> -> vector<8x32xf32>
    %c0_12 = arith.constant 0 : index
    %c0_13 = arith.constant 0 : index
    %c0_14 = arith.constant 0 : index
    %14 = vector.load %arg8[%c0_12, %c0_13, %c0_14] : memref<1x1x32xf32, #tpu.memory_space<vmem>>, vector<1x1x32xf32>
    %15 = vector.shape_cast %14 : vector<1x1x32xf32> to vector<1x32xf32>
    %16 = vector.broadcast %15 : vector<1x32xf32> to vector<8x32xf32>
    %17 = arith.addf %13, %16 : vector<8x32xf32>
    %c0_15 = arith.constant 0 : index
    %c0_16 = arith.constant 0 : index
    %c0_17 = arith.constant 0 : index
    %18 = vector.load %arg9[%c0_15, %c0_16, %c0_17] : memref<1x32x32xf32, #tpu.memory_space<vmem>>, vector<1x32x32xf32>
    %19 = vector.shape_cast %18 : vector<1x32x32xf32> to vector<32x32xf32>
    %cst_18 = arith.constant dense<0.000000e+00> : vector<8x32xf32>
    %20 = tpu.matmul %3, %19, %cst_18 {dimension_numbers = #tpu.dot_dimension_numbers<[1], [0], [0], [1], [0, 0, 1, 1], [], []>} : vector<8x32xf32>, vector<32x32xf32>, vector<8x32xf32> -> vector<8x32xf32>
    %c0_19 = arith.constant 0 : index
    %c0_20 = arith.constant 0 : index
    %c0_21 = arith.constant 0 : index
    %21 = vector.load %arg10[%c0_19, %c0_20, %c0_21] : memref<1x1x32xf32, #tpu.memory_space<vmem>>, vector<1x1x32xf32>
    %22 = vector.shape_cast %21 : vector<1x1x32xf32> to vector<1x32xf32>
    %23 = vector.broadcast %22 : vector<1x32xf32> to vector<8x32xf32>
    %24 = arith.addf %20, %23 : vector<8x32xf32>
    %25 = vector.shape_cast %10 : vector<8x32xf32> to vector<8x4x8xf32>
    %26 = tpu.transpose %25, [1, 0, 2] : vector<8x4x8xf32> -> vector<4x8x8xf32>
    %27 = vector.shape_cast %17 : vector<8x32xf32> to vector<8x4x8xf32>
    %28 = tpu.transpose %27, [1, 0, 2] : vector<8x4x8xf32> -> vector<4x8x8xf32>
    %29 = vector.shape_cast %24 : vector<8x32xf32> to vector<8x4x8xf32>
    %30 = tpu.transpose %29, [1, 0, 2] : vector<8x4x8xf32> -> vector<4x8x8xf32>
    "tpu.trace_start"() <{level = 10 : i32, message = "hqd,hkd->hqk"}> : () -> ()
    %cst_22 = arith.constant dense<0.000000e+00> : vector<4x8x8xf32>
    %31 = tpu.matmul %26, %28, %cst_22 {dimension_numbers = #tpu.dot_dimension_numbers<[2], [2], [1], [1], [0, 0, 0, 1, 1, 1], [0], [0]>} : vector<4x8x8xf32>, vector<4x8x8xf32>, vector<4x8x8xf32> -> vector<4x8x8xf32>
    "tpu.trace_stop"() : () -> ()
    %cst_23 = arith.constant dense<0xFF800000> : vector<4x8xf32>
    %32 = vector.multi_reduction <maximumf>, %31, %cst_23 [2] : vector<4x8x8xf32> to vector<4x8xf32>
    %33 = vector.shape_cast %32 : vector<4x8xf32> to vector<4x8x1xf32>
    %34 = vector.broadcast %33 : vector<4x8x1xf32> to vector<4x8x8xf32>
    %35 = arith.subf %31, %34 : vector<4x8x8xf32>
    %36 = math.exp %35 : vector<4x8x8xf32>
    %cst_24 = arith.constant dense<0.000000e+00> : vector<4x8xf32>
    %37 = vector.multi_reduction <add>, %36, %cst_24 [2] : vector<4x8x8xf32> to vector<4x8xf32>
    %38 = vector.shape_cast %37 : vector<4x8xf32> to vector<4x8x1xf32>
    %39 = tpu.reciprocal %38 {approx = true} : vector<4x8x1xf32> -> vector<4x8x1xf32>
    %40 = vector.broadcast %39 : vector<4x8x1xf32> to vector<4x8x8xf32>
    %41 = arith.mulf %36, %40 : vector<4x8x8xf32>
    "tpu.trace_start"() <{level = 10 : i32, message = "hqk,hkd->hqd"}> : () -> ()
    %cst_25 = arith.constant dense<0.000000e+00> : vector<4x8x8xf32>
    %42 = tpu.matmul %41, %30, %cst_25 {dimension_numbers = #tpu.dot_dimension_numbers<[2], [1], [1], [2], [0, 0, 0, 1, 1, 2], [0], [0]>} : vector<4x8x8xf32>, vector<4x8x8xf32>, vector<4x8x8xf32> -> vector<4x8x8xf32>
    "tpu.trace_stop"() : () -> ()
    %43 = tpu.transpose %42, [1, 0, 2] : vector<4x8x8xf32> -> vector<8x4x8xf32>
    %44 = vector.shape_cast %43 : vector<8x4x8xf32> to vector<8x32xf32>
    %c0_26 = arith.constant 0 : index
    %c0_27 = arith.constant 0 : index
    %c0_28 = arith.constant 0 : index
    %45 = vector.load %arg11[%c0_26, %c0_27, %c0_28] : memref<1x32x32xf32, #tpu.memory_space<vmem>>, vector<1x32x32xf32>
    %46 = vector.shape_cast %45 : vector<1x32x32xf32> to vector<32x32xf32>
    %cst_29 = arith.constant dense<0.000000e+00> : vector<8x32xf32>
    %47 = tpu.matmul %44, %46, %cst_29 {dimension_numbers = #tpu.dot_dimension_numbers<[1], [0], [0], [1], [0, 0, 1, 1], [], []>} : vector<8x32xf32>, vector<32x32xf32>, vector<8x32xf32> -> vector<8x32xf32>
    %c0_30 = arith.constant 0 : index
    %c0_31 = arith.constant 0 : index
    %c0_32 = arith.constant 0 : index
    %48 = vector.load %arg12[%c0_30, %c0_31, %c0_32] : memref<1x1x32xf32, #tpu.memory_space<vmem>>, vector<1x1x32xf32>
    %49 = vector.shape_cast %48 : vector<1x1x32xf32> to vector<1x32xf32>
    %50 = vector.broadcast %49 : vector<1x32xf32> to vector<8x32xf32>
    %51 = arith.addf %47, %50 : vector<8x32xf32>
    %52 = arith.addf %3, %51 : vector<8x32xf32>
    %c0_33 = arith.constant 0 : index
    %c0_34 = arith.constant 0 : index
    %c0_35 = arith.constant 0 : index
    %53 = vector.load %arg17[%c0_33, %c0_34, %c0_35] : memref<1x1x32xf32, #tpu.memory_space<vmem>>, vector<1x1x32xf32>
    %54 = vector.shape_cast %53 : vector<1x1x32xf32> to vector<1x32xf32>
    %c0_36 = arith.constant 0 : index
    %c0_37 = arith.constant 0 : index
    %c0_38 = arith.constant 0 : index
    %55 = vector.load %arg18[%c0_36, %c0_37, %c0_38] : memref<1x1x32xf32, #tpu.memory_space<vmem>>, vector<1x1x32xf32>
    %56 = vector.shape_cast %55 : vector<1x1x32xf32> to vector<1x32xf32>
    %cst_39 = arith.constant dense<0.000000e+00> : vector<8xf32>
    %57 = vector.multi_reduction <add>, %52, %cst_39 [1] : vector<8x32xf32> to vector<8xf32>
    %58 = vector.shape_cast %57 : vector<8xf32> to vector<8x1xf32>
    %cst_40 = arith.constant 3.200000e+01 : f32
    %59 = vector.broadcast %cst_40 : f32 to vector<8x1xf32>
    %60 = arith.divf %58, %59 : vector<8x1xf32>
    %61 = vector.broadcast %60 : vector<8x1xf32> to vector<8x32xf32>
    %62 = arith.subf %52, %61 : vector<8x32xf32>
    %63 = arith.mulf %62, %62 : vector<8x32xf32>
    %cst_41 = arith.constant dense<0.000000e+00> : vector<8xf32>
    %64 = vector.multi_reduction <add>, %63, %cst_41 [1] : vector<8x32xf32> to vector<8xf32>
    %65 = vector.shape_cast %64 : vector<8xf32> to vector<8x1xf32>
    %cst_42 = arith.constant 3.200000e+01 : f32
    %66 = vector.broadcast %cst_42 : f32 to vector<8x1xf32>
    %67 = arith.divf %65, %66 : vector<8x1xf32>
    %68 = vector.broadcast %60 : vector<8x1xf32> to vector<8x32xf32>
    %69 = arith.subf %52, %68 : vector<8x32xf32>
    %cst_43 = arith.constant 9.99999974E-6 : f32
    %70 = vector.broadcast %cst_43 : f32 to vector<8x1xf32>
    %71 = arith.addf %67, %70 : vector<8x1xf32>
    %72 = math.rsqrt %71 : vector<8x1xf32>
    %73 = vector.broadcast %72 : vector<8x1xf32> to vector<8x32xf32>
    %74 = arith.mulf %69, %73 : vector<8x32xf32>
    %75 = vector.broadcast %54 : vector<1x32xf32> to vector<8x32xf32>
    %76 = arith.mulf %74, %75 : vector<8x32xf32>
    %77 = vector.broadcast %56 : vector<1x32xf32> to vector<8x32xf32>
    %78 = arith.addf %76, %77 : vector<8x32xf32>
    %c0_44 = arith.constant 0 : index
    %c0_45 = arith.constant 0 : index
    %c0_46 = arith.constant 0 : index
    %79 = vector.load %arg13[%c0_44, %c0_45, %c0_46] : memref<1x32x128xf32, #tpu.memory_space<vmem>>, vector<1x32x128xf32>
    %80 = vector.shape_cast %79 : vector<1x32x128xf32> to vector<32x128xf32>
    %cst_47 = arith.constant dense<0.000000e+00> : vector<8x128xf32>
    %81 = tpu.matmul %78, %80, %cst_47 {dimension_numbers = #tpu.dot_dimension_numbers<[1], [0], [0], [1], [0, 0, 1, 1], [], []>} : vector<8x32xf32>, vector<32x128xf32>, vector<8x128xf32> -> vector<8x128xf32>
    %c0_48 = arith.constant 0 : index
    %c0_49 = arith.constant 0 : index
    %c0_50 = arith.constant 0 : index
    %82 = vector.load %arg14[%c0_48, %c0_49, %c0_50] : memref<1x1x128xf32, #tpu.memory_space<vmem>>, vector<1x1x128xf32>
    %83 = vector.shape_cast %82 : vector<1x1x128xf32> to vector<1x128xf32>
    %84 = vector.broadcast %83 : vector<1x128xf32> to vector<8x128xf32>
    %85 = arith.addf %81, %84 : vector<8x128xf32>
    %cst_51 = arith.constant 0.000000e+00 : f32
    %86 = vector.broadcast %cst_51 : f32 to vector<8x128xf32>
    %87 = arith.maximumf %85, %86 : vector<8x128xf32>
    %c0_52 = arith.constant 0 : index
    %c0_53 = arith.constant 0 : index
    %c0_54 = arith.constant 0 : index
    %88 = vector.load %arg15[%c0_52, %c0_53, %c0_54] : memref<1x128x32xf32, #tpu.memory_space<vmem>>, vector<1x128x32xf32>
    %89 = vector.shape_cast %88 : vector<1x128x32xf32> to vector<128x32xf32>
    %cst_55 = arith.constant dense<0.000000e+00> : vector<8x32xf32>
    %90 = tpu.matmul %87, %89, %cst_55 {dimension_numbers = #tpu.dot_dimension_numbers<[1], [0], [0], [1], [0, 0, 1, 1], [], []>} : vector<8x128xf32>, vector<128x32xf32>, vector<8x32xf32> -> vector<8x32xf32>
    %c0_56 = arith.constant 0 : index
    %c0_57 = arith.constant 0 : index
    %c0_58 = arith.constant 0 : index
    %91 = vector.load %arg16[%c0_56, %c0_57, %c0_58] : memref<1x1x32xf32, #tpu.memory_space<vmem>>, vector<1x1x32xf32>
    %92 = vector.shape_cast %91 : vector<1x1x32xf32> to vector<1x32xf32>
    %93 = vector.broadcast %92 : vector<1x32xf32> to vector<8x32xf32>
    %94 = arith.addf %90, %93 : vector<8x32xf32>
    %95 = arith.addf %78, %94 : vector<8x32xf32>
    %c0_59 = arith.constant 0 : index
    %c0_60 = arith.constant 0 : index
    %c0_61 = arith.constant 0 : index
    %96 = vector.load %arg19[%c0_59, %c0_60, %c0_61] : memref<1x1x32xf32, #tpu.memory_space<vmem>>, vector<1x1x32xf32>
    %97 = vector.shape_cast %96 : vector<1x1x32xf32> to vector<1x32xf32>
    %c0_62 = arith.constant 0 : index
    %c0_63 = arith.constant 0 : index
    %c0_64 = arith.constant 0 : index
    %98 = vector.load %arg20[%c0_62, %c0_63, %c0_64] : memref<1x1x32xf32, #tpu.memory_space<vmem>>, vector<1x1x32xf32>
    %99 = vector.shape_cast %98 : vector<1x1x32xf32> to vector<1x32xf32>
    %cst_65 = arith.constant dense<0.000000e+00> : vector<8xf32>
    %100 = vector.multi_reduction <add>, %95, %cst_65 [1] : vector<8x32xf32> to vector<8xf32>
    %101 = vector.shape_cast %100 : vector<8xf32> to vector<8x1xf32>
    %cst_66 = arith.constant 3.200000e+01 : f32
    %102 = vector.broadcast %cst_66 : f32 to vector<8x1xf32>
    %103 = arith.divf %101, %102 : vector<8x1xf32>
    %104 = vector.broadcast %103 : vector<8x1xf32> to vector<8x32xf32>
    %105 = arith.subf %95, %104 : vector<8x32xf32>
    %106 = arith.mulf %105, %105 : vector<8x32xf32>
    %cst_67 = arith.constant dense<0.000000e+00> : vector<8xf32>
    %107 = vector.multi_reduction <add>, %106, %cst_67 [1] : vector<8x32xf32> to vector<8xf32>
    %108 = vector.shape_cast %107 : vector<8xf32> to vector<8x1xf32>
    %cst_68 = arith.constant 3.200000e+01 : f32
    %109 = vector.broadcast %cst_68 : f32 to vector<8x1xf32>
    %110 = arith.divf %108, %109 : vector<8x1xf32>
    %111 = vector.broadcast %103 : vector<8x1xf32> to vector<8x32xf32>
    %112 = arith.subf %95, %111 : vector<8x32xf32>
    %cst_69 = arith.constant 9.99999974E-6 : f32
    %113 = vector.broadcast %cst_69 : f32 to vector<8x1xf32>
    %114 = arith.addf %110, %113 : vector<8x1xf32>
    %115 = math.rsqrt %114 : vector<8x1xf32>
    %116 = vector.broadcast %115 : vector<8x1xf32> to vector<8x32xf32>
    %117 = arith.mulf %112, %116 : vector<8x32xf32>
    %118 = vector.broadcast %97 : vector<1x32xf32> to vector<8x32xf32>
    %119 = arith.mulf %117, %118 : vector<8x32xf32>
    %120 = vector.broadcast %99 : vector<1x32xf32> to vector<8x32xf32>
    %121 = arith.addf %119, %120 : vector<8x32xf32>
    %c0_70 = arith.constant 0 : index
    %c0_71 = arith.constant 0 : index
    %122 = vector.load %arg24[%c0_70, %c0_71] : memref<8x32xf32, #tpu.memory_space<vmem>>, vector<8x32xf32>
    tpu.vector_store %arg24[%c0_70, %c0_71], %121 {strides = array<i32>} : memref<8x32xf32, #tpu.memory_space<vmem>>, vector<8x32xf32>,
    %c1_i32 = arith.constant 1 : i32
    %123 = arith.cmpi eq, %arg1, %c1_i32 : i32
    %124 = arith.extui %123 : i1 to i32
    %c0_i32_72 = arith.constant 0 : i32
    %125 = arith.cmpi ne, %124, %c0_i32_72 : i32
    scf.if %125 {
      %126 = vector.shape_cast %121 : vector<8x32xf32> to vector<1x8x32xf32>
      %127 = vector.extract_strided_slice %126 {offsets = [0, 7, 0], sizes = [1, 1, 32], strides = [1, 1, 1]} : vector<1x8x32xf32> to vector<1x1x32xf32>
      %128 = vector.shape_cast %127 : vector<1x1x32xf32> to vector<1x32xf32>
      %c0_73 = arith.constant 0 : index
      %c0_74 = arith.constant 0 : index
      %129 = vector.load %arg21[%c0_73, %c0_74] : memref<32x128xf32, #tpu.memory_space<vmem>>, vector<32x128xf32>
      %cst_75 = arith.constant dense<0.000000e+00> : vector<1x128xf32>
      %130 = tpu.matmul %128, %129, %cst_75 {dimension_numbers = #tpu.dot_dimension_numbers<[1], [0], [0], [1], [0, 0, 1, 1], [], []>} : vector<1x32xf32>, vector<32x128xf32>, vector<1x128xf32> -> vector<1x128xf32>
      %c0_76 = arith.constant 0 : index
      %c0_77 = arith.constant 0 : index
      %131 = vector.load %arg22[%c0_76, %c0_77] : memref<1x128xf32, #tpu.memory_space<vmem>>, vector<1x128xf32>
      %132 = arith.addf %130, %131 : vector<1x128xf32>
      %133 = vector.shape_cast %132 : vector<1x128xf32> to vector<1x1x128xf32>
      %c0_78 = arith.constant 0 : index
      %c0_79 = arith.constant 0 : index
      %c0_80 = arith.constant 0 : index
      %134 = vector.load %arg23[%c0_78, %c0_79, %c0_80] : memref<1x1x128xf32, #tpu.memory_space<vmem>>, vector<1x1x128xf32>
      tpu.vector_store %arg23[%c0_78, %c0_79, %c0_80], %133 {strides = array<i32>} : memref<1x1x128xf32, #tpu.memory_space<vmem>>, vector<1x1x128xf32>,
    } else {
    }
    return
  }
  func.func @transform_0(%arg0: i32, %arg1: i32) -> (i32, i32, i32) {
    %c0_i32 = arith.constant 0 : i32
    %c0_i32_0 = arith.constant 0 : i32
    %c0_i32_1 = arith.constant 0 : i32
    return %arg0, %c0_i32, %c0_i32_0 : i32, i32, i32
  }
  func.func @transform_1(%arg0: i32, %arg1: i32) -> (i32, i32) {
    %c0_i32 = arith.constant 0 : i32
    %c0_i32_0 = arith.constant 0 : i32
    %c0_i32_1 = arith.constant 0 : i32
    return %c0_i32, %c0_i32_0 : i32, i32
  }
  func.func @transform_2(%arg0: i32, %arg1: i32) -> (i32, i32) {
    %c0_i32 = arith.constant 0 : i32
    %c0_i32_0 = arith.constant 0 : i32
    %c0_i32_1 = arith.constant 0 : i32
    return %c0_i32, %c0_i32_0 : i32, i32
  }
  func.func @transform_3(%arg0: i32, %arg1: i32) -> (i32, i32, i32) {
    %c0_i32 = arith.constant 0 : i32
    %c0_i32_0 = arith.constant 0 : i32
    %c0_i32_1 = arith.constant 0 : i32
    return %arg1, %c0_i32, %c0_i32_0 : i32, i32, i32
  }
  func.func @transform_4(%arg0: i32, %arg1: i32) -> (i32, i32, i32) {
    %c0_i32 = arith.constant 0 : i32
    %c0_i32_0 = arith.constant 0 : i32
    %c0_i32_1 = arith.constant 0 : i32
    return %arg1, %c0_i32, %c0_i32_0 : i32, i32, i32
  }
  func.func @transform_5(%arg0: i32, %arg1: i32) -> (i32, i32, i32) {
    %c0_i32 = arith.constant 0 : i32
    %c0_i32_0 = arith.constant 0 : i32
    %c0_i32_1 = arith.constant 0 : i32
    return %arg1, %c0_i32, %c0_i32_0 : i32, i32, i32
  }
  func.func @transform_6(%arg0: i32, %arg1: i32) -> (i32, i32, i32) {
    %c0_i32 = arith.constant 0 : i32
    %c0_i32_0 = arith.constant 0 : i32
    %c0_i32_1 = arith.constant 0 : i32
    return %arg1, %c0_i32, %c0_i32_0 : i32, i32, i32
  }
  func.func @transform_7(%arg0: i32, %arg1: i32) -> (i32, i32, i32) {
    %c0_i32 = arith.constant 0 : i32
    %c0_i32_0 = arith.constant 0 : i32
    %c0_i32_1 = arith.constant 0 : i32
    return %arg1, %c0_i32, %c0_i32_0 : i32, i32, i32
  }
  func.func @transform_8(%arg0: i32, %arg1: i32) -> (i32, i32, i32) {
    %c0_i32 = arith.constant 0 : i32
    %c0_i32_0 = arith.constant 0 : i32
    %c0_i32_1 = arith.constant 0 : i32
    return %arg1, %c0_i32, %c0_i32_0 : i32, i32, i32
  }
  func.func @transform_9(%arg0: i32, %arg1: i32) -> (i32, i32, i32) {
    %c0_i32 = arith.constant 0 : i32
    %c0_i32_0 = arith.constant 0 : i32
    %c0_i32_1 = arith.constant 0 : i32
    return %arg1, %c0_i32, %c0_i32_0 : i32, i32, i32
  }
  func.func @transform_10(%arg0: i32, %arg1: i32) -> (i32, i32, i32) {
    %c0_i32 = arith.constant 0 : i32
    %c0_i32_0 = arith.constant 0 : i32
    %c0_i32_1 = arith.constant 0 : i32
    return %arg1, %c0_i32, %c0_i32_0 : i32, i32, i32
  }
  func.func @transform_11(%arg0: i32, %arg1: i32) -> (i32, i32, i32) {
    %c0_i32 = arith.constant 0 : i32
    %c0_i32_0 = arith.constant 0 : i32
    %c0_i32_1 = arith.constant 0 : i32
    return %arg1, %c0_i32, %c0_i32_0 : i32, i32, i32
  }
  func.func @transform_12(%arg0: i32, %arg1: i32) -> (i32, i32, i32) {
    %c0_i32 = arith.constant 0 : i32
    %c0_i32_0 = arith.constant 0 : i32
    %c0_i32_1 = arith.constant 0 : i32
    return %arg1, %c0_i32, %c0_i32_0 : i32, i32, i32
  }
  func.func @transform_13(%arg0: i32, %arg1: i32) -> (i32, i32, i32) {
    %c0_i32 = arith.constant 0 : i32
    %c0_i32_0 = arith.constant 0 : i32
    %c0_i32_1 = arith.constant 0 : i32
    return %arg1, %c0_i32, %c0_i32_0 : i32, i32, i32
  }
  func.func @transform_14(%arg0: i32, %arg1: i32) -> (i32, i32, i32) {
    %c0_i32 = arith.constant 0 : i32
    %c0_i32_0 = arith.constant 0 : i32
    %c0_i32_1 = arith.constant 0 : i32
    return %arg1, %c0_i32, %c0_i32_0 : i32, i32, i32
  }
  func.func @transform_15(%arg0: i32, %arg1: i32) -> (i32, i32, i32) {
    %c0_i32 = arith.constant 0 : i32
    %c0_i32_0 = arith.constant 0 : i32
    %c0_i32_1 = arith.constant 0 : i32
    return %arg1, %c0_i32, %c0_i32_0 : i32, i32, i32
  }
  func.func @transform_16(%arg0: i32, %arg1: i32) -> (i32, i32, i32) {
    %c0_i32 = arith.constant 0 : i32
    %c0_i32_0 = arith.constant 0 : i32
    %c0_i32_1 = arith.constant 0 : i32
    return %arg1, %c0_i32, %c0_i32_0 : i32, i32, i32
  }
  func.func @transform_17(%arg0: i32, %arg1: i32) -> (i32, i32, i32) {
    %c0_i32 = arith.constant 0 : i32
    %c0_i32_0 = arith.constant 0 : i32
    %c0_i32_1 = arith.constant 0 : i32
    return %arg1, %c0_i32, %c0_i32_0 : i32, i32, i32
  }
  func.func @transform_18(%arg0: i32, %arg1: i32) -> (i32, i32, i32) {
    %c0_i32 = arith.constant 0 : i32
    %c0_i32_0 = arith.constant 0 : i32
    %c0_i32_1 = arith.constant 0 : i32
    return %arg1, %c0_i32, %c0_i32_0 : i32, i32, i32
  }
  func.func @transform_19(%arg0: i32, %arg1: i32) -> (i32, i32) {
    %c0_i32 = arith.constant 0 : i32
    %c0_i32_0 = arith.constant 0 : i32
    %c0_i32_1 = arith.constant 0 : i32
    return %c0_i32, %c0_i32_0 : i32, i32
  }
  func.func @transform_20(%arg0: i32, %arg1: i32) -> (i32, i32) {
    %c0_i32 = arith.constant 0 : i32
    %c0_i32_0 = arith.constant 0 : i32
    %c0_i32_1 = arith.constant 0 : i32
    return %c0_i32, %c0_i32_0 : i32, i32
  }
  func.func @transform_21(%arg0: i32, %arg1: i32) -> (i32, i32, i32) {
    %c0_i32 = arith.constant 0 : i32
    %c0_i32_0 = arith.constant 0 : i32
    %c0_i32_1 = arith.constant 0 : i32
    return %arg0, %c0_i32, %c0_i32_0 : i32, i32, i32
  }
}

</mosaic_0001>

<llo_original>
// kernel: tpu_custom_call.1
$region0: #{tpu_custom_call.1}
  #allocation0 [shape = 'u32[]', space=smem, size = 0x4, offset = 0x4, fixed_abs, tag = 'smem constant byte address 0x4 - core index']
  #allocation1 [shape = 'u32[144,128]{1,0:T(1,128)}', space=vmem, size = 0x12000, scoped, tag = 'internal scratch']
  #allocation2 [shape = 'f32[8,32]{1,0:T(8,128)}', space=vmem, size = 0x1000, scoped, tag = 'scratch operand']
  %s0 = inlined_call_operand.hbm [shape: f32[2,8,16], index: 0, kind: input, shape index: {}]
  %s1 = inlined_call_operand.hbm [shape: f32[16,32], index: 1, kind: input, shape index: {}]
  %s2 = inlined_call_operand.vmem [shape: f32[1,32], index: 2, kind: input, shape index: {}]
  %s3 = inlined_call_operand.vmem [shape: f32[2,32,32], index: 3, kind: input, shape index: {}]
  %s4 = inlined_call_operand.vmem [shape: f32[2,1,32], index: 4, kind: input, shape index: {}]
  %s5 = inlined_call_operand.vmem [shape: f32[2,32,32], index: 5, kind: input, shape index: {}]
  %s6 = inlined_call_operand.vmem [shape: f32[2,1,32], index: 6, kind: input, shape index: {}]
  %s7 = inlined_call_operand.vmem [shape: f32[2,32,32], index: 7, kind: input, shape index: {}]
  %s8 = inlined_call_operand.hbm [shape: f32[2,1,32], index: 8, kind: input, shape index: {}]
  %s9 = inlined_call_operand.vmem [shape: f32[2,32,32], index: 9, kind: input, shape index: {}]
  %s10 = inlined_call_operand.hbm [shape: f32[2,1,32], index: 10, kind: input, shape index: {}]
  %s11 = inlined_call_operand.vmem [shape: f32[2,32,128], index: 11, kind: input, shape index: {}]
  %s12 = inlined_call_operand.vmem [shape: f32[2,1,128], index: 12, kind: input, shape index: {}]
  %s13 = inlined_call_operand.vmem [shape: f32[2,128,32], index: 13, kind: input, shape index: {}]
  %s14 = inlined_call_operand.vmem [shape: f32[2,1,32], index: 14, kind: input, shape index: {}]
  %s15 = inlined_call_operand.vmem [shape: f32[2,1,32], index: 15, kind: input, shape index: {}]
  %s16 = inlined_call_operand.vmem [shape: f32[2,1,32], index: 16, kind: input, shape index: {}]
  %s17 = inlined_call_operand.vmem [shape: f32[2,1,32], index: 17, kind: input, shape index: {}]
  %s18 = inlined_call_operand.vmem [shape: f32[2,1,32], index: 18, kind: input, shape index: {}]
  %s19 = inlined_call_operand.vmem [shape: f32[32,128], index: 19, kind: input, shape index: {}]
  %s20 = inlined_call_operand.vmem [shape: f32[1,128], index: 20, kind: input, shape index: {}]
  %s21 = inlined_call_operand.hbm [shape: f32[2,1,128], index: 21, kind: output, shape index: {}]
  %s22 = sld [smem:[#allocation0]]
  $region141: #{tpu_custom_call.1} parent=0
    _
  %s24 = ssub.s32 1, %s22
  %s25 = scalar_select 0, %s24, %s22
  $region1: #{tpu_custom_call.1} parent=0
    #allocation3 [shape = 'u8[8192]{0}', space=vmem, size = 0x2000, scoped, tag = 'input window, operand 0']
    #allocation4 [shape = 's32[2]{0}', space=sflag, size = 0x8, scoped, tag = 'scoped memory for tpu_custom_call.1']
    #allocation5 [shape = 's32[2]{0}', space=sflag, size = 0x8, scoped, tag = 'scoped memory for tpu_custom_call.1']
    #allocation6 [shape = 'u8[8192]{0}', space=vmem, size = 0x2000, scoped, tag = 'input window, operand 1, single buffered']
    #allocation7 [shape = 's32[1]{0}', space=sflag, size = 0x4, scoped, tag = 'scoped memory for tpu_custom_call.1']
    #allocation8 [shape = 'u8[1024]{0}', space=vmem, size = 0x400, scoped, tag = 'input window, operand 8']
    #allocation9 [shape = 'u8[1024]{0}', space=vmem, size = 0x400, scoped, tag = 'input window, operand 10']
    #allocation10 [shape = 'u8[1024]{0}', space=vmem, size = 0x400, scoped, tag = 'output window, operand 0']
    %26 = vsyncpa [#allocation4], 0
    %s27 = scalar_lea.sflag [#allocation4], 1
    %28 = vsyncpa %s27, 0
    %29 = vsyncpa [#allocation7], 0
    %30 = vsyncpa [#allocation5], 0
    %s31 = scalar_lea.sflag [#allocation5], 1
    %32 = vsyncpa %s31, 0
    loop: start=0, step=1, limit=6
    $region2: #{tpu_custom_call.1} parent=1 // loop_pre_header
      _
    $region3: #{tpu_custom_call.1} parent=1 // loop_header
      %s34 = sphi 0, %s38
      %p35 = scmp.ge.s32.totalorder %s34, 6
      %s41 = sphi 0, %s53
      %s42 = sphi 0, %s49
      %s43 = sphi 0, %s41
      %s44 = sphi 0, %s42
      %s45 = sphi 0, %s43
      %s46 = sphi 0, %s44
      %s56 = sphi 0, %s58
      %s59 = sphi 0, %s56
      %s60 = sphi 0, %s59
      %s76 = sphi 0, %s60
      %s80 = sphi 0, %s80
      %s82 = sphi 0, %s80
      %s83 = sphi 0, %s82
      %s97 = sphi 0, %s83
      %s101 = sphi 0, %s101
      %s103 = sphi 0, %s101
      %s104 = sphi 0, %s103
      %s118 = sphi 0, %s104
      %s124 = sphi 0, %s126
      %s127 = sphi 0, %s124
      %s128 = sphi 0, %s127
      %s144 = sphi 0, %s128
      %s150 = sphi 0, %s152
      %s153 = sphi 0, %s150
      %s154 = sphi 0, %s153
      %s170 = sphi 0, %s154
      %s176 = sphi 0, %s178
      %s179 = sphi 0, %s176
      %s180 = sphi 0, %s179
      %s196 = sphi 0, %s180
      %s202 = sphi 0, %s204
      %s205 = sphi 0, %s202
      %s206 = sphi 0, %s205
      %s222 = sphi 0, %s206
      %s228 = sphi 0, %s230
      %s231 = sphi 0, %s228
      %s232 = sphi 0, %s231
      %s248 = sphi 0, %s232
      %s254 = sphi 0, %s256
      %s257 = sphi 0, %s254
      %s258 = sphi 0, %s257
      %s274 = sphi 0, %s258
      %s280 = sphi 0, %s282
      %s283 = sphi 0, %s280
      %s284 = sphi 0, %s283
      %s300 = sphi 0, %s284
      %s306 = sphi 0, %s308
      %s309 = sphi 0, %s306
      %s310 = sphi 0, %s309
      %s326 = sphi 0, %s310
      %s332 = sphi 0, %s334
      %s335 = sphi 0, %s332
      %s336 = sphi 0, %s335
      %s352 = sphi 0, %s336
      %s358 = sphi 0, %s360
      %s361 = sphi 0, %s358
      %s362 = sphi 0, %s361
      %s378 = sphi 0, %s362
      %s384 = sphi 0, %s386
      %s387 = sphi 0, %s384
      %s388 = sphi 0, %s387
      %s404 = sphi 0, %s388
      %s410 = sphi 0, %s412
      %s413 = sphi 0, %s410
      %s414 = sphi 0, %s413
      %s430 = sphi 0, %s414
      %s436 = sphi 0, %s438
      %s439 = sphi 0, %s436
      %s440 = sphi 0, %s439
      %s456 = sphi 0, %s440
      %s462 = sphi 0, %s464
      %s465 = sphi 0, %s462
      %s466 = sphi 0, %s465
      %s482 = sphi 0, %s466
      %s488 = sphi 0, %s490
      %s491 = sphi 0, %s488
      %s492 = sphi 0, %s491
      %s508 = sphi 0, %s492
      %s514 = sphi 0, %s516
      %s517 = sphi 0, %s514
      %s518 = sphi 0, %s517
      %s534 = sphi 0, %s518
      %s538 = sphi 0, %s538
      %s540 = sphi 0, %s538
      %s541 = sphi 0, %s540
      %s555 = sphi 0, %s541
      %s559 = sphi 0, %s559
      %s561 = sphi 0, %s559
      %s562 = sphi 0, %s561
      %s576 = sphi 0, %s562
      %s582 = sphi 0, %s584
      %s585 = sphi 0, %s582
      %s586 = sphi 0, %s585
      %s602 = sphi 0, %s586
    $region4: #{tpu_custom_call.1} parent=1 // loop_header_branch
      %37 = sbr.rel (%p35) target = $region8
    $region5: #{tpu_custom_call.1} parent=1 // loop_body
      %s39 = ssub.s32 %s34, 1
      %s40 = ssub.s32 %s34, 2
      %s47 = sadd.s32 1, %s42
      %p48 = scmp.ge.s32.totalorder %s47, 2
      %s49 = scalar_select %p48, 0, %s47
      %s50 = sadd.s32 1, %s41
      %s51 = scalar_select %p48, %s50, %s41
      %p52 = scmp.ge.s32.totalorder %s51, 2
      %s53 = scalar_select %p52, 0, %s51
      %s54 = ssub.s32 %s41, %s53
      %p55 = scmp.eq.s32.totalorder %s54, 0
      %s57 = sadd.s32 %s56, 1
      %s58 = scalar_select %p55, %s56, %s57
      %p61 = pneg %p55
      %p62 = scmp.eq.s32.totalorder %s34, 3
      %p63 = por %p61, %p62
      %p64 = scmp.ne.s32.totalorder %s56, %s59
      %p65 = scmp.eq.s32.totalorder %s34, 0
      %p66 = por %p64, %p65
      %p67 = scmp.ne.s32.totalorder %s56, %s59
      %p68 = scmp.eq.s32.totalorder %s39, 3
      %p69 = por %p67, %p68
      %p70 = scmp.ne.s32.totalorder %s59, %s60
      %p71 = scmp.eq.s32.totalorder %s39, 0
      %p72 = por %p70, %p71
      %p73 = scmp.ne.s32.totalorder %s59, %s60
      %p74 = scmp.eq.s32.totalorder %s40, 3
      %p75 = por %p73, %p74
      %p77 = scmp.ne.s32.totalorder %s60, %s76
      %p78 = scmp.eq.s32.totalorder %s40, 0
      %p79 = por %p77, %p78
      %s81 = sadd.s32 %s80, 1
      %p84 = scmp.eq.s32.totalorder %s34, 3
      %p85 = scmp.ne.s32.totalorder %s80, %s82
      %p86 = scmp.eq.s32.totalorder %s34, 0
      %p87 = por %p85, %p86
      %p88 = scmp.ne.s32.totalorder %s80, %s82
      %p89 = scmp.eq.s32.totalorder %s39, 3
      %p90 = por %p88, %p89
      %p91 = scmp.ne.s32.totalorder %s82, %s83
      %p92 = scmp.eq.s32.totalorder %s39, 0
      %p93 = por %p91, %p92
      %p94 = scmp.ne.s32.totalorder %s82, %s83
      %p95 = scmp.eq.s32.totalorder %s40, 3
      %p96 = por %p94, %p95
      %p98 = scmp.ne.s32.totalorder %s83, %s97
      %p99 = scmp.eq.s32.totalorder %s40, 0
      %p100 = por %p98, %p99
      %s102 = sadd.s32 %s101, 1
      %p105 = scmp.eq.s32.totalorder %s34, 3
      %p106 = scmp.ne.s32.totalorder %s101, %s103
      %p107 = scmp.eq.s32.totalorder %s34, 0
      %p108 = por %p106, %p107
      %p109 = scmp.ne.s32.totalorder %s101, %s103
      %p110 = scmp.eq.s32.totalorder %s39, 3
      %p111 = por %p109, %p110
      %p112 = scmp.ne.s32.totalorder %s103, %s104
      %p113 = scmp.eq.s32.totalorder %s39, 0
      %p114 = por %p112, %p113
      %p115 = scmp.ne.s32.totalorder %s103, %s104
      %p116 = scmp.eq.s32.totalorder %s40, 3
      %p117 = por %p115, %p116
      %p119 = scmp.ne.s32.totalorder %s104, %s118
      %p120 = scmp.eq.s32.totalorder %s40, 0
      %p121 = por %p119, %p120
      %s122 = ssub.s32 %s42, %s49
      %p123 = scmp.eq.s32.totalorder %s122, 0
      %s125 = sadd.s32 %s124, 1
      %s126 = scalar_select %p123, %s124, %s125
      %p129 = pneg %p123
      %p130 = scmp.eq.s32.totalorder %s34, 3
      %p131 = por %p129, %p130
      %p132 = scmp.ne.s32.totalorder %s124, %s127
      %p133 = scmp.eq.s32.totalorder %s34, 0
      %p134 = por %p132, %p133
      %p135 = scmp.ne.s32.totalorder %s124, %s127
      %p136 = scmp.eq.s32.totalorder %s39, 3
      %p137 = por %p135, %p136
      %p138 = scmp.ne.s32.totalorder %s127, %s128
      %p139 = scmp.eq.s32.totalorder %s39, 0
      %p140 = por %p138, %p139
      %p141 = scmp.ne.s32.totalorder %s127, %s128
      %p142 = scmp.eq.s32.totalorder %s40, 3
      %p143 = por %p141, %p142
      %p145 = scmp.ne.s32.totalorder %s128, %s144
      %p146 = scmp.eq.s32.totalorder %s40, 0
      %p147 = por %p145, %p146
      %s148 = ssub.s32 %s42, %s49
      %p149 = scmp.eq.s32.totalorder %s148, 0
      %s151 = sadd.s32 %s150, 1
      %s152 = scalar_select %p149, %s150, %s151
      %p155 = pneg %p149
      %p156 = scmp.eq.s32.totalorder %s34, 3
      %p157 = por %p155, %p156
      %p158 = scmp.ne.s32.totalorder %s150, %s153
      %p159 = scmp.eq.s32.totalorder %s34, 0
      %p160 = por %p158, %p159
      %p161 = scmp.ne.s32.totalorder %s150, %s153
      %p162 = scmp.eq.s32.totalorder %s39, 3
      %p163 = por %p161, %p162
      %p164 = scmp.ne.s32.totalorder %s153, %s154
      %p165 = scmp.eq.s32.totalorder %s39, 0
      %p166 = por %p164, %p165
      %p167 = scmp.ne.s32.totalorder %s153, %s154
      %p168 = scmp.eq.s32.totalorder %s40, 3
      %p169 = por %p167, %p168
      %p171 = scmp.ne.s32.totalorder %s154, %s170
      %p172 = scmp.eq.s32.totalorder %s40, 0
      %p173 = por %p171, %p172
      %s174 = ssub.s32 %s42, %s49
      %p175 = scmp.eq.s32.totalorder %s174, 0
      %s177 = sadd.s32 %s176, 1
      %s178 = scalar_select %p175, %s176, %s177
      %p181 = pneg %p175
      %p182 = scmp.eq.s32.totalorder %s34, 3
      %p183 = por %p181, %p182
      %p184 = scmp.ne.s32.totalorder %s176, %s179
      %p185 = scmp.eq.s32.totalorder %s34, 0
      %p186 = por %p184, %p185
      %p187 = scmp.ne.s32.totalorder %s176, %s179
      %p188 = scmp.eq.s32.totalorder %s39, 3
      %p189 = por %p187, %p188
      %p190 = scmp.ne.s32.totalorder %s179, %s180
      %p191 = scmp.eq.s32.totalorder %s39, 0
      %p192 = por %p190, %p191
      %p193 = scmp.ne.s32.totalorder %s179, %s180
      %p194 = scmp.eq.s32.totalorder %s40, 3
      %p195 = por %p193, %p194
      %p197 = scmp.ne.s32.totalorder %s180, %s196
      %p198 = scmp.eq.s32.totalorder %s40, 0
      %p199 = por %p197, %p198
      %s200 = ssub.s32 %s42, %s49
      %p201 = scmp.eq.s32.totalorder %s200, 0
      %s203 = sadd.s32 %s202, 1
      %s204 = scalar_select %p201, %s202, %s203
      %p207 = pneg %p201
      %p208 = scmp.eq.s32.totalorder %s34, 3
      %p209 = por %p207, %p208
      %p210 = scmp.ne.s32.totalorder %s202, %s205
      %p211 = scmp.eq.s32.totalorder %s34, 0
      %p212 = por %p210, %p211
      %p213 = scmp.ne.s32.totalorder %s202, %s205
      %p214 = scmp.eq.s32.totalorder %s39, 3
      %p215 = por %p213, %p214
      %p216 = scmp.ne.s32.totalorder %s205, %s206
      %p217 = scmp.eq.s32.totalorder %s39, 0
      %p218 = por %p216, %p217
      %p219 = scmp.ne.s32.totalorder %s205, %s206
      %p220 = scmp.eq.s32.totalorder %s40, 3
      %p221 = por %p219, %p220
      %p223 = scmp.ne.s32.totalorder %s206, %s222
      %p224 = scmp.eq.s32.totalorder %s40, 0
      %p225 = por %p223, %p224
      %s226 = ssub.s32 %s42, %s49
      %p227 = scmp.eq.s32.totalorder %s226, 0
      %s229 = sadd.s32 %s228, 1
      %s230 = scalar_select %p227, %s228, %s229
      %p233 = pneg %p227
      %p234 = scmp.eq.s32.totalorder %s34, 3
      %p235 = por %p233, %p234
      %p236 = scmp.ne.s32.totalorder %s228, %s231
      %p237 = scmp.eq.s32.totalorder %s34, 0
      %p238 = por %p236, %p237
      %p239 = scmp.ne.s32.totalorder %s228, %s231
      %p240 = scmp.eq.s32.totalorder %s39, 3
      %p241 = por %p239, %p240
      %p242 = scmp.ne.s32.totalorder %s231, %s232
      %p243 = scmp.eq.s32.totalorder %s39, 0
      %p244 = por %p242, %p243
      %p245 = scmp.ne.s32.totalorder %s231, %s232
      %p246 = scmp.eq.s32.totalorder %s40, 3
      %p247 = por %p245, %p246
      %p249 = scmp.ne.s32.totalorder %s232, %s248
      %p250 = scmp.eq.s32.totalorder %s40, 0
      %p251 = por %p249, %p250
      %s252 = ssub.s32 %s42, %s49
      %p253 = scmp.eq.s32.totalorder %s252, 0
      %s255 = sadd.s32 %s254, 1
      %s256 = scalar_select %p253, %s254, %s255
      %p259 = pneg %p253
      %p260 = scmp.eq.s32.totalorder %s34, 3
      %p261 = por %p259, %p260
      %p262 = scmp.ne.s32.totalorder %s254, %s257
      %p263 = scmp.eq.s32.totalorder %s34, 0
      %p264 = por %p262, %p263
      %p265 = scmp.ne.s32.totalorder %s254, %s257
      %p266 = scmp.eq.s32.totalorder %s39, 3
      %p267 = por %p265, %p266
      %p268 = scmp.ne.s32.totalorder %s257, %s258
      %p269 = scmp.eq.s32.totalorder %s39, 0
      %p270 = por %p268, %p269
      %p271 = scmp.ne.s32.totalorder %s257, %s258
      %p272 = scmp.eq.s32.totalorder %s40, 3
      %p273 = por %p271, %p272
      %p275 = scmp.ne.s32.totalorder %s258, %s274
      %p276 = scmp.eq.s32.totalorder %s40, 0
      %p277 = por %p275, %p276
      %s278 = ssub.s32 %s42, %s49
      %p279 = scmp.eq.s32.totalorder %s278, 0
      %s281 = sadd.s32 %s280, 1
      %s282 = scalar_select %p279, %s280, %s281
      %p285 = pneg %p279
      %p286 = scmp.eq.s32.totalorder %s34, 3
      %p287 = por %p285, %p286
      %p288 = scmp.ne.s32.totalorder %s280, %s283
      %p289 = scmp.eq.s32.totalorder %s34, 0
      %p290 = por %p288, %p289
      %p291 = scmp.ne.s32.totalorder %s280, %s283
      %p292 = scmp.eq.s32.totalorder %s39, 3
      %p293 = por %p291, %p292
      %p294 = scmp.ne.s32.totalorder %s283, %s284
      %p295 = scmp.eq.s32.totalorder %s39, 0
      %p296 = por %p294, %p295
      %p297 = scmp.ne.s32.totalorder %s283, %s284
      %p298 = scmp.eq.s32.totalorder %s40, 3
      %p299 = por %p297, %p298
      %p301 = scmp.ne.s32.totalorder %s284, %s300
      %p302 = scmp.eq.s32.totalorder %s40, 0
      %p303 = por %p301, %p302
      %s304 = ssub.s32 %s42, %s49
      %p305 = scmp.eq.s32.totalorder %s304, 0
      %s307 = sadd.s32 %s306, 1
      %s308 = scalar_select %p305, %s306, %s307
      %p311 = pneg %p305
      %p312 = scmp.eq.s32.totalorder %s34, 3
      %p313 = por %p311, %p312
      %p314 = scmp.ne.s32.totalorder %s306, %s309
      %p315 = scmp.eq.s32.totalorder %s34, 0
      %p316 = por %p314, %p315
      %p317 = scmp.ne.s32.totalorder %s306, %s309
      %p318 = scmp.eq.s32.totalorder %s39, 3
      %p319 = por %p317, %p318
      %p320 = scmp.ne.s32.totalorder %s309, %s310
      %p321 = scmp.eq.s32.totalorder %s39, 0
      %p322 = por %p320, %p321
      %p323 = scmp.ne.s32.totalorder %s309, %s310
      %p324 = scmp.eq.s32.totalorder %s40, 3
      %p325 = por %p323, %p324
      %p327 = scmp.ne.s32.totalorder %s310, %s326
      %p328 = scmp.eq.s32.totalorder %s40, 0
      %p329 = por %p327, %p328
      %s330 = ssub.s32 %s42, %s49
      %p331 = scmp.eq.s32.totalorder %s330, 0
      %s333 = sadd.s32 %s332, 1
      %s334 = scalar_select %p331, %s332, %s333
      %p337 = pneg %p331
      %p338 = scmp.eq.s32.totalorder %s34, 3
      %p339 = por %p337, %p338
      %p340 = scmp.ne.s32.totalorder %s332, %s335
      %p341 = scmp.eq.s32.totalorder %s34, 0
      %p342 = por %p340, %p341
      %p343 = scmp.ne.s32.totalorder %s332, %s335
      %p344 = scmp.eq.s32.totalorder %s39, 3
      %p345 = por %p343, %p344
      %p346 = scmp.ne.s32.totalorder %s335, %s336
      %p347 = scmp.eq.s32.totalorder %s39, 0
      %p348 = por %p346, %p347
      %p349 = scmp.ne.s32.totalorder %s335, %s336
      %p350 = scmp.eq.s32.totalorder %s40, 3
      %p351 = por %p349, %p350
      %p353 = scmp.ne.s32.totalorder %s336, %s352
      %p354 = scmp.eq.s32.totalorder %s40, 0
      %p355 = por %p353, %p354
      %s356 = ssub.s32 %s42, %s49
      %p357 = scmp.eq.s32.totalorder %s356, 0
      %s359 = sadd.s32 %s358, 1
      %s360 = scalar_select %p357, %s358, %s359
      %p363 = pneg %p357
      %p364 = scmp.eq.s32.totalorder %s34, 3
      %p365 = por %p363, %p364
      %p366 = scmp.ne.s32.totalorder %s358, %s361
      %p367 = scmp.eq.s32.totalorder %s34, 0
      %p368 = por %p366, %p367
      %p369 = scmp.ne.s32.totalorder %s358, %s361
      %p370 = scmp.eq.s32.totalorder %s39, 3
      %p371 = por %p369, %p370
      %p372 = scmp.ne.s32.totalorder %s361, %s362
      %p373 = scmp.eq.s32.totalorder %s39, 0
      %p374 = por %p372, %p373
      %p375 = scmp.ne.s32.totalorder %s361, %s362
      %p376 = scmp.eq.s32.totalorder %s40, 3
      %p377 = por %p375, %p376
      %p379 = scmp.ne.s32.totalorder %s362, %s378
      %p380 = scmp.eq.s32.totalorder %s40, 0
      %p381 = por %p379, %p380
      %s382 = ssub.s32 %s42, %s49
      %p383 = scmp.eq.s32.totalorder %s382, 0
      %s385 = sadd.s32 %s384, 1
      %s386 = scalar_select %p383, %s384, %s385
      %p389 = pneg %p383
      %p390 = scmp.eq.s32.totalorder %s34, 3
      %p391 = por %p389, %p390
      %p392 = scmp.ne.s32.totalorder %s384, %s387
      %p393 = scmp.eq.s32.totalorder %s34, 0
      %p394 = por %p392, %p393
      %p395 = scmp.ne.s32.totalorder %s384, %s387
      %p396 = scmp.eq.s32.totalorder %s39, 3
      %p397 = por %p395, %p396
      %p398 = scmp.ne.s32.totalorder %s387, %s388
      %p399 = scmp.eq.s32.totalorder %s39, 0
      %p400 = por %p398, %p399
      %p401 = scmp.ne.s32.totalorder %s387, %s388
      %p402 = scmp.eq.s32.totalorder %s40, 3
      %p403 = por %p401, %p402
      %p405 = scmp.ne.s32.totalorder %s388, %s404
      %p406 = scmp.eq.s32.totalorder %s40, 0
      %p407 = por %p405, %p406
      %s408 = ssub.s32 %s42, %s49
      %p409 = scmp.eq.s32.totalorder %s408, 0
      %s411 = sadd.s32 %s410, 1
      %s412 = scalar_select %p409, %s410, %s411
      %p415 = pneg %p409
      %p416 = scmp.eq.s32.totalorder %s34, 3
      %p417 = por %p415, %p416
      %p418 = scmp.ne.s32.totalorder %s410, %s413
      %p419 = scmp.eq.s32.totalorder %s34, 0
      %p420 = por %p418, %p419
      %p421 = scmp.ne.s32.totalorder %s410, %s413
      %p422 = scmp.eq.s32.totalorder %s39, 3
      %p423 = por %p421, %p422
      %p424 = scmp.ne.s32.totalorder %s413, %s414
      %p425 = scmp.eq.s32.totalorder %s39, 0
      %p426 = por %p424, %p425
      %p427 = scmp.ne.s32.totalorder %s413, %s414
      %p428 = scmp.eq.s32.totalorder %s40, 3
      %p429 = por %p427, %p428
      %p431 = scmp.ne.s32.totalorder %s414, %s430
      %p432 = scmp.eq.s32.totalorder %s40, 0
      %p433 = por %p431, %p432
      %s434 = ssub.s32 %s42, %s49
      %p435 = scmp.eq.s32.totalorder %s434, 0
      %s437 = sadd.s32 %s436, 1
      %s438 = scalar_select %p435, %s436, %s437
      %p441 = pneg %p435
      %p442 = scmp.eq.s32.totalorder %s34, 3
      %p443 = por %p441, %p442
      %p444 = scmp.ne.s32.totalorder %s436, %s439
      %p445 = scmp.eq.s32.totalorder %s34, 0
      %p446 = por %p444, %p445
      %p447 = scmp.ne.s32.totalorder %s436, %s439
      %p448 = scmp.eq.s32.totalorder %s39, 3
      %p449 = por %p447, %p448
      %p450 = scmp.ne.s32.totalorder %s439, %s440
      %p451 = scmp.eq.s32.totalorder %s39, 0
      %p452 = por %p450, %p451
      %p453 = scmp.ne.s32.totalorder %s439, %s440
      %p454 = scmp.eq.s32.totalorder %s40, 3
      %p455 = por %p453, %p454
      %p457 = scmp.ne.s32.totalorder %s440, %s456
      %p458 = scmp.eq.s32.totalorder %s40, 0
      %p459 = por %p457, %p458
      %s460 = ssub.s32 %s42, %s49
      %p461 = scmp.eq.s32.totalorder %s460, 0
      %s463 = sadd.s32 %s462, 1
      %s464 = scalar_select %p461, %s462, %s463
      %p467 = pneg %p461
      %p468 = scmp.eq.s32.totalorder %s34, 3
      %p469 = por %p467, %p468
      %p470 = scmp.ne.s32.totalorder %s462, %s465
      %p471 = scmp.eq.s32.totalorder %s34, 0
      %p472 = por %p470, %p471
      %p473 = scmp.ne.s32.totalorder %s462, %s465
      %p474 = scmp.eq.s32.totalorder %s39, 3
      %p475 = por %p473, %p474
      %p476 = scmp.ne.s32.totalorder %s465, %s466
      %p477 = scmp.eq.s32.totalorder %s39, 0
      %p478 = por %p476, %p477
      %p479 = scmp.ne.s32.totalorder %s465, %s466
      %p480 = scmp.eq.s32.totalorder %s40, 3
      %p481 = por %p479, %p480
      %p483 = scmp.ne.s32.totalorder %s466, %s482
      %p484 = scmp.eq.s32.totalorder %s40, 0
      %p485 = por %p483, %p484
      %s486 = ssub.s32 %s42, %s49
      %p487 = scmp.eq.s32.totalorder %s486, 0
      %s489 = sadd.s32 %s488, 1
      %s490 = scalar_select %p487, %s488, %s489
      %p493 = pneg %p487
      %p494 = scmp.eq.s32.totalorder %s34, 3
      %p495 = por %p493, %p494
      %p496 = scmp.ne.s32.totalorder %s488, %s491
      %p497 = scmp.eq.s32.totalorder %s34, 0
      %p498 = por %p496, %p497
      %p499 = scmp.ne.s32.totalorder %s488, %s491
      %p500 = scmp.eq.s32.totalorder %s39, 3
      %p501 = por %p499, %p500
      %p502 = scmp.ne.s32.totalorder %s491, %s492
      %p503 = scmp.eq.s32.totalorder %s39, 0
      %p504 = por %p502, %p503
      %p505 = scmp.ne.s32.totalorder %s491, %s492
      %p506 = scmp.eq.s32.totalorder %s40, 3
      %p507 = por %p505, %p506
      %p509 = scmp.ne.s32.totalorder %s492, %s508
      %p510 = scmp.eq.s32.totalorder %s40, 0
      %p511 = por %p509, %p510
      %s512 = ssub.s32 %s42, %s49
      %p513 = scmp.eq.s32.totalorder %s512, 0
      %s515 = sadd.s32 %s514, 1
      %s516 = scalar_select %p513, %s514, %s515
      %p519 = pneg %p513
      %p520 = scmp.eq.s32.totalorder %s34, 3
      %p521 = por %p519, %p520
      %p522 = scmp.ne.s32.totalorder %s514, %s517
      %p523 = scmp.eq.s32.totalorder %s34, 0
      %p524 = por %p522, %p523
      %p525 = scmp.ne.s32.totalorder %s514, %s517
      %p526 = scmp.eq.s32.totalorder %s39, 3
      %p527 = por %p525, %p526
      %p528 = scmp.ne.s32.totalorder %s517, %s518
      %p529 = scmp.eq.s32.totalorder %s39, 0
      %p530 = por %p528, %p529
      %p531 = scmp.ne.s32.totalorder %s517, %s518
      %p532 = scmp.eq.s32.totalorder %s40, 3
      %p533 = por %p531, %p532
      %p535 = scmp.ne.s32.totalorder %s518, %s534
      %p536 = scmp.eq.s32.totalorder %s40, 0
      %p537 = por %p535, %p536
      %s539 = sadd.s32 %s538, 1
      %p542 = scmp.eq.s32.totalorder %s34, 3
      %p543 = scmp.ne.s32.totalorder %s538, %s540
      %p544 = scmp.eq.s32.totalorder %s34, 0
      %p545 = por %p543, %p544
      %p546 = scmp.ne.s32.totalorder %s538, %s540
      %p547 = scmp.eq.s32.totalorder %s39, 3
      %p548 = por %p546, %p547
      %p549 = scmp.ne.s32.totalorder %s540, %s541
      %p550 = scmp.eq.s32.totalorder %s39, 0
      %p551 = por %p549, %p550
      %p552 = scmp.ne.s32.totalorder %s540, %s541
      %p553 = scmp.eq.s32.totalorder %s40, 3
      %p554 = por %p552, %p553
      %p556 = scmp.ne.s32.totalorder %s541, %s555
      %p557 = scmp.eq.s32.totalorder %s40, 0
      %p558 = por %p556, %p557
      %s560 = sadd.s32 %s559, 1
      %p563 = scmp.eq.s32.totalorder %s34, 3
      %p564 = scmp.ne.s32.totalorder %s559, %s561
      %p565 = scmp.eq.s32.totalorder %s34, 0
      %p566 = por %p564, %p565
      %p567 = scmp.ne.s32.totalorder %s559, %s561
      %p568 = scmp.eq.s32.totalorder %s39, 3
      %p569 = por %p567, %p568
      %p570 = scmp.ne.s32.totalorder %s561, %s562
      %p571 = scmp.eq.s32.totalorder %s39, 0
      %p572 = por %p570, %p571
      %p573 = scmp.ne.s32.totalorder %s561, %s562
      %p574 = scmp.eq.s32.totalorder %s40, 3
      %p575 = por %p573, %p574
      %p577 = scmp.ne.s32.totalorder %s562, %s576
      %p578 = scmp.eq.s32.totalorder %s40, 0
      %p579 = por %p577, %p578
      %s580 = ssub.s32 %s41, %s53
      %p581 = scmp.eq.s32.totalorder %s580, 0
      %s583 = sadd.s32 %s582, 1
      %s584 = scalar_select %p581, %s582, %s583
      %p587 = pneg %p581
      %p588 = scmp.eq.s32.totalorder %s34, 3
      %p589 = por %p587, %p588
      %p590 = scmp.ne.s32.totalorder %s582, %s585
      %p591 = scmp.eq.s32.totalorder %s34, 0
      %p592 = por %p590, %p591
      %p593 = scmp.ne.s32.totalorder %s582, %s585
      %p594 = scmp.eq.s32.totalorder %s39, 3
      %p595 = por %p593, %p594
      %p596 = scmp.ne.s32.totalorder %s585, %s586
      %p597 = scmp.eq.s32.totalorder %s39, 0
      %p598 = por %p596, %p597
      %p599 = scmp.ne.s32.totalorder %s585, %s586
      %p600 = scmp.eq.s32.totalorder %s40, 3
      %p601 = por %p599, %p600
      %p603 = scmp.ne.s32.totalorder %s586, %s602
      %p604 = scmp.eq.s32.totalorder %s40, 0
      %p605 = por %p603, %p604
      %p606 = scmp.le.s32.totalorder 1, %s34
      %p607 = scmp.lt.s32.totalorder %s34, 5
      %p608 = pnand %p606, %p607
      %p609 = pneg %p608
      // Predicated region
      $region9: #{tpu_custom_call.1} parent=5 // pred_check
        _
      $region10: #{tpu_custom_call.1} parent=5 // pred_check_branch
        %611 = sbr.rel (%p608) target = $region12
      $region11: #{tpu_custom_call.1} parent=5 // pred_region
        %s612 = ssub.s32 %s34, 1
        // Predicated region
        $region13: #{tpu_custom_call.1} parent=11 // pred_check
          %p613 = pneg %p93
        $region14: #{tpu_custom_call.1} parent=11 // pred_check_branch
          %615 = sbr.rel (%p613) target = $region16
        $region15: #{tpu_custom_call.1} parent=11 // pred_region
          %s617 = ssub.s32 256, 256
          %618 = vsyncadd [#allocation7], %s617
          %s619 = sshll.u32 [#allocation6], 4
          %s620 = int_to_ptr.vmem [resolvable:$true] %s619
          %625 = dma.hbm_to_vmem [thread:$0]  %s1, 256, %s620, [#allocation7], 128, 128, 8
        $region16: #{tpu_custom_call.1} parent=11 // pred_fallthru
          _
        // Predicated region
        $region17: #{tpu_custom_call.1} parent=11 // pred_check
          %p626 = pneg %p114
        $region18: #{tpu_custom_call.1} parent=11 // pred_check_branch
          %628 = sbr.rel (%p626) target = $region20
        $region19: #{tpu_custom_call.1} parent=11 // pred_region
          _
        $region20: #{tpu_custom_call.1} parent=11 // pred_fallthru
          _
        // Predicated region
        $region21: #{tpu_custom_call.1} parent=11 // pred_check
          %p629 = pneg %p551
        $region22: #{tpu_custom_call.1} parent=11 // pred_check_branch
          %631 = sbr.rel (%p629) target = $region24
        $region23: #{tpu_custom_call.1} parent=11 // pred_region
          _
        $region24: #{tpu_custom_call.1} parent=11 // pred_fallthru
          _
        // Predicated region
        $region25: #{tpu_custom_call.1} parent=11 // pred_check
          %p632 = pneg %p572
        $region26: #{tpu_custom_call.1} parent=11 // pred_check_branch
          %634 = sbr.rel (%p632) target = $region28
        $region27: #{tpu_custom_call.1} parent=11 // pred_region
          _
        $region28: #{tpu_custom_call.1} parent=11 // pred_fallthru
          _
      $region12: #{tpu_custom_call.1} parent=5 // pred_fallthru
        _
      %p635 = scmp.lt.s32.totalorder %s34, 4
      // Predicated region
      $region29: #{tpu_custom_call.1} parent=5 // pred_check
        %p636 = pneg %p635
      $region30: #{tpu_custom_call.1} parent=5 // pred_check_branch
        %638 = sbr.rel (%p636) target = $region32
      $region31: #{tpu_custom_call.1} parent=5 // pred_region
        // Predicated region
        $region33: #{tpu_custom_call.1} parent=31 // pred_check
          %p639 = pneg %p66
        $region34: #{tpu_custom_call.1} parent=31 // pred_check_branch
          %641 = sbr.rel (%p639) target = $region36
        $region35: #{tpu_custom_call.1} parent=31 // pred_region
          %s642 = sand.u32 %s34, 1
          %s643 = scalar_lea.sflag [#allocation4], %s642
          %s644 = sand.u32 %s56, 1
          %s645 = smul.addr %s644, 8
          %s646 = scalar_lea.vmem [#allocation3], %s645
          %s648 = ssub.s32 128, 128
          %649 = vsyncadd %s643, %s648
          %s650 = smul.addr %s41, 128
          %s651 = scalar_lea.hbm %s0, %s650
          %s653 = sshll.u32 %s646, 4
          %s654 = int_to_ptr.vmem [resolvable:$true] %s653
          %656 = dma.hbm_to_vmem [thread:$0]  %s651, 128, %s654, %s643
        $region36: #{tpu_custom_call.1} parent=31 // pred_fallthru
          _
        // Predicated region
        $region37: #{tpu_custom_call.1} parent=31 // pred_check
          %p657 = pneg %p134
        $region38: #{tpu_custom_call.1} parent=31 // pred_check_branch
          %659 = sbr.rel (%p657) target = $region40
        $region39: #{tpu_custom_call.1} parent=31 // pred_region
          %p660 = scmp.lt.s32.totalorder %s42, 1
          %s661 = scalar_select %p660, %s42, 1
          %s662 = smul.addr %s661, 4
          %s663 = smul.addr %s662, 8
          %s664 = scalar_lea.vmem %s3, %s663
        $region40: #{tpu_custom_call.1} parent=31 // pred_fallthru
          _
        // Predicated region
        $region41: #{tpu_custom_call.1} parent=31 // pred_check
          %p665 = pneg %p160
        $region42: #{tpu_custom_call.1} parent=31 // pred_check_branch
          %667 = sbr.rel (%p665) target = $region44
        $region43: #{tpu_custom_call.1} parent=31 // pred_region
          %p668 = scmp.lt.s32.totalorder %s42, 1
          %s669 = scalar_select %p668, %s42, 1
          %s670 = scalar_lea.vmem %s4, %s669
        $region44: #{tpu_custom_call.1} parent=31 // pred_fallthru
          _
        // Predicated region
        $region45: #{tpu_custom_call.1} parent=31 // pred_check
          %p671 = pneg %p186
        $region46: #{tpu_custom_call.1} parent=31 // pred_check_branch
          %673 = sbr.rel (%p671) target = $region48
        $region47: #{tpu_custom_call.1} parent=31 // pred_region
          %p674 = scmp.lt.s32.totalorder %s42, 1
          %s675 = scalar_select %p674, %s42, 1
          %s676 = smul.addr %s675, 4
          %s677 = smul.addr %s676, 8
          %s678 = scalar_lea.vmem %s5, %s677
        $region48: #{tpu_custom_call.1} parent=31 // pred_fallthru
          _
        // Predicated region
        $region49: #{tpu_custom_call.1} parent=31 // pred_check
          %p679 = pneg %p212
        $region50: #{tpu_custom_call.1} parent=31 // pred_check_branch
          %681 = sbr.rel (%p679) target = $region52
        $region51: #{tpu_custom_call.1} parent=31 // pred_region
          %p682 = scmp.lt.s32.totalorder %s42, 1
          %s683 = scalar_select %p682, %s42, 1
          %s684 = scalar_lea.vmem %s6, %s683
        $region52: #{tpu_custom_call.1} parent=31 // pred_fallthru
          _
        // Predicated region
        $region53: #{tpu_custom_call.1} parent=31 // pred_check
          %p685 = pneg %p238
        $region54: #{tpu_custom_call.1} parent=31 // pred_check_branch
          %687 = sbr.rel (%p685) target = $region56
        $region55: #{tpu_custom_call.1} parent=31 // pred_region
          %p688 = scmp.lt.s32.totalorder %s42, 1
          %s689 = scalar_select %p688, %s42, 1
          %s690 = smul.addr %s689, 4
          %s691 = smul.addr %s690, 8
          %s692 = scalar_lea.vmem %s7, %s691
        $region56: #{tpu_custom_call.1} parent=31 // pred_fallthru
          _
        // Predicated region
        $region57: #{tpu_custom_call.1} parent=31 // pred_check
          %p693 = pneg %p264
        $region58: #{tpu_custom_call.1} parent=31 // pred_check_branch
          %695 = sbr.rel (%p693) target = $region60
        $region59: #{tpu_custom_call.1} parent=31 // pred_region
          %s696 = sand.u32 %s34, 1
          %s697 = scalar_lea.sflag [#allocation4], %s696
          %s698 = sand.u32 %s254, 1
          %s699 = scalar_lea.vmem [#allocation8], %s698
          %s701 = ssub.s32 16, 16
          %702 = vsyncadd %s697, %s701
          %s703 = smul.addr %s42, 16
          %s704 = scalar_lea.hbm %s8, %s703
          %s706 = sshll.u32 %s699, 4
          %s707 = int_to_ptr.vmem [resolvable:$true] %s706
          %709 = dma.hbm_to_vmem [thread:$0]  %s704, 16, %s707, %s697
        $region60: #{tpu_custom_call.1} parent=31 // pred_fallthru
          _
        // Predicated region
        $region61: #{tpu_custom_call.1} parent=31 // pred_check
          %p710 = pneg %p290
        $region62: #{tpu_custom_call.1} parent=31 // pred_check_branch
          %712 = sbr.rel (%p710) target = $region64
        $region63: #{tpu_custom_call.1} parent=31 // pred_region
          %p713 = scmp.lt.s32.totalorder %s42, 1
          %s714 = scalar_select %p713, %s42, 1
          %s715 = smul.addr %s714, 4
          %s716 = smul.addr %s715, 8
          %s717 = scalar_lea.vmem %s9, %s716
        $region64: #{tpu_custom_call.1} parent=31 // pred_fallthru
          _
        // Predicated region
        $region65: #{tpu_custom_call.1} parent=31 // pred_check
          %p718 = pneg %p316
        $region66: #{tpu_custom_call.1} parent=31 // pred_check_branch
          %720 = sbr.rel (%p718) target = $region68
        $region67: #{tpu_custom_call.1} parent=31 // pred_region
          %s721 = sand.u32 %s34, 1
          %s722 = scalar_lea.sflag [#allocation4], %s721
          %s723 = sand.u32 %s306, 1
          %s724 = scalar_lea.vmem [#allocation9], %s723
          %s726 = ssub.s32 16, 16
          %727 = vsyncadd %s722, %s726
          %s728 = smul.addr %s42, 16
          %s729 = scalar_lea.hbm %s10, %s728
          %s731 = sshll.u32 %s724, 4
          %s732 = int_to_ptr.vmem [resolvable:$true] %s731
          %734 = dma.hbm_to_vmem [thread:$0]  %s729, 16, %s732, %s722
        $region68: #{tpu_custom_call.1} parent=31 // pred_fallthru
          _
        // Predicated region
        $region69: #{tpu_custom_call.1} parent=31 // pred_check
          %p735 = pneg %p342
        $region70: #{tpu_custom_call.1} parent=31 // pred_check_branch
          %737 = sbr.rel (%p735) target = $region72
        $region71: #{tpu_custom_call.1} parent=31 // pred_region
          %p738 = scmp.lt.s32.totalorder %s42, 1
          %s739 = scalar_select %p738, %s42, 1
          %s740 = smul.addr %s739, 4
          %s741 = smul.addr %s740, 8
          %s742 = scalar_lea.vmem %s11, %s741
        $region72: #{tpu_custom_call.1} parent=31 // pred_fallthru
          _
        // Predicated region
        $region73: #{tpu_custom_call.1} parent=31 // pred_check
          %p743 = pneg %p368
        $region74: #{tpu_custom_call.1} parent=31 // pred_check_branch
          %745 = sbr.rel (%p743) target = $region76
        $region75: #{tpu_custom_call.1} parent=31 // pred_region
          %p746 = scmp.lt.s32.totalorder %s42, 1
          %s747 = scalar_select %p746, %s42, 1
          %s748 = scalar_lea.vmem %s12, %s747
        $region76: #{tpu_custom_call.1} parent=31 // pred_fallthru
          _
        // Predicated region
        $region77: #{tpu_custom_call.1} parent=31 // pred_check
          %p749 = pneg %p394
        $region78: #{tpu_custom_call.1} parent=31 // pred_check_branch
          %751 = sbr.rel (%p749) target = $region80
        $region79: #{tpu_custom_call.1} parent=31 // pred_region
          %p752 = scmp.lt.s32.totalorder %s42, 1
          %s753 = scalar_select %p752, %s42, 1
          %s754 = smul.addr %s753, 16
          %s755 = smul.addr %s754, 8
          %s756 = scalar_lea.vmem %s13, %s755
        $region80: #{tpu_custom_call.1} parent=31 // pred_fallthru
          _
        // Predicated region
        $region81: #{tpu_custom_call.1} parent=31 // pred_check
          %p757 = pneg %p420
        $region82: #{tpu_custom_call.1} parent=31 // pred_check_branch
          %759 = sbr.rel (%p757) target = $region84
        $region83: #{tpu_custom_call.1} parent=31 // pred_region
          %p760 = scmp.lt.s32.totalorder %s42, 1
          %s761 = scalar_select %p760, %s42, 1
          %s762 = scalar_lea.vmem %s14, %s761
        $region84: #{tpu_custom_call.1} parent=31 // pred_fallthru
          _
        // Predicated region
        $region85: #{tpu_custom_call.1} parent=31 // pred_check
          %p763 = pneg %p446
        $region86: #{tpu_custom_call.1} parent=31 // pred_check_branch
          %765 = sbr.rel (%p763) target = $region88
        $region87: #{tpu_custom_call.1} parent=31 // pred_region
          %p766 = scmp.lt.s32.totalorder %s42, 1
          %s767 = scalar_select %p766, %s42, 1
          %s768 = scalar_lea.vmem %s15, %s767
        $region88: #{tpu_custom_call.1} parent=31 // pred_fallthru
          _
        // Predicated region
        $region89: #{tpu_custom_call.1} parent=31 // pred_check
          %p769 = pneg %p472
        $region90: #{tpu_custom_call.1} parent=31 // pred_check_branch
          %771 = sbr.rel (%p769) target = $region92
        $region91: #{tpu_custom_call.1} parent=31 // pred_region
          %p772 = scmp.lt.s32.totalorder %s42, 1
          %s773 = scalar_select %p772, %s42, 1
          %s774 = scalar_lea.vmem %s16, %s773
        $region92: #{tpu_custom_call.1} parent=31 // pred_fallthru
          _
        // Predicated region
        $region93: #{tpu_custom_call.1} parent=31 // pred_check
          %p775 = pneg %p498
        $region94: #{tpu_custom_call.1} parent=31 // pred_check_branch
          %777 = sbr.rel (%p775) target = $region96
        $region95: #{tpu_custom_call.1} parent=31 // pred_region
          %p778 = scmp.lt.s32.totalorder %s42, 1
          %s779 = scalar_select %p778, %s42, 1
          %s780 = scalar_lea.vmem %s17, %s779
        $region96: #{tpu_custom_call.1} parent=31 // pred_fallthru
          _
        // Predicated region
        $region97: #{tpu_custom_call.1} parent=31 // pred_check
          %p781 = pneg %p524
        $region98: #{tpu_custom_call.1} parent=31 // pred_check_branch
          %783 = sbr.rel (%p781) target = $region100
        $region99: #{tpu_custom_call.1} parent=31 // pred_region
          %p784 = scmp.lt.s32.totalorder %s42, 1
          %s785 = scalar_select %p784, %s42, 1
          %s786 = scalar_lea.vmem %s18, %s785
        $region100: #{tpu_custom_call.1} parent=31 // pred_fallthru
          _
      $region32: #{tpu_custom_call.1} parent=5 // pred_fallthru
        _
      %p787 = scmp.le.s32.totalorder 1, %s34
      %p788 = scmp.lt.s32.totalorder %s34, 5
      %p789 = pnand %p787, %p788
      %p790 = pneg %p789
      // Predicated region
      $region101: #{tpu_custom_call.1} parent=5 // pred_check
        _
      $region102: #{tpu_custom_call.1} parent=5 // pred_check_branch
        %792 = sbr.rel (%p789) target = $region104
      $region103: #{tpu_custom_call.1} parent=5 // pred_region
        %s793 = ssub.s32 %s34, 1
        %s794 = sand.u32 %s39, 1
        %s795 = scalar_lea.sflag [#allocation4], %s794
        %s796 = sand.u32 %s59, 1
        %s797 = smul.addr %s796, 8
        %s798 = scalar_lea.vmem [#allocation3], %s797
        // Predicated region
        $region105: #{tpu_custom_call.1} parent=103 // pred_check
          %p799 = pneg %p72
        $region106: #{tpu_custom_call.1} parent=103 // pred_check_branch
          %801 = sbr.rel (%p799) target = $region108
        $region107: #{tpu_custom_call.1} parent=103 // pred_region
          %802 = dma.done %s795, 128
        $region108: #{tpu_custom_call.1} parent=103 // pred_fallthru
          _
        // Predicated region
        $region109: #{tpu_custom_call.1} parent=103 // pred_check
          %p803 = pneg %p93
        $region110: #{tpu_custom_call.1} parent=103 // pred_check_branch
          %805 = sbr.rel (%p803) target = $region112
        $region111: #{tpu_custom_call.1} parent=103 // pred_region
          %806 = dma.done [#allocation7], 256
        $region112: #{tpu_custom_call.1} parent=103 // pred_fallthru
          _
        %s807 = sand.u32 %s39, 1
        %s808 = scalar_lea.sflag [#allocation4], %s807
        %s809 = sand.u32 %s257, 1
        %s810 = scalar_lea.vmem [#allocation8], %s809
        // Predicated region
        $region113: #{tpu_custom_call.1} parent=103 // pred_check
          %p811 = pneg %p270
        $region114: #{tpu_custom_call.1} parent=103 // pred_check_branch
          %813 = sbr.rel (%p811) target = $region116
        $region115: #{tpu_custom_call.1} parent=103 // pred_region
          %814 = dma.done %s808, 16
        $region116: #{tpu_custom_call.1} parent=103 // pred_fallthru
          _
        %s815 = sand.u32 %s39, 1
        %s816 = scalar_lea.sflag [#allocation4], %s815
        %s817 = sand.u32 %s309, 1
        %s818 = scalar_lea.vmem [#allocation9], %s817
        // Predicated region
        $region117: #{tpu_custom_call.1} parent=103 // pred_check
          %p819 = pneg %p322
        $region118: #{tpu_custom_call.1} parent=103 // pred_check_branch
          %821 = sbr.rel (%p819) target = $region120
        $region119: #{tpu_custom_call.1} parent=103 // pred_region
          %822 = dma.done %s816, 16
        $region120: #{tpu_custom_call.1} parent=103 // pred_fallthru
          _
        %s823 = sand.u32 %s39, 1
        %s824 = scalar_lea.sflag [#allocation4], %s823
        %s825 = sand.u32 %s59, 1
        %s826 = smul.addr %s825, 8
        %s827 = scalar_lea.vmem [#allocation3], %s826
        %p828 = pneg %p72
        %p829 = pneg %p69
        %p830 = pneg %p93
        %p831 = pneg %p90
        %p832 = pneg %p114
        %p833 = pneg %p111
        %p834 = scmp.lt.s32.totalorder %s44, 1
        %s835 = scalar_select %p834, %s44, 1
        %s836 = smul.addr %s835, 4
        %s837 = smul.addr %s836, 8
        %s838 = scalar_lea.vmem %s3, %s837
        %p839 = pneg %p140
        %p840 = pneg %p137
        %p841 = scmp.lt.s32.totalorder %s44, 1
        %s842 = scalar_select %p841, %s44, 1
        %s843 = scalar_lea.vmem %s4, %s842
        %p844 = pneg %p166
        %p845 = pneg %p163
        %p846 = scmp.lt.s32.totalorder %s44, 1
        %s847 = scalar_select %p846, %s44, 1
        %s848 = smul.addr %s847, 4
        %s849 = smul.addr %s848, 8
        %s850 = scalar_lea.vmem %s5, %s849
        %p851 = pneg %p192
        %p852 = pneg %p189
        %p853 = scmp.lt.s32.totalorder %s44, 1
        %s854 = scalar_select %p853, %s44, 1
        %s855 = scalar_lea.vmem %s6, %s854
        %p856 = pneg %p218
        %p857 = pneg %p215
        %p858 = scmp.lt.s32.totalorder %s44, 1
        %s859 = scalar_select %p858, %s44, 1
        %s860 = smul.addr %s859, 4
        %s861 = smul.addr %s860, 8
        %s862 = scalar_lea.vmem %s7, %s861
        %p863 = pneg %p244
        %p864 = pneg %p241
        %s865 = sand.u32 %s39, 1
        %s866 = scalar_lea.sflag [#allocation4], %s865
        %s867 = sand.u32 %s257, 1
        %s868 = scalar_lea.vmem [#allocation8], %s867
        %p869 = pneg %p270
        %p870 = pneg %p267
        %p871 = scmp.lt.s32.totalorder %s44, 1
        %s872 = scalar_select %p871, %s44, 1
        %s873 = smul.addr %s872, 4
        %s874 = smul.addr %s873, 8
        %s875 = scalar_lea.vmem %s9, %s874
        %p876 = pneg %p296
        %p877 = pneg %p293
        %s878 = sand.u32 %s39, 1
        %s879 = scalar_lea.sflag [#allocation4], %s878
        %s880 = sand.u32 %s309, 1
        %s881 = scalar_lea.vmem [#allocation9], %s880
        %p882 = pneg %p322
        %p883 = pneg %p319
        %p884 = scmp.lt.s32.totalorder %s44, 1
        %s885 = scalar_select %p884, %s44, 1
        %s886 = smul.addr %s885, 4
        %s887 = smul.addr %s886, 8
        %s888 = scalar_lea.vmem %s11, %s887
        %p889 = pneg %p348
        %p890 = pneg %p345
        %p891 = scmp.lt.s32.totalorder %s44, 1
        %s892 = scalar_select %p891, %s44, 1
        %s893 = scalar_lea.vmem %s12, %s892
        %p894 = pneg %p374
        %p895 = pneg %p371
        %p896 = scmp.lt.s32.totalorder %s44, 1
        %s897 = scalar_select %p896, %s44, 1
        %s898 = smul.addr %s897, 16
        %s899 = smul.addr %s898, 8
        %s900 = scalar_lea.vmem %s13, %s899
        %p901 = pneg %p400
        %p902 = pneg %p397
        %p903 = scmp.lt.s32.totalorder %s44, 1
        %s904 = scalar_select %p903, %s44, 1
        %s905 = scalar_lea.vmem %s14, %s904
        %p906 = pneg %p426
        %p907 = pneg %p423
        %p908 = scmp.lt.s32.totalorder %s44, 1
        %s909 = scalar_select %p908, %s44, 1
        %s910 = scalar_lea.vmem %s15, %s909
        %p911 = pneg %p452
        %p912 = pneg %p449
        %p913 = scmp.lt.s32.totalorder %s44, 1
        %s914 = scalar_select %p913, %s44, 1
        %s915 = scalar_lea.vmem %s16, %s914
        %p916 = pneg %p478
        %p917 = pneg %p475
        %p918 = scmp.lt.s32.totalorder %s44, 1
        %s919 = scalar_select %p918, %s44, 1
        %s920 = scalar_lea.vmem %s17, %s919
        %p921 = pneg %p504
        %p922 = pneg %p501
        %p923 = scmp.lt.s32.totalorder %s44, 1
        %s924 = scalar_select %p923, %s44, 1
        %s925 = scalar_lea.vmem %s18, %s924
        %p926 = pneg %p530
        %p927 = pneg %p527
        %p928 = pneg %p551
        %p929 = pneg %p548
        %p930 = pneg %p572
        %p931 = pneg %p569
        %p932 = pneg %p598
        %p933 = pneg %p595
        %s934 = sand.u32 %s585, 1
        %s935 = scalar_lea.sflag [#allocation5], %s934
        %s936 = sand.u32 %s585, 1
        %s937 = scalar_lea.vmem [#allocation10], %s936
        %p938 = scmp.lt.s32.totalorder %s44, 1
        %s939 = scalar_select %p938, %s44, 1
        %s940 = smul.addr %s939, 4
        %s941 = smul.addr %s940, 8
        %s942 = scalar_lea.vmem %s3, %s941
        %p943 = scmp.lt.s32.totalorder %s44, 1
        %s944 = scalar_select %p943, %s44, 1
        %s945 = scalar_lea.vmem %s4, %s944
        %p946 = scmp.lt.s32.totalorder %s44, 1
        %s947 = scalar_select %p946, %s44, 1
        %s948 = smul.addr %s947, 4
        %s949 = smul.addr %s948, 8
        %s950 = scalar_lea.vmem %s5, %s949
        %p951 = scmp.lt.s32.totalorder %s44, 1
        %s952 = scalar_select %p951, %s44, 1
        %s953 = scalar_lea.vmem %s6, %s952
        %p954 = scmp.lt.s32.totalorder %s44, 1
        %s955 = scalar_select %p954, %s44, 1
        %s956 = smul.addr %s955, 4
        %s957 = smul.addr %s956, 8
        %s958 = scalar_lea.vmem %s7, %s957
        %p959 = scmp.lt.s32.totalorder %s44, 1
        %s960 = scalar_select %p959, %s44, 1
        %s961 = smul.addr %s960, 4
        %s962 = smul.addr %s961, 8
        %s963 = scalar_lea.vmem %s9, %s962
        %p964 = scmp.lt.s32.totalorder %s44, 1
        %s965 = scalar_select %p964, %s44, 1
        %s966 = smul.addr %s965, 4
        %s967 = smul.addr %s966, 8
        %s968 = scalar_lea.vmem %s11, %s967
        %p969 = scmp.lt.s32.totalorder %s44, 1
        %s970 = scalar_select %p969, %s44, 1
        %s971 = scalar_lea.vmem %s12, %s970
        %p972 = scmp.lt.s32.totalorder %s44, 1
        %s973 = scalar_select %p972, %s44, 1
        %s974 = smul.addr %s973, 16
        %s975 = smul.addr %s974, 8
        %s976 = scalar_lea.vmem %s13, %s975
        %p977 = scmp.lt.s32.totalorder %s44, 1
        %s978 = scalar_select %p977, %s44, 1
        %s979 = scalar_lea.vmem %s14, %s978
        %p980 = scmp.lt.s32.totalorder %s44, 1
        %s981 = scalar_select %p980, %s44, 1
        %s982 = scalar_lea.vmem %s15, %s981
        %p983 = scmp.lt.s32.totalorder %s44, 1
        %s984 = scalar_select %p983, %s44, 1
        %s985 = scalar_lea.vmem %s16, %s984
        %p986 = scmp.lt.s32.totalorder %s44, 1
        %s987 = scalar_select %p986, %s44, 1
        %s988 = scalar_lea.vmem %s17, %s987
        %p989 = scmp.lt.s32.totalorder %s44, 1
        %s990 = scalar_select %p989, %s44, 1
        %s991 = scalar_lea.vmem %s18, %s990
        %p992 = scmp.eq.s32.totalorder %s44, 0
        // Predicated region
        $region121: #{tpu_custom_call.1} parent=103 // pred_check
          %p993 = pneg %p992
        $region122: #{tpu_custom_call.1} parent=103 // pred_check_branch
          %995 = sbr.rel (%p993) target = $region124
        $region123: #{tpu_custom_call.1} parent=103 // pred_region
          %v996 = vld [vmem:[%s798] sm:$0xff]
          %v997 = vld [vmem:[#allocation6] sm:$0xff]
          %v998 = vld [vmem:[#allocation6 + $0x8] sm:$0xff]
          %v999 = vld [vmem:[%s2] sm:$0x1]
          %v1001 = vlaneseq
          %v1002 = vshrl.u32 %v1001, 7
          %v1003 = vsub.s32 0, %v1002
          %v1004 = vrot.slane %v999, %v1003
          %vm1006 = vcmask 130048
          %v1008 = vsel %vm1006, %v996, 0
          %1010 = vmatprep.subr.mxu0 0.0
          %1011 = vmatpush1.msra.mxu0 %v997
          %1012 = vmatprep.subr.mxu0 0.0
          %1013 = vmatpush1.msra.mxu0 %v998
          %1014 = vmatprep.subr.mxu0 0.0
          %1015 = vmatpush1.msra.mxu0 0.0
          %1016 = vmatprep.subr.mxu0 0.0
          %1017 = vmatpush1.msra.mxu0 0.0
          %1018 = vmatprep.subr.mxu0 0.0
          %1019 = vmatpush1.msra.mxu0 0.0
          %1020 = vmatprep.subr.mxu0 0.0
          %1021 = vmatpush1.msra.mxu0 0.0
          %1022 = vmatprep.subr.mxu0 0.0
          %1023 = vmatpush1.msra.mxu0 0.0
          %1024 = vmatprep.subr.mxu0 0.0
          %1025 = vmatpush1.msra.mxu0 0.0
          %1026 = vmatprep.subr.mxu0 0.0
          %1027 = vmatpush1.msra.mxu0 0.0
          %1028 = vmatprep.subr.mxu0 0.0
          %1029 = vmatpush1.msra.mxu0 0.0
          %1030 = vmatprep.subr.mxu0 0.0
          %1031 = vmatpush1.msra.mxu0 0.0
          %1032 = vmatprep.subr.mxu0 0.0
          %1033 = vmatpush1.msra.mxu0 0.0
          %1034 = vmatprep.subr.mxu0 0.0
          %1035 = vmatpush1.msra.mxu0 0.0
          %1036 = vmatprep.subr.mxu0 0.0
          %1037 = vmatpush1.msra.mxu0 0.0
          %1038 = vmatprep.subr.mxu0 0.0
          %1039 = vmatpush1.msra.mxu0 0.0
          %1040 = vmatprep.subr.mxu0 0.0
          %1041 = vmatpush1.msra.mxu0 0.0
          %1042 = vmatprep.subr.mxu0 0.0
          %1043 = vmatpush1.msra.mxu0 0.0
          %1044 = vmatprep.subr.mxu0 0.0
          %1045 = vmatpush1.msra.mxu0 0.0
          %1046 = vmatprep.subr.mxu0 0.0
          %1047 = vmatpush1.msra.mxu0 0.0
          %1048 = vmatprep.subr.mxu0 0.0
          %1049 = vmatpush1.msra.mxu0 0.0
          %1050 = vmatprep.subr.mxu0 0.0
          %1051 = vmatpush1.msra.mxu0 0.0
          %1052 = vmatprep.subr.mxu0 0.0
          %1053 = vmatpush1.msra.mxu0 0.0
          %1054 = vmatprep.subr.mxu0 0.0
          %1055 = vmatpush1.msra.mxu0 0.0
          %1056 = vmatprep.subr.mxu0 0.0
          %1057 = vmatpush1.msra.mxu0 0.0
          %1058 = vmatprep.subr.mxu0 0.0
          %1059 = vmatpush1.msra.mxu0 0.0
          %1060 = vmatprep.subr.mxu0 0.0
          %1061 = vmatpush1.msra.mxu0 0.0
          %1062 = vmatprep.subr.mxu0 0.0
          %1063 = vmatpush1.msra.mxu0 0.0
          %1064 = vmatprep.subr.mxu0 0.0
          %1065 = vmatpush1.msra.mxu0 0.0
          %1066 = vmatprep.subr.mxu0 0.0
          %1067 = vmatpush1.msra.mxu0 0.0
          %1068 = vmatprep.subr.mxu0 0.0
          %1069 = vmatpush1.msra.mxu0 0.0
          %1070 = vmatprep.subr.mxu0 0.0
          %1071 = vmatpush1.msra.mxu0 0.0
          %1072 = vmatprep.subr.mxu0 0.0
          %1073 = vmatpush1.msra.mxu0 0.0
          %1074 = vmatprep.mubr.f32.mxu0 0.0
          %1075 = vmatmul.mubr.f32.gmra.mrb[0].mxu0 %v1008
          %v1076 = vpop.f32.mrb[0].mxu0
          %v1077 = vadd.f32 %v1004, %v1076
          %v1078 = vpop.f32.mrb[0].mxu0
          %1079 = vdwg.mxu0
          %vm1080 = vcmask 261120
          %1081 = vst.msk [vmem:[#allocation2] sm:$0xff] %vm1080, %v1077
        $region124: #{tpu_custom_call.1} parent=103 // pred_fallthru
          _
        %v1082 = vld [vmem:[#allocation2] sm:$0xff]
        %v1083 = vld [vmem:[%s942] sm:$0xff]
        %v1084 = vld [vmem:[%s942 + $0x8] sm:$0xff]
        %v1085 = vld [vmem:[%s942 + $0x10] sm:$0xff]
        %v1086 = vld [vmem:[%s942 + $0x18] sm:$0xff]
        %v1087 = vld [vmem:[%s945] sm:$0x1]
        %v1089 = vlaneseq
        %v1090 = vshrl.u32 %v1089, 7
        %v1091 = vsub.s32 0, %v1090
        %v1092 = vrot.slane %v1087, %v1091
        %vm1094 = vcmask 261120
        %v1096 = vsel %vm1094, %v1082, 0
        %1098 = vmatprep.subr.mxu0 0.0
        %1099 = vmatpush1.msra.mxu0 %v1083
        %1100 = vmatprep.subr.mxu0 0.0
        %1101 = vmatpush1.msra.mxu0 %v1084
        %1102 = vmatprep.subr.mxu0 0.0
        %1103 = vmatpush1.msra.mxu0 %v1085
        %1104 = vmatprep.subr.mxu0 0.0
        %1105 = vmatpush1.msra.mxu0 %v1086
        %1106 = vmatprep.subr.mxu0 0.0
        %1107 = vmatpush1.msra.mxu0 0.0
        %1108 = vmatprep.subr.mxu0 0.0
        %1109 = vmatpush1.msra.mxu0 0.0
        %1110 = vmatprep.subr.mxu0 0.0
        %1111 = vmatpush1.msra.mxu0 0.0
        %1112 = vmatprep.subr.mxu0 0.0
        %1113 = vmatpush1.msra.mxu0 0.0
        %1114 = vmatprep.subr.mxu0 0.0
        %1115 = vmatpush1.msra.mxu0 0.0
        %1116 = vmatprep.subr.mxu0 0.0
        %1117 = vmatpush1.msra.mxu0 0.0
        %1118 = vmatprep.subr.mxu0 0.0
        %1119 = vmatpush1.msra.mxu0 0.0
        %1120 = vmatprep.subr.mxu0 0.0
        %1121 = vmatpush1.msra.mxu0 0.0
        %1122 = vmatprep.subr.mxu0 0.0
        %1123 = vmatpush1.msra.mxu0 0.0
        %1124 = vmatprep.subr.mxu0 0.0
        %1125 = vmatpush1.msra.mxu0 0.0
        %1126 = vmatprep.subr.mxu0 0.0
        %1127 = vmatpush1.msra.mxu0 0.0
        %1128 = vmatprep.subr.mxu0 0.0
        %1129 = vmatpush1.msra.mxu0 0.0
        %1130 = vmatprep.subr.mxu0 0.0
        %1131 = vmatpush1.msra.mxu0 0.0
        %1132 = vmatprep.subr.mxu0 0.0
        %1133 = vmatpush1.msra.mxu0 0.0
        %1134 = vmatprep.subr.mxu0 0.0
        %1135 = vmatpush1.msra.mxu0 0.0
        %1136 = vmatprep.subr.mxu0 0.0
        %1137 = vmatpush1.msra.mxu0 0.0
        %1138 = vmatprep.subr.mxu0 0.0
        %1139 = vmatpush1.msra.mxu0 0.0
        %1140 = vmatprep.subr.mxu0 0.0
        %1141 = vmatpush1.msra.mxu0 0.0
        %1142 = vmatprep.subr.mxu0 0.0
        %1143 = vmatpush1.msra.mxu0 0.0
        %1144 = vmatprep.subr.mxu0 0.0
        %1145 = vmatpush1.msra.mxu0 0.0
        %1146 = vmatprep.subr.mxu0 0.0
        %1147 = vmatpush1.msra.mxu0 0.0
        %1148 = vmatprep.subr.mxu0 0.0
        %1149 = vmatpush1.msra.mxu0 0.0
        %1150 = vmatprep.subr.mxu0 0.0
        %1151 = vmatpush1.msra.mxu0 0.0
        %1152 = vmatprep.subr.mxu0 0.0
        %1153 = vmatpush1.msra.mxu0 0.0
        %1154 = vmatprep.subr.mxu0 0.0
        %1155 = vmatpush1.msra.mxu0 0.0
        %1156 = vmatprep.subr.mxu0 0.0
        %1157 = vmatpush1.msra.mxu0 0.0
        %1158 = vmatprep.subr.mxu0 0.0
        %1159 = vmatpush1.msra.mxu0 0.0
        %1160 = vmatprep.subr.mxu0 0.0
        %1161 = vmatpush1.msra.mxu0 0.0
        %1162 = vmatprep.mubr.f32.mxu0 0.0
        %1163 = vmatmul.mubr.f32.gmra.mrb[0].mxu0 %v1096
        %v1164 = vpop.f32.mrb[0].mxu0
        %v1165 = vadd.f32 %v1092, %v1164
        %v1166 = vpop.f32.mrb[0].mxu0
        %1167 = vdwg.mxu0
        %v1168 = vld [vmem:[%s950] sm:$0xff]
        %v1169 = vld [vmem:[%s950 + $0x8] sm:$0xff]
        %v1170 = vld [vmem:[%s950 + $0x10] sm:$0xff]
        %v1171 = vld [vmem:[%s950 + $0x18] sm:$0xff]
        %v1172 = vld [vmem:[%s953] sm:$0x1]
        %v1174 = vlaneseq
        %v1175 = vshrl.u32 %v1174, 7
        %v1176 = vsub.s32 0, %v1175
        %v1177 = vrot.slane %v1172, %v1176
        %1179 = vmatprep.subr.mxu0 0.0
        %1180 = vmatpush1.msra.mxu0 %v1168
        %1181 = vmatprep.subr.mxu0 0.0
        %1182 = vmatpush1.msra.mxu0 %v1169
        %1183 = vmatprep.subr.mxu0 0.0
        %1184 = vmatpush1.msra.mxu0 %v1170
        %1185 = vmatprep.subr.mxu0 0.0
        %1186 = vmatpush1.msra.mxu0 %v1171
        %1187 = vmatprep.subr.mxu0 0.0
        %1188 = vmatpush1.msra.mxu0 0.0
        %1189 = vmatprep.subr.mxu0 0.0
        %1190 = vmatpush1.msra.mxu0 0.0
        %1191 = vmatprep.subr.mxu0 0.0
        %1192 = vmatpush1.msra.mxu0 0.0
        %1193 = vmatprep.subr.mxu0 0.0
        %1194 = vmatpush1.msra.mxu0 0.0
        %1195 = vmatprep.subr.mxu0 0.0
        %1196 = vmatpush1.msra.mxu0 0.0
        %1197 = vmatprep.subr.mxu0 0.0
        %1198 = vmatpush1.msra.mxu0 0.0
        %1199 = vmatprep.subr.mxu0 0.0
        %1200 = vmatpush1.msra.mxu0 0.0
        %1201 = vmatprep.subr.mxu0 0.0
        %1202 = vmatpush1.msra.mxu0 0.0
        %1203 = vmatprep.subr.mxu0 0.0
        %1204 = vmatpush1.msra.mxu0 0.0
        %1205 = vmatprep.subr.mxu0 0.0
        %1206 = vmatpush1.msra.mxu0 0.0
        %1207 = vmatprep.subr.mxu0 0.0
        %1208 = vmatpush1.msra.mxu0 0.0
        %1209 = vmatprep.subr.mxu0 0.0
        %1210 = vmatpush1.msra.mxu0 0.0
        %1211 = vmatprep.subr.mxu0 0.0
        %1212 = vmatpush1.msra.mxu0 0.0
        %1213 = vmatprep.subr.mxu0 0.0
        %1214 = vmatpush1.msra.mxu0 0.0
        %1215 = vmatprep.subr.mxu0 0.0
        %1216 = vmatpush1.msra.mxu0 0.0
        %1217 = vmatprep.subr.mxu0 0.0
        %1218 = vmatpush1.msra.mxu0 0.0
        %1219 = vmatprep.subr.mxu0 0.0
        %1220 = vmatpush1.msra.mxu0 0.0
        %1221 = vmatprep.subr.mxu0 0.0
        %1222 = vmatpush1.msra.mxu0 0.0
        %1223 = vmatprep.subr.mxu0 0.0
        %1224 = vmatpush1.msra.mxu0 0.0
        %1225 = vmatprep.subr.mxu0 0.0
        %1226 = vmatpush1.msra.mxu0 0.0
        %1227 = vmatprep.subr.mxu0 0.0
        %1228 = vmatpush1.msra.mxu0 0.0
        %1229 = vmatprep.subr.mxu0 0.0
        %1230 = vmatpush1.msra.mxu0 0.0
        %1231 = vmatprep.subr.mxu0 0.0
        %1232 = vmatpush1.msra.mxu0 0.0
        %1233 = vmatprep.subr.mxu0 0.0
        %1234 = vmatpush1.msra.mxu0 0.0
        %1235 = vmatprep.subr.mxu0 0.0
        %1236 = vmatpush1.msra.mxu0 0.0
        %1237 = vmatprep.subr.mxu0 0.0
        %1238 = vmatpush1.msra.mxu0 0.0
        %1239 = vmatprep.subr.mxu0 0.0
        %1240 = vmatpush1.msra.mxu0 0.0
        %1241 = vmatprep.subr.mxu0 0.0
        %1242 = vmatpush1.msra.mxu0 0.0
        %1243 = vmatprep.mubr.f32.mxu0 0.0
        %1244 = vmatmul.mubr.f32.gmra.mrb[0].mxu0 %v1096
        %v1245 = vpop.f32.mrb[0].mxu0
        %v1246 = vadd.f32 %v1177, %v1245
        %v1247 = vpop.f32.mrb[0].mxu0
        %1248 = vdwg.mxu0
        %v1249 = vld [vmem:[%s958] sm:$0xff]
        %v1250 = vld [vmem:[%s958 + $0x8] sm:$0xff]
        %v1251 = vld [vmem:[%s958 + $0x10] sm:$0xff]
        %v1252 = vld [vmem:[%s958 + $0x18] sm:$0xff]
        %v1253 = vld [vmem:[%s810] sm:$0x1]
        %v1255 = vlaneseq
        %v1256 = vshrl.u32 %v1255, 7
        %v1257 = vsub.s32 0, %v1256
        %v1258 = vrot.slane %v1253, %v1257
        %1260 = vmatprep.subr.mxu0 0.0
        %1261 = vmatpush1.msra.mxu0 %v1249
        %1262 = vmatprep.subr.mxu0 0.0
        %1263 = vmatpush1.msra.mxu0 %v1250
        %1264 = vmatprep.subr.mxu0 0.0
        %1265 = vmatpush1.msra.mxu0 %v1251
        %1266 = vmatprep.subr.mxu0 0.0
        %1267 = vmatpush1.msra.mxu0 %v1252
        %1268 = vmatprep.subr.mxu0 0.0
        %1269 = vmatpush1.msra.mxu0 0.0
        %1270 = vmatprep.subr.mxu0 0.0
        %1271 = vmatpush1.msra.mxu0 0.0
        %1272 = vmatprep.subr.mxu0 0.0
        %1273 = vmatpush1.msra.mxu0 0.0
        %1274 = vmatprep.subr.mxu0 0.0
        %1275 = vmatpush1.msra.mxu0 0.0
        %1276 = vmatprep.subr.mxu0 0.0
        %1277 = vmatpush1.msra.mxu0 0.0
        %1278 = vmatprep.subr.mxu0 0.0
        %1279 = vmatpush1.msra.mxu0 0.0
        %1280 = vmatprep.subr.mxu0 0.0
        %1281 = vmatpush1.msra.mxu0 0.0
        %1282 = vmatprep.subr.mxu0 0.0
        %1283 = vmatpush1.msra.mxu0 0.0
        %1284 = vmatprep.subr.mxu0 0.0
        %1285 = vmatpush1.msra.mxu0 0.0
        %1286 = vmatprep.subr.mxu0 0.0
        %1287 = vmatpush1.msra.mxu0 0.0
        %1288 = vmatprep.subr.mxu0 0.0
        %1289 = vmatpush1.msra.mxu0 0.0
        %1290 = vmatprep.subr.mxu0 0.0
        %1291 = vmatpush1.msra.mxu0 0.0
        %1292 = vmatprep.subr.mxu0 0.0
        %1293 = vmatpush1.msra.mxu0 0.0
        %1294 = vmatprep.subr.mxu0 0.0
        %1295 = vmatpush1.msra.mxu0 0.0
        %1296 = vmatprep.subr.mxu0 0.0
        %1297 = vmatpush1.msra.mxu0 0.0
        %1298 = vmatprep.subr.mxu0 0.0
        %1299 = vmatpush1.msra.mxu0 0.0
        %1300 = vmatprep.subr.mxu0 0.0
        %1301 = vmatpush1.msra.mxu0 0.0
        %1302 = vmatprep.subr.mxu0 0.0
        %1303 = vmatpush1.msra.mxu0 0.0
        %1304 = vmatprep.subr.mxu0 0.0
        %1305 = vmatpush1.msra.mxu0 0.0
        %1306 = vmatprep.subr.mxu0 0.0
        %1307 = vmatpush1.msra.mxu0 0.0
        %1308 = vmatprep.subr.mxu0 0.0
        %1309 = vmatpush1.msra.mxu0 0.0
        %1310 = vmatprep.subr.mxu0 0.0
        %1311 = vmatpush1.msra.mxu0 0.0
        %1312 = vmatprep.subr.mxu0 0.0
        %1313 = vmatpush1.msra.mxu0 0.0
        %1314 = vmatprep.subr.mxu0 0.0
        %1315 = vmatpush1.msra.mxu0 0.0
        %1316 = vmatprep.subr.mxu0 0.0
        %1317 = vmatpush1.msra.mxu0 0.0
        %1318 = vmatprep.subr.mxu0 0.0
        %1319 = vmatpush1.msra.mxu0 0.0
        %1320 = vmatprep.subr.mxu0 0.0
        %1321 = vmatpush1.msra.mxu0 0.0
        %1322 = vmatprep.subr.mxu0 0.0
        %1323 = vmatpush1.msra.mxu0 0.0
        %1324 = vmatprep.mubr.f32.mxu0 0.0
        %1325 = vmatmul.mubr.f32.gmra.mrb[0].mxu0 %v1096
        %v1326 = vpop.f32.mrb[0].mxu0
        %v1327 = vadd.f32 %v1258, %v1326
        %v1328 = vpop.f32.mrb[0].mxu0
        %1329 = vdwg.mxu0
        %1331 = vrot.lane.b32.xlu0 %v1165, 120
        %v1332 = vpop.permute.xlu0 %1331
        %1334 = vrot.lane.b32.xlu0 %v1165, 112
        %v1335 = vpop.permute.xlu0 %1334
        %1337 = vrot.lane.b32.xlu0 %v1165, 104
        %v1338 = vpop.permute.xlu0 %1337
        %v1340 = vcombine.low %v1165, %v1335
        %v1341 = vcombine.high %v1165, %v1335
        %v1343 = vunpack.c.l.s4 1983009808
        %v1344 = vunpack.c.0.s8 %v1343
        %v1345 = vlaneseq
        %v1346 = vshrl.u32 %v1345, 7
        %v1347 = vsub.s32 %v1344, %v1346
        %v1348 = vrot.slane %v1340, %v1347
        %v1350 = vunpack.c.l.s4 1983009808
        %v1351 = vunpack.c.0.s8 %v1350
        %v1352 = vlaneseq
        %v1353 = vshrl.u32 %v1352, 7
        %v1354 = vsub.s32 %v1351, %v1353
        %v1355 = vrot.slane %v1341, %v1354
        %v1356 = vcombine.low %v1332, %v1338
        %v1357 = vcombine.high %v1332, %v1338
        %v1359 = vunpack.c.l.s4 1983009808
        %v1360 = vunpack.c.0.s8 %v1359
        %v1361 = vlaneseq
        %v1362 = vshrl.u32 %v1361, 7
        %v1363 = vsub.s32 %v1360, %v1362
        %v1364 = vrot.slane %v1356, %v1363
        %v1366 = vunpack.c.l.s4 1983009808
        %v1367 = vunpack.c.0.s8 %v1366
        %v1368 = vlaneseq
        %v1369 = vshrl.u32 %v1368, 7
        %v1370 = vsub.s32 %v1367, %v1369
        %v1371 = vrot.slane %v1357, %v1370
        %v1372 = vcombine.low %v1348, %v1364
        %v1373 = vcombine.high %v1348, %v1364
        %v1375 = vunpack.c.l.s4 1934713408
        %v1376 = vunpack.c.0.s8 %v1375
        %v1377 = vlaneseq
        %v1378 = vshrl.u32 %v1377, 7
        %v1379 = vsub.s32 %v1376, %v1378
        %v1380 = vrot.slane %v1372, %v1379
        %v1382 = vunpack.c.l.s4 1934713408
        %v1383 = vunpack.c.0.s8 %v1382
        %v1384 = vlaneseq
        %v1385 = vshrl.u32 %v1384, 7
        %v1386 = vsub.s32 %v1383, %v1385
        %v1387 = vrot.slane %v1373, %v1386
        %v1388 = vcombine.low %v1355, %v1371
        %v1389 = vcombine.high %v1355, %v1371
        %v1391 = vunpack.c.l.s4 1934713408
        %v1392 = vunpack.c.0.s8 %v1391
        %v1393 = vlaneseq
        %v1394 = vshrl.u32 %v1393, 7
        %v1395 = vsub.s32 %v1392, %v1394
        %v1396 = vrot.slane %v1388, %v1395
        %v1398 = vunpack.c.l.s4 1934713408
        %v1399 = vunpack.c.0.s8 %v1398
        %v1400 = vlaneseq
        %v1401 = vshrl.u32 %v1400, 7
        %v1402 = vsub.s32 %v1399, %v1401
        %v1403 = vrot.slane %v1389, %v1402
        %v1404 = vcombine.high %v1380, 0.0
        %v1405 = vcombine.high %v1387, 0.0
        %v1406 = vcombine.high %v1396, 0.0
        %v1407 = vcombine.high %v1403, 0.0
        %v1408 = vcombine.low %v1380, %v1387
        %v1410 = vunpack.c.l.s4 1983009808
        %v1411 = vunpack.c.0.s8 %v1410
        %v1412 = vlaneseq
        %v1413 = vshrl.u32 %v1412, 7
        %v1414 = vsub.s32 %v1411, %v1413
        %v1415 = vrot.slane %v1408, %v1414
        %v1416 = vcombine.low %v1404, %v1405
        %v1418 = vunpack.c.l.s4 1983009808
        %v1419 = vunpack.c.0.s8 %v1418
        %v1420 = vlaneseq
        %v1421 = vshrl.u32 %v1420, 7
        %v1422 = vsub.s32 %v1419, %v1421
        %v1423 = vrot.slane %v1416, %v1422
        %v1424 = vcombine.low %v1396, %v1403
        %v1426 = vunpack.c.l.s4 1983009808
        %v1427 = vunpack.c.0.s8 %v1426
        %v1428 = vlaneseq
        %v1429 = vshrl.u32 %v1428, 7
        %v1430 = vsub.s32 %v1427, %v1429
        %v1431 = vrot.slane %v1424, %v1430
        %v1432 = vcombine.low %v1406, %v1407
        %v1434 = vunpack.c.l.s4 1983009808
        %v1435 = vunpack.c.0.s8 %v1434
        %v1436 = vlaneseq
        %v1437 = vshrl.u32 %v1436, 7
        %v1438 = vsub.s32 %v1435, %v1437
        %v1439 = vrot.slane %v1432, %v1438
        %v1440 = vcombine.low %v1415, %v1423
        %v1441 = vcombine.high %v1415, %v1423
        %v1443 = vunpack.c.l.s4 1934713408
        %v1444 = vunpack.c.0.s8 %v1443
        %v1445 = vlaneseq
        %v1446 = vshrl.u32 %v1445, 7
        %v1447 = vsub.s32 %v1444, %v1446
        %v1448 = vrot.slane %v1440, %v1447
        %v1450 = vunpack.c.l.s4 1934713408
        %v1451 = vunpack.c.0.s8 %v1450
        %v1452 = vlaneseq
        %v1453 = vshrl.u32 %v1452, 7
        %v1454 = vsub.s32 %v1451, %v1453
        %v1455 = vrot.slane %v1441, %v1454
        %v1456 = vcombine.low %v1431, %v1439
        %v1457 = vcombine.high %v1431, %v1439
        %v1459 = vunpack.c.l.s4 1934713408
        %v1460 = vunpack.c.0.s8 %v1459
        %v1461 = vlaneseq
        %v1462 = vshrl.u32 %v1461, 7
        %v1463 = vsub.s32 %v1460, %v1462
        %v1464 = vrot.slane %v1456, %v1463
        %v1466 = vunpack.c.l.s4 1934713408
        %v1467 = vunpack.c.0.s8 %v1466
        %v1468 = vlaneseq
        %v1469 = vshrl.u32 %v1468, 7
        %v1470 = vsub.s32 %v1467, %v1469
        %v1471 = vrot.slane %v1457, %v1470
        %v1472 = vcombine.low %v1448, %v1464
        %v1473 = vcombine.high %v1448, %v1464
        %v1474 = vcombine.low %v1455, %v1471
        %v1475 = vcombine.high %v1455, %v1471
        %1477 = vrot.lane.b32.xlu0 %v1246, 120
        %v1478 = vpop.permute.xlu0 %1477
        %1480 = vrot.lane.b32.xlu0 %v1246, 112
        %v1481 = vpop.permute.xlu0 %1480
        %1483 = vrot.lane.b32.xlu0 %v1246, 104
        %v1484 = vpop.permute.xlu0 %1483
        %v1486 = vcombine.low %v1246, %v1481
        %v1487 = vcombine.high %v1246, %v1481
        %v1489 = vunpack.c.l.s4 1983009808
        %v1490 = vunpack.c.0.s8 %v1489
        %v1491 = vlaneseq
        %v1492 = vshrl.u32 %v1491, 7
        %v1493 = vsub.s32 %v1490, %v1492
        %v1494 = vrot.slane %v1486, %v1493
        %v1496 = vunpack.c.l.s4 1983009808
        %v1497 = vunpack.c.0.s8 %v1496
        %v1498 = vlaneseq
        %v1499 = vshrl.u32 %v1498, 7
        %v1500 = vsub.s32 %v1497, %v1499
        %v1501 = vrot.slane %v1487, %v1500
        %v1502 = vcombine.low %v1478, %v1484
        %v1503 = vcombine.high %v1478, %v1484
        %v1505 = vunpack.c.l.s4 1983009808
        %v1506 = vunpack.c.0.s8 %v1505
        %v1507 = vlaneseq
        %v1508 = vshrl.u32 %v1507, 7
        %v1509 = vsub.s32 %v1506, %v1508
        %v1510 = vrot.slane %v1502, %v1509
        %v1512 = vunpack.c.l.s4 1983009808
        %v1513 = vunpack.c.0.s8 %v1512
        %v1514 = vlaneseq
        %v1515 = vshrl.u32 %v1514, 7
        %v1516 = vsub.s32 %v1513, %v1515
        %v1517 = vrot.slane %v1503, %v1516
        %v1518 = vcombine.low %v1494, %v1510
        %v1519 = vcombine.high %v1494, %v1510
        %v1521 = vunpack.c.l.s4 1934713408
        %v1522 = vunpack.c.0.s8 %v1521
        %v1523 = vlaneseq
        %v1524 = vshrl.u32 %v1523, 7
        %v1525 = vsub.s32 %v1522, %v1524
        %v1526 = vrot.slane %v1518, %v1525
        %v1528 = vunpack.c.l.s4 1934713408
        %v1529 = vunpack.c.0.s8 %v1528
        %v1530 = vlaneseq
        %v1531 = vshrl.u32 %v1530, 7
        %v1532 = vsub.s32 %v1529, %v1531
        %v1533 = vrot.slane %v1519, %v1532
        %v1534 = vcombine.low %v1501, %v1517
        %v1535 = vcombine.high %v1501, %v1517
        %v1537 = vunpack.c.l.s4 1934713408
        %v1538 = vunpack.c.0.s8 %v1537
        %v1539 = vlaneseq
        %v1540 = vshrl.u32 %v1539, 7
        %v1541 = vsub.s32 %v1538, %v1540
        %v1542 = vrot.slane %v1534, %v1541
        %v1544 = vunpack.c.l.s4 1934713408
        %v1545 = vunpack.c.0.s8 %v1544
        %v1546 = vlaneseq
        %v1547 = vshrl.u32 %v1546, 7
        %v1548 = vsub.s32 %v1545, %v1547
        %v1549 = vrot.slane %v1535, %v1548
        %v1550 = vcombine.high %v1526, 0.0
        %v1551 = vcombine.high %v1533, 0.0
        %v1552 = vcombine.high %v1542, 0.0
        %v1553 = vcombine.high %v1549, 0.0
        %v1554 = vcombine.low %v1526, %v1533
        %v1556 = vunpack.c.l.s4 1983009808
        %v1557 = vunpack.c.0.s8 %v1556
        %v1558 = vlaneseq
        %v1559 = vshrl.u32 %v1558, 7
        %v1560 = vsub.s32 %v1557, %v1559
        %v1561 = vrot.slane %v1554, %v1560
        %v1562 = vcombine.low %v1550, %v1551
        %v1564 = vunpack.c.l.s4 1983009808
        %v1565 = vunpack.c.0.s8 %v1564
        %v1566 = vlaneseq
        %v1567 = vshrl.u32 %v1566, 7
        %v1568 = vsub.s32 %v1565, %v1567
        %v1569 = vrot.slane %v1562, %v1568
        %v1570 = vcombine.low %v1542, %v1549
        %v1572 = vunpack.c.l.s4 1983009808
        %v1573 = vunpack.c.0.s8 %v1572
        %v1574 = vlaneseq
        %v1575 = vshrl.u32 %v1574, 7
        %v1576 = vsub.s32 %v1573, %v1575
        %v1577 = vrot.slane %v1570, %v1576
        %v1578 = vcombine.low %v1552, %v1553
        %v1580 = vunpack.c.l.s4 1983009808
        %v1581 = vunpack.c.0.s8 %v1580
        %v1582 = vlaneseq
        %v1583 = vshrl.u32 %v1582, 7
        %v1584 = vsub.s32 %v1581, %v1583
        %v1585 = vrot.slane %v1578, %v1584
        %v1586 = vcombine.low %v1561, %v1569
        %v1587 = vcombine.high %v1561, %v1569
        %v1589 = vunpack.c.l.s4 1934713408
        %v1590 = vunpack.c.0.s8 %v1589
        %v1591 = vlaneseq
        %v1592 = vshrl.u32 %v1591, 7
        %v1593 = vsub.s32 %v1590, %v1592
        %v1594 = vrot.slane %v1586, %v1593
        %v1596 = vunpack.c.l.s4 1934713408
        %v1597 = vunpack.c.0.s8 %v1596
        %v1598 = vlaneseq
        %v1599 = vshrl.u32 %v1598, 7
        %v1600 = vsub.s32 %v1597, %v1599
        %v1601 = vrot.slane %v1587, %v1600
        %v1602 = vcombine.low %v1577, %v1585
        %v1603 = vcombine.high %v1577, %v1585
        %v1605 = vunpack.c.l.s4 1934713408
        %v1606 = vunpack.c.0.s8 %v1605
        %v1607 = vlaneseq
        %v1608 = vshrl.u32 %v1607, 7
        %v1609 = vsub.s32 %v1606, %v1608
        %v1610 = vrot.slane %v1602, %v1609
        %v1612 = vunpack.c.l.s4 1934713408
        %v1613 = vunpack.c.0.s8 %v1612
        %v1614 = vlaneseq
        %v1615 = vshrl.u32 %v1614, 7
        %v1616 = vsub.s32 %v1613, %v1615
        %v1617 = vrot.slane %v1603, %v1616
        %v1618 = vcombine.low %v1594, %v1610
        %v1619 = vcombine.high %v1594, %v1610
        %v1620 = vcombine.low %v1601, %v1617
        %v1621 = vcombine.high %v1601, %v1617
        %1623 = vrot.lane.b32.xlu0 %v1327, 120
        %v1624 = vpop.permute.xlu0 %1623
        %1626 = vrot.lane.b32.xlu0 %v1327, 112
        %v1627 = vpop.permute.xlu0 %1626
        %1629 = vrot.lane.b32.xlu0 %v1327, 104
        %v1630 = vpop.permute.xlu0 %1629
        %v1632 = vcombine.low %v1327, %v1627
        %v1633 = vcombine.high %v1327, %v1627
        %v1635 = vunpack.c.l.s4 1983009808
        %v1636 = vunpack.c.0.s8 %v1635
        %v1637 = vlaneseq
        %v1638 = vshrl.u32 %v1637, 7
        %v1639 = vsub.s32 %v1636, %v1638
        %v1640 = vrot.slane %v1632, %v1639
        %v1642 = vunpack.c.l.s4 1983009808
        %v1643 = vunpack.c.0.s8 %v1642
        %v1644 = vlaneseq
        %v1645 = vshrl.u32 %v1644, 7
        %v1646 = vsub.s32 %v1643, %v1645
        %v1647 = vrot.slane %v1633, %v1646
        %v1648 = vcombine.low %v1624, %v1630
        %v1649 = vcombine.high %v1624, %v1630
        %v1651 = vunpack.c.l.s4 1983009808
        %v1652 = vunpack.c.0.s8 %v1651
        %v1653 = vlaneseq
        %v1654 = vshrl.u32 %v1653, 7
        %v1655 = vsub.s32 %v1652, %v1654
        %v1656 = vrot.slane %v1648, %v1655
        %v1658 = vunpack.c.l.s4 1983009808
        %v1659 = vunpack.c.0.s8 %v1658
        %v1660 = vlaneseq
        %v1661 = vshrl.u32 %v1660, 7
        %v1662 = vsub.s32 %v1659, %v1661
        %v1663 = vrot.slane %v1649, %v1662
        %v1664 = vcombine.low %v1640, %v1656
        %v1665 = vcombine.high %v1640, %v1656
        %v1667 = vunpack.c.l.s4 1934713408
        %v1668 = vunpack.c.0.s8 %v1667
        %v1669 = vlaneseq
        %v1670 = vshrl.u32 %v1669, 7
        %v1671 = vsub.s32 %v1668, %v1670
        %v1672 = vrot.slane %v1664, %v1671
        %v1674 = vunpack.c.l.s4 1934713408
        %v1675 = vunpack.c.0.s8 %v1674
        %v1676 = vlaneseq
        %v1677 = vshrl.u32 %v1676, 7
        %v1678 = vsub.s32 %v1675, %v1677
        %v1679 = vrot.slane %v1665, %v1678
        %v1680 = vcombine.low %v1647, %v1663
        %v1681 = vcombine.high %v1647, %v1663
        %v1683 = vunpack.c.l.s4 1934713408
        %v1684 = vunpack.c.0.s8 %v1683
        %v1685 = vlaneseq
        %v1686 = vshrl.u32 %v1685, 7
        %v1687 = vsub.s32 %v1684, %v1686
        %v1688 = vrot.slane %v1680, %v1687
        %v1690 = vunpack.c.l.s4 1934713408
        %v1691 = vunpack.c.0.s8 %v1690
        %v1692 = vlaneseq
        %v1693 = vshrl.u32 %v1692, 7
        %v1694 = vsub.s32 %v1691, %v1693
        %v1695 = vrot.slane %v1681, %v1694
        %v1696 = vcombine.high %v1672, 0.0
        %v1697 = vcombine.high %v1679, 0.0
        %v1698 = vcombine.high %v1688, 0.0
        %v1699 = vcombine.high %v1695, 0.0
        %v1700 = vcombine.low %v1672, %v1679
        %v1702 = vunpack.c.l.s4 1983009808
        %v1703 = vunpack.c.0.s8 %v1702
        %v1704 = vlaneseq
        %v1705 = vshrl.u32 %v1704, 7
        %v1706 = vsub.s32 %v1703, %v1705
        %v1707 = vrot.slane %v1700, %v1706
        %v1708 = vcombine.low %v1696, %v1697
        %v1710 = vunpack.c.l.s4 1983009808
        %v1711 = vunpack.c.0.s8 %v1710
        %v1712 = vlaneseq
        %v1713 = vshrl.u32 %v1712, 7
        %v1714 = vsub.s32 %v1711, %v1713
        %v1715 = vrot.slane %v1708, %v1714
        %v1716 = vcombine.low %v1688, %v1695
        %v1718 = vunpack.c.l.s4 1983009808
        %v1719 = vunpack.c.0.s8 %v1718
        %v1720 = vlaneseq
        %v1721 = vshrl.u32 %v1720, 7
        %v1722 = vsub.s32 %v1719, %v1721
        %v1723 = vrot.slane %v1716, %v1722
        %v1724 = vcombine.low %v1698, %v1699
        %v1726 = vunpack.c.l.s4 1983009808
        %v1727 = vunpack.c.0.s8 %v1726
        %v1728 = vlaneseq
        %v1729 = vshrl.u32 %v1728, 7
        %v1730 = vsub.s32 %v1727, %v1729
        %v1731 = vrot.slane %v1724, %v1730
        %v1732 = vcombine.low %v1707, %v1715
        %v1733 = vcombine.high %v1707, %v1715
        %v1735 = vunpack.c.l.s4 1934713408
        %v1736 = vunpack.c.0.s8 %v1735
        %v1737 = vlaneseq
        %v1738 = vshrl.u32 %v1737, 7
        %v1739 = vsub.s32 %v1736, %v1738
        %v1740 = vrot.slane %v1732, %v1739
        %v1742 = vunpack.c.l.s4 1934713408
        %v1743 = vunpack.c.0.s8 %v1742
        %v1744 = vlaneseq
        %v1745 = vshrl.u32 %v1744, 7
        %v1746 = vsub.s32 %v1743, %v1745
        %v1747 = vrot.slane %v1733, %v1746
        %v1748 = vcombine.low %v1723, %v1731
        %v1749 = vcombine.high %v1723, %v1731
        %v1751 = vunpack.c.l.s4 1934713408
        %v1752 = vunpack.c.0.s8 %v1751
        %v1753 = vlaneseq
        %v1754 = vshrl.u32 %v1753, 7
        %v1755 = vsub.s32 %v1752, %v1754
        %v1756 = vrot.slane %v1748, %v1755
        %v1758 = vunpack.c.l.s4 1934713408
        %v1759 = vunpack.c.0.s8 %v1758
        %v1760 = vlaneseq
        %v1761 = vshrl.u32 %v1760, 7
        %v1762 = vsub.s32 %v1759, %v1761
        %v1763 = vrot.slane %v1749, %v1762
        %v1764 = vcombine.low %v1740, %v1756
        %v1765 = vcombine.high %v1740, %v1756
        %v1766 = vcombine.low %v1747, %v1763
        %v1767 = vcombine.high %v1747, %v1763
        %vm1768 = vcmask 64512
        %v1770 = vsel %vm1768, %v1472, 0
        %v1773 = vsel %vm1768, %v1618, 0
        %1775 = vmatprep.subr.mxu0 0.0
        %1776 = vmatpush1.xpose.msra.mxu0 %v1773
        %1777 = vmatprep.subr.mxu0 0.0
        %1778 = vmatpush1.xpose.msra.mxu0 0.0
        %1779 = vmatprep.subr.mxu0 0.0
        %1780 = vmatpush1.xpose.msra.mxu0 0.0
        %1781 = vmatprep.subr.mxu0 0.0
        %1782 = vmatpush1.xpose.msra.mxu0 0.0
        %1783 = vmatprep.subr.mxu0 0.0
        %1784 = vmatpush1.xpose.msra.mxu0 0.0
        %1785 = vmatprep.subr.mxu0 0.0
        %1786 = vmatpush1.xpose.msra.mxu0 0.0
        %1787 = vmatprep.subr.mxu0 0.0
        %1788 = vmatpush1.xpose.msra.mxu0 0.0
        %1789 = vmatprep.subr.mxu0 0.0
        %1790 = vmatpush1.xpose.msra.mxu0 0.0
        %1791 = vmatprep.subr.mxu0 0.0
        %1792 = vmatpush1.xpose.msra.mxu0 0.0
        %1793 = vmatprep.subr.mxu0 0.0
        %1794 = vmatpush1.xpose.msra.mxu0 0.0
        %1795 = vmatprep.subr.mxu0 0.0
        %1796 = vmatpush1.xpose.msra.mxu0 0.0
        %1797 = vmatprep.subr.mxu0 0.0
        %1798 = vmatpush1.xpose.msra.mxu0 0.0
        %1799 = vmatprep.subr.mxu0 0.0
        %1800 = vmatpush1.xpose.msra.mxu0 0.0
        %1801 = vmatprep.subr.mxu0 0.0
        %1802 = vmatpush1.xpose.msra.mxu0 0.0
        %1803 = vmatprep.subr.mxu0 0.0
        %1804 = vmatpush1.xpose.msra.mxu0 0.0
        %1805 = vmatprep.subr.mxu0 0.0
        %1806 = vmatpush1.xpose.msra.mxu0 0.0
        %1807 = vmatprep.subr.mxu0 0.0
        %1808 = vmatpush1.xpose.msra.mxu0 0.0
        %1809 = vmatprep.subr.mxu0 0.0
        %1810 = vmatpush1.xpose.msra.mxu0 0.0
        %1811 = vmatprep.subr.mxu0 0.0
        %1812 = vmatpush1.xpose.msra.mxu0 0.0
        %1813 = vmatprep.subr.mxu0 0.0
        %1814 = vmatpush1.xpose.msra.mxu0 0.0
        %1815 = vmatprep.subr.mxu0 0.0
        %1816 = vmatpush1.xpose.msra.mxu0 0.0
        %1817 = vmatprep.subr.mxu0 0.0
        %1818 = vmatpush1.xpose.msra.mxu0 0.0
        %1819 = vmatprep.subr.mxu0 0.0
        %1820 = vmatpush1.xpose.msra.mxu0 0.0
        %1821 = vmatprep.subr.mxu0 0.0
        %1822 = vmatpush1.xpose.msra.mxu0 0.0
        %1823 = vmatprep.subr.mxu0 0.0
        %1824 = vmatpush1.xpose.msra.mxu0 0.0
        %1825 = vmatprep.subr.mxu0 0.0
        %1826 = vmatpush1.xpose.msra.mxu0 0.0
        %1827 = vmatprep.subr.mxu0 0.0
        %1828 = vmatpush1.xpose.msra.mxu0 0.0
        %1829 = vmatprep.subr.mxu0 0.0
        %1830 = vmatpush1.xpose.msra.mxu0 0.0
        %1831 = vmatprep.subr.mxu0 0.0
        %1832 = vmatpush1.xpose.msra.mxu0 0.0
        %1833 = vmatprep.subr.mxu0 0.0
        %1834 = vmatpush1.xpose.msra.mxu0 0.0
        %1835 = vmatprep.subr.mxu0 0.0
        %1836 = vmatpush1.xpose.msra.mxu0 0.0
        %1837 = vmatprep.subr.mxu0 0.0
        %1838 = vmatpush1.xpose.msra.mxu0 0.0
        %1839 = vmatprep.mubr.f32.mxu0 0.0
        %1840 = vmatmul.mubr.f32.gmra.mrb[0].mxu0 %v1770
        %v1841 = vpop.f32.mrb[0].mxu0
        %v1842 = vadd.f32 0.0, %v1841
        %v1843 = vpop.f32.mrb[0].mxu0
        %1844 = vdwg.mxu0
        %v1846 = vsel %vm1768, %v1473, 0
        %v1849 = vsel %vm1768, %v1619, 0
        %1851 = vmatprep.subr.mxu0 0.0
        %1852 = vmatpush1.xpose.msra.mxu0 %v1849
        %1853 = vmatprep.subr.mxu0 0.0
        %1854 = vmatpush1.xpose.msra.mxu0 0.0
        %1855 = vmatprep.subr.mxu0 0.0
        %1856 = vmatpush1.xpose.msra.mxu0 0.0
        %1857 = vmatprep.subr.mxu0 0.0
        %1858 = vmatpush1.xpose.msra.mxu0 0.0
        %1859 = vmatprep.subr.mxu0 0.0
        %1860 = vmatpush1.xpose.msra.mxu0 0.0
        %1861 = vmatprep.subr.mxu0 0.0
        %1862 = vmatpush1.xpose.msra.mxu0 0.0
        %1863 = vmatprep.subr.mxu0 0.0
        %1864 = vmatpush1.xpose.msra.mxu0 0.0
        %1865 = vmatprep.subr.mxu0 0.0
        %1866 = vmatpush1.xpose.msra.mxu0 0.0
        %1867 = vmatprep.subr.mxu0 0.0
        %1868 = vmatpush1.xpose.msra.mxu0 0.0
        %1869 = vmatprep.subr.mxu0 0.0
        %1870 = vmatpush1.xpose.msra.mxu0 0.0
        %1871 = vmatprep.subr.mxu0 0.0
        %1872 = vmatpush1.xpose.msra.mxu0 0.0
        %1873 = vmatprep.subr.mxu0 0.0
        %1874 = vmatpush1.xpose.msra.mxu0 0.0
        %1875 = vmatprep.subr.mxu0 0.0
        %1876 = vmatpush1.xpose.msra.mxu0 0.0
        %1877 = vmatprep.subr.mxu0 0.0
        %1878 = vmatpush1.xpose.msra.mxu0 0.0
        %1879 = vmatprep.subr.mxu0 0.0
        %1880 = vmatpush1.xpose.msra.mxu0 0.0
        %1881 = vmatprep.subr.mxu0 0.0
        %1882 = vmatpush1.xpose.msra.mxu0 0.0
        %1883 = vmatprep.subr.mxu0 0.0
        %1884 = vmatpush1.xpose.msra.mxu0 0.0
        %1885 = vmatprep.subr.mxu0 0.0
        %1886 = vmatpush1.xpose.msra.mxu0 0.0
        %1887 = vmatprep.subr.mxu0 0.0
        %1888 = vmatpush1.xpose.msra.mxu0 0.0
        %1889 = vmatprep.subr.mxu0 0.0
        %1890 = vmatpush1.xpose.msra.mxu0 0.0
        %1891 = vmatprep.subr.mxu0 0.0
        %1892 = vmatpush1.xpose.msra.mxu0 0.0
        %1893 = vmatprep.subr.mxu0 0.0
        %1894 = vmatpush1.xpose.msra.mxu0 0.0
        %1895 = vmatprep.subr.mxu0 0.0
        %1896 = vmatpush1.xpose.msra.mxu0 0.0
        %1897 = vmatprep.subr.mxu0 0.0
        %1898 = vmatpush1.xpose.msra.mxu0 0.0
        %1899 = vmatprep.subr.mxu0 0.0
        %1900 = vmatpush1.xpose.msra.mxu0 0.0
        %1901 = vmatprep.subr.mxu0 0.0
        %1902 = vmatpush1.xpose.msra.mxu0 0.0
        %1903 = vmatprep.subr.mxu0 0.0
        %1904 = vmatpush1.xpose.msra.mxu0 0.0
        %1905 = vmatprep.subr.mxu0 0.0
        %1906 = vmatpush1.xpose.msra.mxu0 0.0
        %1907 = vmatprep.subr.mxu0 0.0
        %1908 = vmatpush1.xpose.msra.mxu0 0.0
        %1909 = vmatprep.subr.mxu0 0.0
        %1910 = vmatpush1.xpose.msra.mxu0 0.0
        %1911 = vmatprep.subr.mxu0 0.0
        %1912 = vmatpush1.xpose.msra.mxu0 0.0
        %1913 = vmatprep.subr.mxu0 0.0
        %1914 = vmatpush1.xpose.msra.mxu0 0.0
        %1915 = vmatprep.mubr.f32.mxu0 0.0
        %1916 = vmatmul.mubr.f32.gmra.mrb[0].mxu0 %v1846
        %v1917 = vpop.f32.mrb[0].mxu0
        %v1918 = vadd.f32 0.0, %v1917
        %v1919 = vpop.f32.mrb[0].mxu0
        %1920 = vdwg.mxu0
        %v1922 = vsel %vm1768, %v1474, 0
        %v1925 = vsel %vm1768, %v1620, 0
        %1927 = vmatprep.subr.mxu0 0.0
        %1928 = vmatpush1.xpose.msra.mxu0 %v1925
        %1929 = vmatprep.subr.mxu0 0.0
        %1930 = vmatpush1.xpose.msra.mxu0 0.0
        %1931 = vmatprep.subr.mxu0 0.0
        %1932 = vmatpush1.xpose.msra.mxu0 0.0
        %1933 = vmatprep.subr.mxu0 0.0
        %1934 = vmatpush1.xpose.msra.mxu0 0.0
        %1935 = vmatprep.subr.mxu0 0.0
        %1936 = vmatpush1.xpose.msra.mxu0 0.0
        %1937 = vmatprep.subr.mxu0 0.0
        %1938 = vmatpush1.xpose.msra.mxu0 0.0
        %1939 = vmatprep.subr.mxu0 0.0
        %1940 = vmatpush1.xpose.msra.mxu0 0.0
        %1941 = vmatprep.subr.mxu0 0.0
        %1942 = vmatpush1.xpose.msra.mxu0 0.0
        %1943 = vmatprep.subr.mxu0 0.0
        %1944 = vmatpush1.xpose.msra.mxu0 0.0
        %1945 = vmatprep.subr.mxu0 0.0
        %1946 = vmatpush1.xpose.msra.mxu0 0.0
        %1947 = vmatprep.subr.mxu0 0.0
        %1948 = vmatpush1.xpose.msra.mxu0 0.0
        %1949 = vmatprep.subr.mxu0 0.0
        %1950 = vmatpush1.xpose.msra.mxu0 0.0
        %1951 = vmatprep.subr.mxu0 0.0
        %1952 = vmatpush1.xpose.msra.mxu0 0.0
        %1953 = vmatprep.subr.mxu0 0.0
        %1954 = vmatpush1.xpose.msra.mxu0 0.0
        %1955 = vmatprep.subr.mxu0 0.0
        %1956 = vmatpush1.xpose.msra.mxu0 0.0
        %1957 = vmatprep.subr.mxu0 0.0
        %1958 = vmatpush1.xpose.msra.mxu0 0.0
        %1959 = vmatprep.subr.mxu0 0.0
        %1960 = vmatpush1.xpose.msra.mxu0 0.0
        %1961 = vmatprep.subr.mxu0 0.0
        %1962 = vmatpush1.xpose.msra.mxu0 0.0
        %1963 = vmatprep.subr.mxu0 0.0
        %1964 = vmatpush1.xpose.msra.mxu0 0.0
        %1965 = vmatprep.subr.mxu0 0.0
        %1966 = vmatpush1.xpose.msra.mxu0 0.0
        %1967 = vmatprep.subr.mxu0 0.0
        %1968 = vmatpush1.xpose.msra.mxu0 0.0
        %1969 = vmatprep.subr.mxu0 0.0
        %1970 = vmatpush1.xpose.msra.mxu0 0.0
        %1971 = vmatprep.subr.mxu0 0.0
        %1972 = vmatpush1.xpose.msra.mxu0 0.0
        %1973 = vmatprep.subr.mxu0 0.0
        %1974 = vmatpush1.xpose.msra.mxu0 0.0
        %1975 = vmatprep.subr.mxu0 0.0
        %1976 = vmatpush1.xpose.msra.mxu0 0.0
        %1977 = vmatprep.subr.mxu0 0.0
        %1978 = vmatpush1.xpose.msra.mxu0 0.0
        %1979 = vmatprep.subr.mxu0 0.0
        %1980 = vmatpush1.xpose.msra.mxu0 0.0
        %1981 = vmatprep.subr.mxu0 0.0
        %1982 = vmatpush1.xpose.msra.mxu0 0.0
        %1983 = vmatprep.subr.mxu0 0.0
        %1984 = vmatpush1.xpose.msra.mxu0 0.0
        %1985 = vmatprep.subr.mxu0 0.0
        %1986 = vmatpush1.xpose.msra.mxu0 0.0
        %1987 = vmatprep.subr.mxu0 0.0
        %1988 = vmatpush1.xpose.msra.mxu0 0.0
        %1989 = vmatprep.subr.mxu0 0.0
        %1990 = vmatpush1.xpose.msra.mxu0 0.0
        %1991 = vmatprep.mubr.f32.mxu0 0.0
        %1992 = vmatmul.mubr.f32.gmra.mrb[0].mxu0 %v1922
        %v1993 = vpop.f32.mrb[0].mxu0
        %v1994 = vadd.f32 0.0, %v1993
        %v1995 = vpop.f32.mrb[0].mxu0
        %1996 = vdwg.mxu0
        %v1998 = vsel %vm1768, %v1475, 0
        %v2001 = vsel %vm1768, %v1621, 0
        %2003 = vmatprep.subr.mxu0 0.0
        %2004 = vmatpush1.xpose.msra.mxu0 %v2001
        %2005 = vmatprep.subr.mxu0 0.0
        %2006 = vmatpush1.xpose.msra.mxu0 0.0
        %2007 = vmatprep.subr.mxu0 0.0
        %2008 = vmatpush1.xpose.msra.mxu0 0.0
        %2009 = vmatprep.subr.mxu0 0.0
        %2010 = vmatpush1.xpose.msra.mxu0 0.0
        %2011 = vmatprep.subr.mxu0 0.0
        %2012 = vmatpush1.xpose.msra.mxu0 0.0
        %2013 = vmatprep.subr.mxu0 0.0
        %2014 = vmatpush1.xpose.msra.mxu0 0.0
        %2015 = vmatprep.subr.mxu0 0.0
        %2016 = vmatpush1.xpose.msra.mxu0 0.0
        %2017 = vmatprep.subr.mxu0 0.0
        %2018 = vmatpush1.xpose.msra.mxu0 0.0
        %2019 = vmatprep.subr.mxu0 0.0
        %2020 = vmatpush1.xpose.msra.mxu0 0.0
        %2021 = vmatprep.subr.mxu0 0.0
        %2022 = vmatpush1.xpose.msra.mxu0 0.0
        %2023 = vmatprep.subr.mxu0 0.0
        %2024 = vmatpush1.xpose.msra.mxu0 0.0
        %2025 = vmatprep.subr.mxu0 0.0
        %2026 = vmatpush1.xpose.msra.mxu0 0.0
        %2027 = vmatprep.subr.mxu0 0.0
        %2028 = vmatpush1.xpose.msra.mxu0 0.0
        %2029 = vmatprep.subr.mxu0 0.0
        %2030 = vmatpush1.xpose.msra.mxu0 0.0
        %2031 = vmatprep.subr.mxu0 0.0
        %2032 = vmatpush1.xpose.msra.mxu0 0.0
        %2033 = vmatprep.subr.mxu0 0.0
        %2034 = vmatpush1.xpose.msra.mxu0 0.0
        %2035 = vmatprep.subr.mxu0 0.0
        %2036 = vmatpush1.xpose.msra.mxu0 0.0
        %2037 = vmatprep.subr.mxu0 0.0
        %2038 = vmatpush1.xpose.msra.mxu0 0.0
        %2039 = vmatprep.subr.mxu0 0.0
        %2040 = vmatpush1.xpose.msra.mxu0 0.0
        %2041 = vmatprep.subr.mxu0 0.0
        %2042 = vmatpush1.xpose.msra.mxu0 0.0
        %2043 = vmatprep.subr.mxu0 0.0
        %2044 = vmatpush1.xpose.msra.mxu0 0.0
        %2045 = vmatprep.subr.mxu0 0.0
        %2046 = vmatpush1.xpose.msra.mxu0 0.0
        %2047 = vmatprep.subr.mxu0 0.0
        %2048 = vmatpush1.xpose.msra.mxu0 0.0
        %2049 = vmatprep.subr.mxu0 0.0
        %2050 = vmatpush1.xpose.msra.mxu0 0.0
        %2051 = vmatprep.subr.mxu0 0.0
        %2052 = vmatpush1.xpose.msra.mxu0 0.0
        %2053 = vmatprep.subr.mxu0 0.0
        %2054 = vmatpush1.xpose.msra.mxu0 0.0
        %2055 = vmatprep.subr.mxu0 0.0
        %2056 = vmatpush1.xpose.msra.mxu0 0.0
        %2057 = vmatprep.subr.mxu0 0.0
        %2058 = vmatpush1.xpose.msra.mxu0 0.0
        %2059 = vmatprep.subr.mxu0 0.0
        %2060 = vmatpush1.xpose.msra.mxu0 0.0
        %2061 = vmatprep.subr.mxu0 0.0
        %2062 = vmatpush1.xpose.msra.mxu0 0.0
        %2063 = vmatprep.subr.mxu0 0.0
        %2064 = vmatpush1.xpose.msra.mxu0 0.0
        %2065 = vmatprep.subr.mxu0 0.0
        %2066 = vmatpush1.xpose.msra.mxu0 0.0
        %2067 = vmatprep.mubr.f32.mxu0 0.0
        %2068 = vmatmul.mubr.f32.gmra.mrb[0].mxu0 %v1998
        %v2069 = vpop.f32.mrb[0].mxu0
        %v2070 = vadd.f32 0.0, %v2069
        %v2071 = vpop.f32.mrb[0].mxu0
        %2072 = vdwg.mxu0
        %v2073 = vsel %vm1768, %v1842, -inf
        %2074 = vmax.xlane.f32.xlu0 %v2073
        %v2075 = vpop.xlane.xlu0 %2074
        %v2076 = vsel %vm1768, %v1918, -inf
        %2077 = vmax.xlane.f32.xlu0 %v2076
        %v2078 = vpop.xlane.xlu0 %2077
        %v2079 = vsel %vm1768, %v1994, -inf
        %2080 = vmax.xlane.f32.xlu0 %v2079
        %v2081 = vpop.xlane.xlu0 %2080
        %v2082 = vsel %vm1768, %v2070, -inf
        %2083 = vmax.xlane.f32.xlu0 %v2082
        %v2084 = vpop.xlane.xlu0 %2083
        %v2085 = vsub.f32 %v1842, %v2075
        %v2086 = vsub.f32 %v1918, %v2078
        %v2087 = vsub.f32 %v1994, %v2081
        %v2088 = vsub.f32 %v2070, %v2084
        %v2089 = vmul.f32 %v2085, 1.442695
        %v2090 = vpow.pop %v2089
        %v2091 = vmul.f32 %v2086, 1.442695
        %v2092 = vpow.pop %v2091
        %v2093 = vmul.f32 %v2087, 1.442695
        %v2094 = vpow.pop %v2093
        %v2095 = vmul.f32 %v2088, 1.442695
        %v2096 = vpow.pop %v2095
        %v2097 = vsel %vm1768, %v2090, 0.0
        %2098 = vadd.xlane.f32.xlu0 %v2097
        %v2099 = vpop.xlane.xlu0 %2098
        %v2100 = vsel %vm1768, %v2092, 0.0
        %2101 = vadd.xlane.f32.xlu0 %v2100
        %v2102 = vpop.xlane.xlu0 %2101
        %v2103 = vsel %vm1768, %v2094, 0.0
        %2104 = vadd.xlane.f32.xlu0 %v2103
        %v2105 = vpop.xlane.xlu0 %2104
        %v2106 = vsel %vm1768, %v2096, 0.0
        %2107 = vadd.xlane.f32.xlu0 %v2106
        %v2108 = vpop.xlane.xlu0 %2107
        %v2109 = vrcp.pop %v2099
        %v2110 = vrcp.pop %v2102
        %v2111 = vrcp.pop %v2105
        %v2112 = vrcp.pop %v2108
        %v2113 = vmul.f32 %v2090, %v2109
        %v2114 = vmul.f32 %v2092, %v2110
        %v2115 = vmul.f32 %v2094, %v2111
        %v2116 = vmul.f32 %v2096, %v2112
        %v2118 = vsel %vm1768, %v2113, 0
        %2120 = vmatprep.subr.mxu0 0.0
        %2121 = vmatpush1.msra.mxu0 %v1764
        %2122 = vmatprep.subr.mxu0 0.0
        %2123 = vmatpush1.msra.mxu0 0.0
        %2124 = vmatprep.subr.mxu0 0.0
        %2125 = vmatpush1.msra.mxu0 0.0
        %2126 = vmatprep.subr.mxu0 0.0
        %2127 = vmatpush1.msra.mxu0 0.0
        %2128 = vmatprep.subr.mxu0 0.0
        %2129 = vmatpush1.msra.mxu0 0.0
        %2130 = vmatprep.subr.mxu0 0.0
        %2131 = vmatpush1.msra.mxu0 0.0
        %2132 = vmatprep.subr.mxu0 0.0
        %2133 = vmatpush1.msra.mxu0 0.0
        %2134 = vmatprep.subr.mxu0 0.0
        %2135 = vmatpush1.msra.mxu0 0.0
        %2136 = vmatprep.subr.mxu0 0.0
        %2137 = vmatpush1.msra.mxu0 0.0
        %2138 = vmatprep.subr.mxu0 0.0
        %2139 = vmatpush1.msra.mxu0 0.0
        %2140 = vmatprep.subr.mxu0 0.0
        %2141 = vmatpush1.msra.mxu0 0.0
        %2142 = vmatprep.subr.mxu0 0.0
        %2143 = vmatpush1.msra.mxu0 0.0
        %2144 = vmatprep.subr.mxu0 0.0
        %2145 = vmatpush1.msra.mxu0 0.0
        %2146 = vmatprep.subr.mxu0 0.0
        %2147 = vmatpush1.msra.mxu0 0.0
        %2148 = vmatprep.subr.mxu0 0.0
        %2149 = vmatpush1.msra.mxu0 0.0
        %2150 = vmatprep.subr.mxu0 0.0
        %2151 = vmatpush1.msra.mxu0 0.0
        %2152 = vmatprep.subr.mxu0 0.0
        %2153 = vmatpush1.msra.mxu0 0.0
        %2154 = vmatprep.subr.mxu0 0.0
        %2155 = vmatpush1.msra.mxu0 0.0
        %2156 = vmatprep.subr.mxu0 0.0
        %2157 = vmatpush1.msra.mxu0 0.0
        %2158 = vmatprep.subr.mxu0 0.0
        %2159 = vmatpush1.msra.mxu0 0.0
        %2160 = vmatprep.subr.mxu0 0.0
        %2161 = vmatpush1.msra.mxu0 0.0
        %2162 = vmatprep.subr.mxu0 0.0
        %2163 = vmatpush1.msra.mxu0 0.0
        %2164 = vmatprep.subr.mxu0 0.0
        %2165 = vmatpush1.msra.mxu0 0.0
        %2166 = vmatprep.subr.mxu0 0.0
        %2167 = vmatpush1.msra.mxu0 0.0
        %2168 = vmatprep.subr.mxu0 0.0
        %2169 = vmatpush1.msra.mxu0 0.0
        %2170 = vmatprep.subr.mxu0 0.0
        %2171 = vmatpush1.msra.mxu0 0.0
        %2172 = vmatprep.subr.mxu0 0.0
        %2173 = vmatpush1.msra.mxu0 0.0
        %2174 = vmatprep.subr.mxu0 0.0
        %2175 = vmatpush1.msra.mxu0 0.0
        %2176 = vmatprep.subr.mxu0 0.0
        %2177 = vmatpush1.msra.mxu0 0.0
        %2178 = vmatprep.subr.mxu0 0.0
        %2179 = vmatpush1.msra.mxu0 0.0
        %2180 = vmatprep.subr.mxu0 0.0
        %2181 = vmatpush1.msra.mxu0 0.0
        %2182 = vmatprep.subr.mxu0 0.0
        %2183 = vmatpush1.msra.mxu0 0.0
        %2184 = vmatprep.mubr.f32.mxu0 0.0
        %2185 = vmatmul.mubr.f32.gmra.mrb[0].mxu0 %v2118
        %v2186 = vpop.f32.mrb[0].mxu0
        %v2187 = vadd.f32 0.0, %v2186
        %v2188 = vpop.f32.mrb[0].mxu0
        %2189 = vdwg.mxu0
        %v2191 = vsel %vm1768, %v2114, 0
        %2193 = vmatprep.subr.mxu0 0.0
        %2194 = vmatpush1.msra.mxu0 %v1765
        %2195 = vmatprep.subr.mxu0 0.0
        %2196 = vmatpush1.msra.mxu0 0.0
        %2197 = vmatprep.subr.mxu0 0.0
        %2198 = vmatpush1.msra.mxu0 0.0
        %2199 = vmatprep.subr.mxu0 0.0
        %2200 = vmatpush1.msra.mxu0 0.0
        %2201 = vmatprep.subr.mxu0 0.0
        %2202 = vmatpush1.msra.mxu0 0.0
        %2203 = vmatprep.subr.mxu0 0.0
        %2204 = vmatpush1.msra.mxu0 0.0
        %2205 = vmatprep.subr.mxu0 0.0
        %2206 = vmatpush1.msra.mxu0 0.0
        %2207 = vmatprep.subr.mxu0 0.0
        %2208 = vmatpush1.msra.mxu0 0.0
        %2209 = vmatprep.subr.mxu0 0.0
        %2210 = vmatpush1.msra.mxu0 0.0
        %2211 = vmatprep.subr.mxu0 0.0
        %2212 = vmatpush1.msra.mxu0 0.0
        %2213 = vmatprep.subr.mxu0 0.0
        %2214 = vmatpush1.msra.mxu0 0.0
        %2215 = vmatprep.subr.mxu0 0.0
        %2216 = vmatpush1.msra.mxu0 0.0
        %2217 = vmatprep.subr.mxu0 0.0
        %2218 = vmatpush1.msra.mxu0 0.0
        %2219 = vmatprep.subr.mxu0 0.0
        %2220 = vmatpush1.msra.mxu0 0.0
        %2221 = vmatprep.subr.mxu0 0.0
        %2222 = vmatpush1.msra.mxu0 0.0
        %2223 = vmatprep.subr.mxu0 0.0
        %2224 = vmatpush1.msra.mxu0 0.0
        %2225 = vmatprep.subr.mxu0 0.0
        %2226 = vmatpush1.msra.mxu0 0.0
        %2227 = vmatprep.subr.mxu0 0.0
        %2228 = vmatpush1.msra.mxu0 0.0
        %2229 = vmatprep.subr.mxu0 0.0
        %2230 = vmatpush1.msra.mxu0 0.0
        %2231 = vmatprep.subr.mxu0 0.0
        %2232 = vmatpush1.msra.mxu0 0.0
        %2233 = vmatprep.subr.mxu0 0.0
        %2234 = vmatpush1.msra.mxu0 0.0
        %2235 = vmatprep.subr.mxu0 0.0
        %2236 = vmatpush1.msra.mxu0 0.0
        %2237 = vmatprep.subr.mxu0 0.0
        %2238 = vmatpush1.msra.mxu0 0.0
        %2239 = vmatprep.subr.mxu0 0.0
        %2240 = vmatpush1.msra.mxu0 0.0
        %2241 = vmatprep.subr.mxu0 0.0
        %2242 = vmatpush1.msra.mxu0 0.0
        %2243 = vmatprep.subr.mxu0 0.0
        %2244 = vmatpush1.msra.mxu0 0.0
        %2245 = vmatprep.subr.mxu0 0.0
        %2246 = vmatpush1.msra.mxu0 0.0
        %2247 = vmatprep.subr.mxu0 0.0
        %2248 = vmatpush1.msra.mxu0 0.0
        %2249 = vmatprep.subr.mxu0 0.0
        %2250 = vmatpush1.msra.mxu0 0.0
        %2251 = vmatprep.subr.mxu0 0.0
        %2252 = vmatpush1.msra.mxu0 0.0
        %2253 = vmatprep.subr.mxu0 0.0
        %2254 = vmatpush1.msra.mxu0 0.0
        %2255 = vmatprep.subr.mxu0 0.0
        %2256 = vmatpush1.msra.mxu0 0.0
        %2257 = vmatprep.mubr.f32.mxu0 0.0
        %2258 = vmatmul.mubr.f32.gmra.mrb[0].mxu0 %v2191
        %v2259 = vpop.f32.mrb[0].mxu0
        %v2260 = vadd.f32 0.0, %v2259
        %v2261 = vpop.f32.mrb[0].mxu0
        %2262 = vdwg.mxu0
        %v2264 = vsel %vm1768, %v2115, 0
        %2266 = vmatprep.subr.mxu0 0.0
        %2267 = vmatpush1.msra.mxu0 %v1766
        %2268 = vmatprep.subr.mxu0 0.0
        %2269 = vmatpush1.msra.mxu0 0.0
        %2270 = vmatprep.subr.mxu0 0.0
        %2271 = vmatpush1.msra.mxu0 0.0
        %2272 = vmatprep.subr.mxu0 0.0
        %2273 = vmatpush1.msra.mxu0 0.0
        %2274 = vmatprep.subr.mxu0 0.0
        %2275 = vmatpush1.msra.mxu0 0.0
        %2276 = vmatprep.subr.mxu0 0.0
        %2277 = vmatpush1.msra.mxu0 0.0
        %2278 = vmatprep.subr.mxu0 0.0
        %2279 = vmatpush1.msra.mxu0 0.0
        %2280 = vmatprep.subr.mxu0 0.0
        %2281 = vmatpush1.msra.mxu0 0.0
        %2282 = vmatprep.subr.mxu0 0.0
        %2283 = vmatpush1.msra.mxu0 0.0
        %2284 = vmatprep.subr.mxu0 0.0
        %2285 = vmatpush1.msra.mxu0 0.0
        %2286 = vmatprep.subr.mxu0 0.0
        %2287 = vmatpush1.msra.mxu0 0.0
        %2288 = vmatprep.subr.mxu0 0.0
        %2289 = vmatpush1.msra.mxu0 0.0
        %2290 = vmatprep.subr.mxu0 0.0
        %2291 = vmatpush1.msra.mxu0 0.0
        %2292 = vmatprep.subr.mxu0 0.0
        %2293 = vmatpush1.msra.mxu0 0.0
        %2294 = vmatprep.subr.mxu0 0.0
        %2295 = vmatpush1.msra.mxu0 0.0
        %2296 = vmatprep.subr.mxu0 0.0
        %2297 = vmatpush1.msra.mxu0 0.0
        %2298 = vmatprep.subr.mxu0 0.0
        %2299 = vmatpush1.msra.mxu0 0.0
        %2300 = vmatprep.subr.mxu0 0.0
        %2301 = vmatpush1.msra.mxu0 0.0
        %2302 = vmatprep.subr.mxu0 0.0
        %2303 = vmatpush1.msra.mxu0 0.0
        %2304 = vmatprep.subr.mxu0 0.0
        %2305 = vmatpush1.msra.mxu0 0.0
        %2306 = vmatprep.subr.mxu0 0.0
        %2307 = vmatpush1.msra.mxu0 0.0
        %2308 = vmatprep.subr.mxu0 0.0
        %2309 = vmatpush1.msra.mxu0 0.0
        %2310 = vmatprep.subr.mxu0 0.0
        %2311 = vmatpush1.msra.mxu0 0.0
        %2312 = vmatprep.subr.mxu0 0.0
        %2313 = vmatpush1.msra.mxu0 0.0
        %2314 = vmatprep.subr.mxu0 0.0
        %2315 = vmatpush1.msra.mxu0 0.0
        %2316 = vmatprep.subr.mxu0 0.0
        %2317 = vmatpush1.msra.mxu0 0.0
        %2318 = vmatprep.subr.mxu0 0.0
        %2319 = vmatpush1.msra.mxu0 0.0
        %2320 = vmatprep.subr.mxu0 0.0
        %2321 = vmatpush1.msra.mxu0 0.0
        %2322 = vmatprep.subr.mxu0 0.0
        %2323 = vmatpush1.msra.mxu0 0.0
        %2324 = vmatprep.subr.mxu0 0.0
        %2325 = vmatpush1.msra.mxu0 0.0
        %2326 = vmatprep.subr.mxu0 0.0
        %2327 = vmatpush1.msra.mxu0 0.0
        %2328 = vmatprep.subr.mxu0 0.0
        %2329 = vmatpush1.msra.mxu0 0.0
        %2330 = vmatprep.mubr.f32.mxu0 0.0
        %2331 = vmatmul.mubr.f32.gmra.mrb[0].mxu0 %v2264
        %v2332 = vpop.f32.mrb[0].mxu0
        %v2333 = vadd.f32 0.0, %v2332
        %v2334 = vpop.f32.mrb[0].mxu0
        %2335 = vdwg.mxu0
        %v2337 = vsel %vm1768, %v2116, 0
        %2339 = vmatprep.subr.mxu0 0.0
        %2340 = vmatpush1.msra.mxu0 %v1767
        %2341 = vmatprep.subr.mxu0 0.0
        %2342 = vmatpush1.msra.mxu0 0.0
        %2343 = vmatprep.subr.mxu0 0.0
        %2344 = vmatpush1.msra.mxu0 0.0
        %2345 = vmatprep.subr.mxu0 0.0
        %2346 = vmatpush1.msra.mxu0 0.0
        %2347 = vmatprep.subr.mxu0 0.0
        %2348 = vmatpush1.msra.mxu0 0.0
        %2349 = vmatprep.subr.mxu0 0.0
        %2350 = vmatpush1.msra.mxu0 0.0
        %2351 = vmatprep.subr.mxu0 0.0
        %2352 = vmatpush1.msra.mxu0 0.0
        %2353 = vmatprep.subr.mxu0 0.0
        %2354 = vmatpush1.msra.mxu0 0.0
        %2355 = vmatprep.subr.mxu0 0.0
        %2356 = vmatpush1.msra.mxu0 0.0
        %2357 = vmatprep.subr.mxu0 0.0
        %2358 = vmatpush1.msra.mxu0 0.0
        %2359 = vmatprep.subr.mxu0 0.0
        %2360 = vmatpush1.msra.mxu0 0.0
        %2361 = vmatprep.subr.mxu0 0.0
        %2362 = vmatpush1.msra.mxu0 0.0
        %2363 = vmatprep.subr.mxu0 0.0
        %2364 = vmatpush1.msra.mxu0 0.0
        %2365 = vmatprep.subr.mxu0 0.0
        %2366 = vmatpush1.msra.mxu0 0.0
        %2367 = vmatprep.subr.mxu0 0.0
        %2368 = vmatpush1.msra.mxu0 0.0
        %2369 = vmatprep.subr.mxu0 0.0
        %2370 = vmatpush1.msra.mxu0 0.0
        %2371 = vmatprep.subr.mxu0 0.0
        %2372 = vmatpush1.msra.mxu0 0.0
        %2373 = vmatprep.subr.mxu0 0.0
        %2374 = vmatpush1.msra.mxu0 0.0
        %2375 = vmatprep.subr.mxu0 0.0
        %2376 = vmatpush1.msra.mxu0 0.0
        %2377 = vmatprep.subr.mxu0 0.0
        %2378 = vmatpush1.msra.mxu0 0.0
        %2379 = vmatprep.subr.mxu0 0.0
        %2380 = vmatpush1.msra.mxu0 0.0
        %2381 = vmatprep.subr.mxu0 0.0
        %2382 = vmatpush1.msra.mxu0 0.0
        %2383 = vmatprep.subr.mxu0 0.0
        %2384 = vmatpush1.msra.mxu0 0.0
        %2385 = vmatprep.subr.mxu0 0.0
        %2386 = vmatpush1.msra.mxu0 0.0
        %2387 = vmatprep.subr.mxu0 0.0
        %2388 = vmatpush1.msra.mxu0 0.0
        %2389 = vmatprep.subr.mxu0 0.0
        %2390 = vmatpush1.msra.mxu0 0.0
        %2391 = vmatprep.subr.mxu0 0.0
        %2392 = vmatpush1.msra.mxu0 0.0
        %2393 = vmatprep.subr.mxu0 0.0
        %2394 = vmatpush1.msra.mxu0 0.0
        %2395 = vmatprep.subr.mxu0 0.0
        %2396 = vmatpush1.msra.mxu0 0.0
        %2397 = vmatprep.subr.mxu0 0.0
        %2398 = vmatpush1.msra.mxu0 0.0
        %2399 = vmatprep.subr.mxu0 0.0
        %2400 = vmatpush1.msra.mxu0 0.0
        %2401 = vmatprep.subr.mxu0 0.0
        %2402 = vmatpush1.msra.mxu0 0.0
        %2403 = vmatprep.mubr.f32.mxu0 0.0
        %2404 = vmatmul.mubr.f32.gmra.mrb[0].mxu0 %v2337
        %v2405 = vpop.f32.mrb[0].mxu0
        %v2406 = vadd.f32 0.0, %v2405
        %v2407 = vpop.f32.mrb[0].mxu0
        %2408 = vdwg.mxu0
        %v2409 = vcombine.low %v2187, %v2333
        %v2410 = vcombine.high %v2187, %v2333
        %v2412 = vunpack.c.l.s4 1983009808
        %v2413 = vunpack.c.0.s8 %v2412
        %v2414 = vlaneseq
        %v2415 = vshrl.u32 %v2414, 7
        %v2416 = vsub.s32 %v2413, %v2415
        %v2417 = vrot.slane %v2409, %v2416
        %v2419 = vunpack.c.l.s4 1983009808
        %v2420 = vunpack.c.0.s8 %v2419
        %v2421 = vlaneseq
        %v2422 = vshrl.u32 %v2421, 7
        %v2423 = vsub.s32 %v2420, %v2422
        %v2424 = vrot.slane %v2410, %v2423
        %v2425 = vcombine.low %v2260, %v2406
        %v2426 = vcombine.high %v2260, %v2406
        %v2428 = vunpack.c.l.s4 1983009808
        %v2429 = vunpack.c.0.s8 %v2428
        %v2430 = vlaneseq
        %v2431 = vshrl.u32 %v2430, 7
        %v2432 = vsub.s32 %v2429, %v2431
        %v2433 = vrot.slane %v2425, %v2432
        %v2435 = vunpack.c.l.s4 1983009808
        %v2436 = vunpack.c.0.s8 %v2435
        %v2437 = vlaneseq
        %v2438 = vshrl.u32 %v2437, 7
        %v2439 = vsub.s32 %v2436, %v2438
        %v2440 = vrot.slane %v2426, %v2439
        %v2441 = vcombine.low %v2417, %v2433
        %v2442 = vcombine.high %v2417, %v2433
        %v2444 = vunpack.c.l.s4 1934713408
        %v2445 = vunpack.c.0.s8 %v2444
        %v2446 = vlaneseq
        %v2447 = vshrl.u32 %v2446, 7
        %v2448 = vsub.s32 %v2445, %v2447
        %v2449 = vrot.slane %v2441, %v2448
        %v2451 = vunpack.c.l.s4 1934713408
        %v2452 = vunpack.c.0.s8 %v2451
        %v2453 = vlaneseq
        %v2454 = vshrl.u32 %v2453, 7
        %v2455 = vsub.s32 %v2452, %v2454
        %v2456 = vrot.slane %v2442, %v2455
        %v2457 = vcombine.low %v2424, %v2440
        %v2458 = vcombine.high %v2424, %v2440
        %v2460 = vunpack.c.l.s4 1934713408
        %v2461 = vunpack.c.0.s8 %v2460
        %v2462 = vlaneseq
        %v2463 = vshrl.u32 %v2462, 7
        %v2464 = vsub.s32 %v2461, %v2463
        %v2465 = vrot.slane %v2457, %v2464
        %v2467 = vunpack.c.l.s4 1934713408
        %v2468 = vunpack.c.0.s8 %v2467
        %v2469 = vlaneseq
        %v2470 = vshrl.u32 %v2469, 7
        %v2471 = vsub.s32 %v2468, %v2470
        %v2472 = vrot.slane %v2458, %v2471
        %v2473 = vcombine.high %v2449, 0.0
        %v2474 = vcombine.high %v2456, 0.0
        %v2475 = vcombine.high %v2465, 0.0
        %v2476 = vcombine.high %v2472, 0.0
        %v2477 = vcombine.low %v2449, %v2456
        %v2479 = vunpack.c.l.s4 1983009808
        %v2480 = vunpack.c.0.s8 %v2479
        %v2481 = vlaneseq
        %v2482 = vshrl.u32 %v2481, 7
        %v2483 = vsub.s32 %v2480, %v2482
        %v2484 = vrot.slane %v2477, %v2483
        %v2485 = vcombine.low %v2473, %v2474
        %v2487 = vunpack.c.l.s4 1983009808
        %v2488 = vunpack.c.0.s8 %v2487
        %v2489 = vlaneseq
        %v2490 = vshrl.u32 %v2489, 7
        %v2491 = vsub.s32 %v2488, %v2490
        %v2492 = vrot.slane %v2485, %v2491
        %v2493 = vcombine.low %v2465, %v2472
        %v2495 = vunpack.c.l.s4 1983009808
        %v2496 = vunpack.c.0.s8 %v2495
        %v2497 = vlaneseq
        %v2498 = vshrl.u32 %v2497, 7
        %v2499 = vsub.s32 %v2496, %v2498
        %v2500 = vrot.slane %v2493, %v2499
        %v2501 = vcombine.low %v2475, %v2476
        %v2503 = vunpack.c.l.s4 1983009808
        %v2504 = vunpack.c.0.s8 %v2503
        %v2505 = vlaneseq
        %v2506 = vshrl.u32 %v2505, 7
        %v2507 = vsub.s32 %v2504, %v2506
        %v2508 = vrot.slane %v2501, %v2507
        %v2509 = vcombine.low %v2484, %v2492
        %v2510 = vcombine.high %v2484, %v2492
        %v2512 = vunpack.c.l.s4 1934713408
        %v2513 = vunpack.c.0.s8 %v2512
        %v2514 = vlaneseq
        %v2515 = vshrl.u32 %v2514, 7
        %v2516 = vsub.s32 %v2513, %v2515
        %v2517 = vrot.slane %v2509, %v2516
        %v2519 = vunpack.c.l.s4 1934713408
        %v2520 = vunpack.c.0.s8 %v2519
        %v2521 = vlaneseq
        %v2522 = vshrl.u32 %v2521, 7
        %v2523 = vsub.s32 %v2520, %v2522
        %v2524 = vrot.slane %v2510, %v2523
        %v2525 = vcombine.low %v2500, %v2508
        %v2526 = vcombine.high %v2500, %v2508
        %v2528 = vunpack.c.l.s4 1934713408
        %v2529 = vunpack.c.0.s8 %v2528
        %v2530 = vlaneseq
        %v2531 = vshrl.u32 %v2530, 7
        %v2532 = vsub.s32 %v2529, %v2531
        %v2533 = vrot.slane %v2525, %v2532
        %v2535 = vunpack.c.l.s4 1934713408
        %v2536 = vunpack.c.0.s8 %v2535
        %v2537 = vlaneseq
        %v2538 = vshrl.u32 %v2537, 7
        %v2539 = vsub.s32 %v2536, %v2538
        %v2540 = vrot.slane %v2526, %v2539
        %v2541 = vcombine.low %v2517, %v2533
        %v2542 = vcombine.high %v2517, %v2533
        %v2543 = vcombine.low %v2524, %v2540
        %v2544 = vcombine.high %v2524, %v2540
        %2546 = vrot.lane.b32.xlu0 %v2542, 8
        %v2547 = vpop.permute.xlu0 %2546
        %2550 = vrot.lane.b32.xlu0 %v2543, 16
        %v2551 = vpop.permute.xlu0 %2550
        %2554 = vrot.lane.b32.xlu0 %v2544, 24
        %v2555 = vpop.permute.xlu0 %2554
        %v2557 = vsel %vm1768, %v2541, %v2547
        %vm2558 = vcmask 130048
        %v2559 = vsel %vm2558, %v2557, %v2551
        %vm2560 = vcmask 195584
        %v2561 = vsel %vm2560, %v2559, %v2555
        %v2562 = vld [vmem:[%s963] sm:$0xff]
        %v2563 = vld [vmem:[%s963 + $0x8] sm:$0xff]
        %v2564 = vld [vmem:[%s963 + $0x10] sm:$0xff]
        %v2565 = vld [vmem:[%s963 + $0x18] sm:$0xff]
        %v2566 = vld [vmem:[%s818] sm:$0x1]
        %v2568 = vlaneseq
        %v2569 = vshrl.u32 %v2568, 7
        %v2570 = vsub.s32 0, %v2569
        %v2571 = vrot.slane %v2566, %v2570
        %v2574 = vsel %vm1094, %v2561, 0
        %2576 = vmatprep.subr.mxu0 0.0
        %2577 = vmatpush1.msra.mxu0 %v2562
        %2578 = vmatprep.subr.mxu0 0.0
        %2579 = vmatpush1.msra.mxu0 %v2563
        %2580 = vmatprep.subr.mxu0 0.0
        %2581 = vmatpush1.msra.mxu0 %v2564
        %2582 = vmatprep.subr.mxu0 0.0
        %2583 = vmatpush1.msra.mxu0 %v2565
        %2584 = vmatprep.subr.mxu0 0.0
        %2585 = vmatpush1.msra.mxu0 0.0
        %2586 = vmatprep.subr.mxu0 0.0
        %2587 = vmatpush1.msra.mxu0 0.0
        %2588 = vmatprep.subr.mxu0 0.0
        %2589 = vmatpush1.msra.mxu0 0.0
        %2590 = vmatprep.subr.mxu0 0.0
        %2591 = vmatpush1.msra.mxu0 0.0
        %2592 = vmatprep.subr.mxu0 0.0
        %2593 = vmatpush1.msra.mxu0 0.0
        %2594 = vmatprep.subr.mxu0 0.0
        %2595 = vmatpush1.msra.mxu0 0.0
        %2596 = vmatprep.subr.mxu0 0.0
        %2597 = vmatpush1.msra.mxu0 0.0
        %2598 = vmatprep.subr.mxu0 0.0
        %2599 = vmatpush1.msra.mxu0 0.0
        %2600 = vmatprep.subr.mxu0 0.0
        %2601 = vmatpush1.msra.mxu0 0.0
        %2602 = vmatprep.subr.mxu0 0.0
        %2603 = vmatpush1.msra.mxu0 0.0
        %2604 = vmatprep.subr.mxu0 0.0
        %2605 = vmatpush1.msra.mxu0 0.0
        %2606 = vmatprep.subr.mxu0 0.0
        %2607 = vmatpush1.msra.mxu0 0.0
        %2608 = vmatprep.subr.mxu0 0.0
        %2609 = vmatpush1.msra.mxu0 0.0
        %2610 = vmatprep.subr.mxu0 0.0
        %2611 = vmatpush1.msra.mxu0 0.0
        %2612 = vmatprep.subr.mxu0 0.0
        %2613 = vmatpush1.msra.mxu0 0.0
        %2614 = vmatprep.subr.mxu0 0.0
        %2615 = vmatpush1.msra.mxu0 0.0
        %2616 = vmatprep.subr.mxu0 0.0
        %2617 = vmatpush1.msra.mxu0 0.0
        %2618 = vmatprep.subr.mxu0 0.0
        %2619 = vmatpush1.msra.mxu0 0.0
        %2620 = vmatprep.subr.mxu0 0.0
        %2621 = vmatpush1.msra.mxu0 0.0
        %2622 = vmatprep.subr.mxu0 0.0
        %2623 = vmatpush1.msra.mxu0 0.0
        %2624 = vmatprep.subr.mxu0 0.0
        %2625 = vmatpush1.msra.mxu0 0.0
        %2626 = vmatprep.subr.mxu0 0.0
        %2627 = vmatpush1.msra.mxu0 0.0
        %2628 = vmatprep.subr.mxu0 0.0
        %2629 = vmatpush1.msra.mxu0 0.0
        %2630 = vmatprep.subr.mxu0 0.0
        %2631 = vmatpush1.msra.mxu0 0.0
        %2632 = vmatprep.subr.mxu0 0.0
        %2633 = vmatpush1.msra.mxu0 0.0
        %2634 = vmatprep.subr.mxu0 0.0
        %2635 = vmatpush1.msra.mxu0 0.0
        %2636 = vmatprep.subr.mxu0 0.0
        %2637 = vmatpush1.msra.mxu0 0.0
        %2638 = vmatprep.subr.mxu0 0.0
        %2639 = vmatpush1.msra.mxu0 0.0
        %2640 = vmatprep.mubr.f32.mxu0 0.0
        %2641 = vmatmul.mubr.f32.gmra.mrb[0].mxu0 %v2574
        %v2642 = vpop.f32.mrb[0].mxu0
        %v2643 = vadd.f32 %v2571, %v2642
        %v2644 = vpop.f32.mrb[0].mxu0
        %2645 = vdwg.mxu0
        %v2646 = vadd.f32 %v1082, %v2643
        %v2647 = vld [vmem:[%s982] sm:$0x1]
        %v2648 = vld [vmem:[%s985] sm:$0x1]
        %v2649 = vsel %vm1094, %v2646, 0.0
        %2650 = vadd.xlane.f32.xlu0 %v2649
        %v2651 = vpop.xlane.xlu0 %2650
        %v2652 = vrcp.pop 32.0
        %v2653 = vmul.f32 %v2651, %v2652
        %v2654 = vsub.f32 %v2646, %v2653
        %v2655 = vmul.f32 %v2654, %v2654
        %v2656 = vsel %vm1094, %v2655, 0.0
        %2657 = vadd.xlane.f32.xlu0 %v2656
        %v2658 = vpop.xlane.xlu0 %2657
        %v2659 = vmul.f32 %v2658, %v2652
        %v2660 = vadd.f32 %v2659, 1e-05
        %v2661 = vrsqrt.pop %v2660
        %v2662 = vmul.f32 %v2654, %v2661
        %v2664 = vlaneseq
        %v2665 = vshrl.u32 %v2664, 7
        %v2666 = vsub.s32 0, %v2665
        %v2667 = vrot.slane %v2647, %v2666
        %v2669 = vmul.f32 %v2662, %v2667
        %v2671 = vlaneseq
        %v2672 = vshrl.u32 %v2671, 7
        %v2673 = vsub.s32 0, %v2672
        %v2674 = vrot.slane %v2648, %v2673
        %v2676 = vadd.f32 %v2669, %v2674
        %v2677 = vld [vmem:[%s968] sm:$0xff]
        %v2678 = vld [vmem:[%s968 + $0x8] sm:$0xff]
        %v2679 = vld [vmem:[%s968 + $0x10] sm:$0xff]
        %v2680 = vld [vmem:[%s968 + $0x18] sm:$0xff]
        %v2681 = vld [vmem:[%s971] sm:$0x1]
        %v2683 = vlaneseq
        %v2684 = vshrl.u32 %v2683, 7
        %v2685 = vsub.s32 0, %v2684
        %v2686 = vrot.slane %v2681, %v2685
        %v2689 = vsel %vm1094, %v2676, 0
        %2691 = vmatprep.subr.mxu0 0.0
        %2692 = vmatpush1.msra.mxu0 %v2677
        %2693 = vmatprep.subr.mxu0 0.0
        %2694 = vmatpush1.msra.mxu0 %v2678
        %2695 = vmatprep.subr.mxu0 0.0
        %2696 = vmatpush1.msra.mxu0 %v2679
        %2697 = vmatprep.subr.mxu0 0.0
        %2698 = vmatpush1.msra.mxu0 %v2680
        %2699 = vmatprep.subr.mxu0 0.0
        %2700 = vmatpush1.msra.mxu0 0.0
        %2701 = vmatprep.subr.mxu0 0.0
        %2702 = vmatpush1.msra.mxu0 0.0
        %2703 = vmatprep.subr.mxu0 0.0
        %2704 = vmatpush1.msra.mxu0 0.0
        %2705 = vmatprep.subr.mxu0 0.0
        %2706 = vmatpush1.msra.mxu0 0.0
        %2707 = vmatprep.subr.mxu0 0.0
        %2708 = vmatpush1.msra.mxu0 0.0
        %2709 = vmatprep.subr.mxu0 0.0
        %2710 = vmatpush1.msra.mxu0 0.0
        %2711 = vmatprep.subr.mxu0 0.0
        %2712 = vmatpush1.msra.mxu0 0.0
        %2713 = vmatprep.subr.mxu0 0.0
        %2714 = vmatpush1.msra.mxu0 0.0
        %2715 = vmatprep.subr.mxu0 0.0
        %2716 = vmatpush1.msra.mxu0 0.0
        %2717 = vmatprep.subr.mxu0 0.0
        %2718 = vmatpush1.msra.mxu0 0.0
        %2719 = vmatprep.subr.mxu0 0.0
        %2720 = vmatpush1.msra.mxu0 0.0
        %2721 = vmatprep.subr.mxu0 0.0
        %2722 = vmatpush1.msra.mxu0 0.0
        %2723 = vmatprep.subr.mxu0 0.0
        %2724 = vmatpush1.msra.mxu0 0.0
        %2725 = vmatprep.subr.mxu0 0.0
        %2726 = vmatpush1.msra.mxu0 0.0
        %2727 = vmatprep.subr.mxu0 0.0
        %2728 = vmatpush1.msra.mxu0 0.0
        %2729 = vmatprep.subr.mxu0 0.0
        %2730 = vmatpush1.msra.mxu0 0.0
        %2731 = vmatprep.subr.mxu0 0.0
        %2732 = vmatpush1.msra.mxu0 0.0
        %2733 = vmatprep.subr.mxu0 0.0
        %2734 = vmatpush1.msra.mxu0 0.0
        %2735 = vmatprep.subr.mxu0 0.0
        %2736 = vmatpush1.msra.mxu0 0.0
        %2737 = vmatprep.subr.mxu0 0.0
        %2738 = vmatpush1.msra.mxu0 0.0
        %2739 = vmatprep.subr.mxu0 0.0
        %2740 = vmatpush1.msra.mxu0 0.0
        %2741 = vmatprep.subr.mxu0 0.0
        %2742 = vmatpush1.msra.mxu0 0.0
        %2743 = vmatprep.subr.mxu0 0.0
        %2744 = vmatpush1.msra.mxu0 0.0
        %2745 = vmatprep.subr.mxu0 0.0
        %2746 = vmatpush1.msra.mxu0 0.0
        %2747 = vmatprep.subr.mxu0 0.0
        %2748 = vmatpush1.msra.mxu0 0.0
        %2749 = vmatprep.subr.mxu0 0.0
        %2750 = vmatpush1.msra.mxu0 0.0
        %2751 = vmatprep.subr.mxu0 0.0
        %2752 = vmatpush1.msra.mxu0 0.0
        %2753 = vmatprep.subr.mxu0 0.0
        %2754 = vmatpush1.msra.mxu0 0.0
        %2755 = vmatprep.mubr.f32.mxu0 0.0
        %2756 = vmatmul.mubr.f32.gmra.mrb[0].mxu0 %v2689
        %v2757 = vpop.f32.mrb[0].mxu0
        %v2758 = vadd.f32 %v2686, %v2757
        %v2759 = vpop.f32.mrb[0].mxu0
        %2760 = vdwg.mxu0
        %v2761 = vmax.f32 %v2758, 0.0
        %v2762 = vld [vmem:[%s976] sm:$0xff]
        %v2763 = vld [vmem:[%s976 + $0x8] sm:$0xff]
        %v2764 = vld [vmem:[%s976 + $0x10] sm:$0xff]
        %v2765 = vld [vmem:[%s976 + $0x18] sm:$0xff]
        %v2766 = vld [vmem:[%s976 + $0x20] sm:$0xff]
        %v2767 = vld [vmem:[%s976 + $0x28] sm:$0xff]
        %v2768 = vld [vmem:[%s976 + $0x30] sm:$0xff]
        %v2769 = vld [vmem:[%s976 + $0x38] sm:$0xff]
        %v2770 = vld [vmem:[%s976 + $0x40] sm:$0xff]
        %v2771 = vld [vmem:[%s976 + $0x48] sm:$0xff]
        %v2772 = vld [vmem:[%s976 + $0x50] sm:$0xff]
        %v2773 = vld [vmem:[%s976 + $0x58] sm:$0xff]
        %v2774 = vld [vmem:[%s976 + $0x60] sm:$0xff]
        %v2775 = vld [vmem:[%s976 + $0x68] sm:$0xff]
        %v2776 = vld [vmem:[%s976 + $0x70] sm:$0xff]
        %v2777 = vld [vmem:[%s976 + $0x78] sm:$0xff]
        %v2778 = vld [vmem:[%s979] sm:$0x1]
        %v2780 = vlaneseq
        %v2781 = vshrl.u32 %v2780, 7
        %v2782 = vsub.s32 0, %v2781
        %v2783 = vrot.slane %v2778, %v2782
        %2785 = vmatprep.subr.mxu0 0.0
        %2786 = vmatpush1.msra.mxu0 %v2762
        %2787 = vmatprep.subr.mxu0 0.0
        %2788 = vmatpush1.msra.mxu0 %v2763
        %2789 = vmatprep.subr.mxu0 0.0
        %2790 = vmatpush1.msra.mxu0 %v2764
        %2791 = vmatprep.subr.mxu0 0.0
        %2792 = vmatpush1.msra.mxu0 %v2765
        %2793 = vmatprep.subr.mxu0 0.0
        %2794 = vmatpush1.msra.mxu0 %v2766
        %2795 = vmatprep.subr.mxu0 0.0
        %2796 = vmatpush1.msra.mxu0 %v2767
        %2797 = vmatprep.subr.mxu0 0.0
        %2798 = vmatpush1.msra.mxu0 %v2768
        %2799 = vmatprep.subr.mxu0 0.0
        %2800 = vmatpush1.msra.mxu0 %v2769
        %2801 = vmatprep.subr.mxu0 0.0
        %2802 = vmatpush1.msra.mxu0 %v2770
        %2803 = vmatprep.subr.mxu0 0.0
        %2804 = vmatpush1.msra.mxu0 %v2771
        %2805 = vmatprep.subr.mxu0 0.0
        %2806 = vmatpush1.msra.mxu0 %v2772
        %2807 = vmatprep.subr.mxu0 0.0
        %2808 = vmatpush1.msra.mxu0 %v2773
        %2809 = vmatprep.subr.mxu0 0.0
        %2810 = vmatpush1.msra.mxu0 %v2774
        %2811 = vmatprep.subr.mxu0 0.0
        %2812 = vmatpush1.msra.mxu0 %v2775
        %2813 = vmatprep.subr.mxu0 0.0
        %2814 = vmatpush1.msra.mxu0 %v2776
        %2815 = vmatprep.subr.mxu0 0.0
        %2816 = vmatpush1.msra.mxu0 %v2777
        %2817 = vmatprep.subr.mxu0 0.0
        %2818 = vmatpush1.msra.mxu0 0.0
        %2819 = vmatprep.subr.mxu0 0.0
        %2820 = vmatpush1.msra.mxu0 0.0
        %2821 = vmatprep.subr.mxu0 0.0
        %2822 = vmatpush1.msra.mxu0 0.0
        %2823 = vmatprep.subr.mxu0 0.0
        %2824 = vmatpush1.msra.mxu0 0.0
        %2825 = vmatprep.subr.mxu0 0.0
        %2826 = vmatpush1.msra.mxu0 0.0
        %2827 = vmatprep.subr.mxu0 0.0
        %2828 = vmatpush1.msra.mxu0 0.0
        %2829 = vmatprep.subr.mxu0 0.0
        %2830 = vmatpush1.msra.mxu0 0.0
        %2831 = vmatprep.subr.mxu0 0.0
        %2832 = vmatpush1.msra.mxu0 0.0
        %2833 = vmatprep.subr.mxu0 0.0
        %2834 = vmatpush1.msra.mxu0 0.0
        %2835 = vmatprep.subr.mxu0 0.0
        %2836 = vmatpush1.msra.mxu0 0.0
        %2837 = vmatprep.subr.mxu0 0.0
        %2838 = vmatpush1.msra.mxu0 0.0
        %2839 = vmatprep.subr.mxu0 0.0
        %2840 = vmatpush1.msra.mxu0 0.0
        %2841 = vmatprep.subr.mxu0 0.0
        %2842 = vmatpush1.msra.mxu0 0.0
        %2843 = vmatprep.subr.mxu0 0.0
        %2844 = vmatpush1.msra.mxu0 0.0
        %2845 = vmatprep.subr.mxu0 0.0
        %2846 = vmatpush1.msra.mxu0 0.0
        %2847 = vmatprep.subr.mxu0 0.0
        %2848 = vmatpush1.msra.mxu0 0.0
        %2849 = vmatprep.mubr.f32.mxu0 0.0
        %2850 = vmatmul.mubr.f32.gmra.mrb[0].mxu0 %v2761
        %v2851 = vpop.f32.mrb[0].mxu0
        %v2852 = vadd.f32 %v2783, %v2851
        %v2853 = vpop.f32.mrb[0].mxu0
        %2854 = vdwg.mxu0
        %v2855 = vadd.f32 %v2676, %v2852
        %v2856 = vld [vmem:[%s988] sm:$0x1]
        %v2857 = vld [vmem:[%s991] sm:$0x1]
        %v2858 = vsel %vm1094, %v2855, 0.0
        %2859 = vadd.xlane.f32.xlu0 %v2858
        %v2860 = vpop.xlane.xlu0 %2859
        %v2861 = vmul.f32 %v2860, %v2652
        %v2862 = vsub.f32 %v2855, %v2861
        %v2863 = vmul.f32 %v2862, %v2862
        %v2864 = vsel %vm1094, %v2863, 0.0
        %2865 = vadd.xlane.f32.xlu0 %v2864
        %v2866 = vpop.xlane.xlu0 %2865
        %v2867 = vmul.f32 %v2866, %v2652
        %v2868 = vadd.f32 %v2867, 1e-05
        %v2869 = vrsqrt.pop %v2868
        %v2870 = vmul.f32 %v2862, %v2869
        %v2872 = vlaneseq
        %v2873 = vshrl.u32 %v2872, 7
        %v2874 = vsub.s32 0, %v2873
        %v2875 = vrot.slane %v2856, %v2874
        %v2877 = vmul.f32 %v2870, %v2875
        %v2879 = vlaneseq
        %v2880 = vshrl.u32 %v2879, 7
        %v2881 = vsub.s32 0, %v2880
        %v2882 = vrot.slane %v2857, %v2881
        %v2884 = vadd.f32 %v2877, %v2882
        %2885 = vst.msk [vmem:[#allocation2] sm:$0xff] %vm1094, %v2884
        %p2886 = scmp.eq.s32.totalorder %s44, 1
        // Predicated region
        $region125: #{tpu_custom_call.1} parent=103 // pred_check
          %p2887 = pneg %p2886
        $region126: #{tpu_custom_call.1} parent=103 // pred_check_branch
          %2889 = sbr.rel (%p2887) target = $region128
        $region127: #{tpu_custom_call.1} parent=103 // pred_region
          %v2890 = vld [vmem:[%s19] sm:$0xff]
          %v2891 = vld [vmem:[%s19 + $0x8] sm:$0xff]
          %v2892 = vld [vmem:[%s19 + $0x10] sm:$0xff]
          %v2893 = vld [vmem:[%s19 + $0x18] sm:$0xff]
          %v2894 = vld [vmem:[%s20] sm:$0x1]
          %v2896 = vrot.slane %v2884, 7
          %v2897 = vsel %vm1094, %v2896, 0
          %2899 = vmatprep.subr.mxu0 0.0
          %2900 = vmatpush1.msra.mxu0 %v2890
          %2901 = vmatprep.subr.mxu0 0.0
          %2902 = vmatpush1.msra.mxu0 %v2891
          %2903 = vmatprep.subr.mxu0 0.0
          %2904 = vmatpush1.msra.mxu0 %v2892
          %2905 = vmatprep.subr.mxu0 0.0
          %2906 = vmatpush1.msra.mxu0 %v2893
          %2907 = vmatprep.subr.mxu0 0.0
          %2908 = vmatpush1.msra.mxu0 0.0
          %2909 = vmatprep.subr.mxu0 0.0
          %2910 = vmatpush1.msra.mxu0 0.0
          %2911 = vmatprep.subr.mxu0 0.0
          %2912 = vmatpush1.msra.mxu0 0.0
          %2913 = vmatprep.subr.mxu0 0.0
          %2914 = vmatpush1.msra.mxu0 0.0
          %2915 = vmatprep.subr.mxu0 0.0
          %2916 = vmatpush1.msra.mxu0 0.0
          %2917 = vmatprep.subr.mxu0 0.0
          %2918 = vmatpush1.msra.mxu0 0.0
          %2919 = vmatprep.subr.mxu0 0.0
          %2920 = vmatpush1.msra.mxu0 0.0
          %2921 = vmatprep.subr.mxu0 0.0
          %2922 = vmatpush1.msra.mxu0 0.0
          %2923 = vmatprep.subr.mxu0 0.0
          %2924 = vmatpush1.msra.mxu0 0.0
          %2925 = vmatprep.subr.mxu0 0.0
          %2926 = vmatpush1.msra.mxu0 0.0
          %2927 = vmatprep.subr.mxu0 0.0
          %2928 = vmatpush1.msra.mxu0 0.0
          %2929 = vmatprep.subr.mxu0 0.0
          %2930 = vmatpush1.msra.mxu0 0.0
          %2931 = vmatprep.subr.mxu0 0.0
          %2932 = vmatpush1.msra.mxu0 0.0
          %2933 = vmatprep.subr.mxu0 0.0
          %2934 = vmatpush1.msra.mxu0 0.0
          %2935 = vmatprep.subr.mxu0 0.0
          %2936 = vmatpush1.msra.mxu0 0.0
          %2937 = vmatprep.subr.mxu0 0.0
          %2938 = vmatpush1.msra.mxu0 0.0
          %2939 = vmatprep.subr.mxu0 0.0
          %2940 = vmatpush1.msra.mxu0 0.0
          %2941 = vmatprep.subr.mxu0 0.0
          %2942 = vmatpush1.msra.mxu0 0.0
          %2943 = vmatprep.subr.mxu0 0.0
          %2944 = vmatpush1.msra.mxu0 0.0
          %2945 = vmatprep.subr.mxu0 0.0
          %2946 = vmatpush1.msra.mxu0 0.0
          %2947 = vmatprep.subr.mxu0 0.0
          %2948 = vmatpush1.msra.mxu0 0.0
          %2949 = vmatprep.subr.mxu0 0.0
          %2950 = vmatpush1.msra.mxu0 0.0
          %2951 = vmatprep.subr.mxu0 0.0
          %2952 = vmatpush1.msra.mxu0 0.0
          %2953 = vmatprep.subr.mxu0 0.0
          %2954 = vmatpush1.msra.mxu0 0.0
          %2955 = vmatprep.subr.mxu0 0.0
          %2956 = vmatpush1.msra.mxu0 0.0
          %2957 = vmatprep.subr.mxu0 0.0
          %2958 = vmatpush1.msra.mxu0 0.0
          %2959 = vmatprep.subr.mxu0 0.0
          %2960 = vmatpush1.msra.mxu0 0.0
          %2961 = vmatprep.subr.mxu0 0.0
          %2962 = vmatpush1.msra.mxu0 0.0
          %2963 = vmatprep.mubr.f32.mxu0 0.0
          %2964 = vmatmul.mubr.f32.gmra.mrb[0].mxu0 %v2897
          %v2965 = vpop.f32.mrb[0].mxu0
          %v2966 = vadd.f32 %v2894, %v2965
          %v2967 = vpop.f32.mrb[0].mxu0
          %2968 = vdwg.mxu0
          %2969 = vst [vmem:[%s937] sm:$0x1] %v2966
        $region128: #{tpu_custom_call.1} parent=103 // pred_fallthru
          _
        %s2970 = sand.u32 %s585, 1
        %s2971 = scalar_lea.sflag [#allocation5], %s2970
        %s2972 = sand.u32 %s585, 1
        %s2973 = scalar_lea.vmem [#allocation10], %s2972
        // Predicated region
        $region129: #{tpu_custom_call.1} parent=103 // pred_check
          %p2974 = pneg %p595
        $region130: #{tpu_custom_call.1} parent=103 // pred_check_branch
          %2976 = sbr.rel (%p2974) target = $region132
        $region131: #{tpu_custom_call.1} parent=103 // pred_region
          %s2978 = ssub.s32 16, 16
          %2979 = vsyncadd %s2971, %s2978
          %s2980 = smul.addr %s43, 16
          %s2981 = scalar_lea.hbm %s21, %s2980
          %s2983 = sshll.u32 %s2973, 4
          %s2984 = int_to_ptr.vmem [resolvable:$true] %s2983
          %2986 = dma.vmem_to_hbm [thread:$0]  %s2984, 16, %s2981, %s2971
        $region132: #{tpu_custom_call.1} parent=103 // pred_fallthru
          _
      $region104: #{tpu_custom_call.1} parent=5 // pred_fallthru
        _
      %p2987 = scmp.le.s32.totalorder 2, %s34
      // Predicated region
      $region133: #{tpu_custom_call.1} parent=5 // pred_check
        %p2988 = pneg %p2987
      $region134: #{tpu_custom_call.1} parent=5 // pred_check_branch
        %2990 = sbr.rel (%p2988) target = $region136
      $region135: #{tpu_custom_call.1} parent=5 // pred_region
        %s2991 = ssub.s32 %s34, 2
        // Predicated region
        $region137: #{tpu_custom_call.1} parent=135 // pred_check
          %p2992 = pneg %p601
        $region138: #{tpu_custom_call.1} parent=135 // pred_check_branch
          %2994 = sbr.rel (%p2992) target = $region140
        $region139: #{tpu_custom_call.1} parent=135 // pred_region
          %s2995 = sand.u32 %s586, 1
          %s2996 = scalar_lea.sflag [#allocation5], %s2995
          %s2997 = sand.u32 %s586, 1
          %s2998 = scalar_lea.vmem [#allocation10], %s2997
          %2999 = dma.done %s2996, 16
        $region140: #{tpu_custom_call.1} parent=135 // pred_fallthru
          _
      $region136: #{tpu_custom_call.1} parent=5 // pred_fallthru
        _
    $region6: #{tpu_custom_call.1} parent=1 // loop_footer
      %s38 = sadd.s32 1, %s34
    $region7: #{tpu_custom_call.1} parent=1 // loop_footer_branch
      %33 = sbr.rel target = $region3
    $region8: #{tpu_custom_call.1} parent=1 // loop_exit
      _
    %3000 = vsyncpa [#allocation4], 1
    %s3001 = scalar_lea.sflag [#allocation4], 1
    %3002 = vsyncpa %s3001, 1
    %3003 = vsyncpa [#allocation7], 1
    %3004 = vsyncpa [#allocation5], 1
    %s3005 = scalar_lea.sflag [#allocation5], 1
    %3006 = vsyncpa %s3005, 1

</llo_original>
